<compile_context>
chip_gen: v6e
topology: v6e:2x2x1
jax: 0.10.0
libtpu: 0.0.40
codegen_flags: <defaults>
</compile_context>

<pallas_src>
import numpy as np
import jax
import jax.numpy as jnp
from jax import lax
from jax.experimental import pallas as pl


# ----------------------------------------------------------------------------
# Constant-matrix builder: a stride-s (kh x kw) conv on an NHWC activation that
# is flattened to 2D as  X[(block*Hin + row), (col*Cin + ci)]  becomes
#     out = sum_i  L[i] @ X @ M[i]  + b_row
# with  L[i][(b*Hout+oy), (b*Hin+r)]   = [r == s*oy + i - pad]
#       M[i][(c*Cin+ci), (ox*Cout+co)] = sum_j [c == s*ox + j - pad] W[co,ci,i,j]
# Out-of-range taps simply have no matching entry, so zero padding is implicit
# and the Pallas kernel body is pure matmuls.
# ----------------------------------------------------------------------------
def conv_as_matmul_constants(num_blocks, hin, win, hout, wout, kh, kw,
                             stride, pad, weight, bias):
    cout, cin = weight.shape[0], weight.shape[1]
    L = np.zeros((kh, num_blocks * hout, num_blocks * hin), np.float32)
    for i in range(kh):
        for b in range(num_blocks):
            for oy in range(hout):
                r = stride * oy + i - pad
                if 0 <= r < hin:
                    L[i, b * hout + oy, b * hin + r] = 1.0
    T = np.zeros((kw, win, wout), np.float32)
    for j in range(kw):
        for ox in range(wout):
            c = stride * ox + j - pad
            if 0 <= c < win:
                T[j, c, ox] = 1.0
    # M[i, c*Cin+ci, ox*Cout+co] = sum_j T[j, c, ox] * W[co, ci, i, j]
    M = jnp.einsum("jcx,oaij->icaxo", jnp.asarray(T), weight)
    M = M.reshape(kh, win * cin, wout * cout)
    b_row = jnp.tile(bias, (wout,)).reshape(1, wout * cout)
    return jnp.asarray(L), M, b_row


# ----------------------------------------------------------------------------
# In-kernel helper: apply one conv expressed as constant matmuls.
# ----------------------------------------------------------------------------
def _conv_matmul(x, l_ref, m_ref, b_ref):
    kh = l_ref.shape[0]
    acc = jnp.dot(jnp.dot(l_ref[0], x, preferred_element_type=jnp.float32),
                  m_ref[0], preferred_element_type=jnp.float32)
    for i in range(1, kh):
        acc = acc + jnp.dot(
            jnp.dot(l_ref[i], x, preferred_element_type=jnp.float32),
            m_ref[i], preferred_element_type=jnp.float32)
    return acc + b_ref[...]


# ----------------------------------------------------------------------------
# Pallas kernel 1: fused global network (conv -> conv -> 1x1 saliency conv).
# All intermediates stay in VMEM; single invocation (no grid).
# ----------------------------------------------------------------------------
def _global_net_kernel(x_ref, l1_ref, m1_ref, b1_ref, l2_ref, m2_ref, b2_ref,
                       ms_ref, bs_ref, sal_ref):
    h1 = jnp.maximum(_conv_matmul(x_ref[...], l1_ref, m1_ref, b1_ref), 0.0)
    hg = jnp.maximum(_conv_matmul(h1, l2_ref, m2_ref, b2_ref), 0.0)
    sal_ref[...] = jax.nn.sigmoid(
        jnp.dot(hg, ms_ref[...], preferred_element_type=jnp.float32) + bs_ref[...])


def global_network_saliency(x, p, nc):
    """x: (S, 1, H, W) -> saliency map (S, nc, H//4, W//4) in one fused kernel."""
    S, _, H, W = x.shape
    H1, W1, H2, W2 = H // 2, W // 2, H // 4, W // 4
    L1, M1, b1 = conv_as_matmul_constants(S, H, W, H1, W1, 3, 3, 2, 1,
                                          p["g_w1"], p["g_b1"])
    L2, M2, b2 = conv_as_matmul_constants(S, H1, W1, H2, W2, 3, 3, 2, 1,
                                          p["g_w2"], p["g_b2"])
    _, Ms, bs = conv_as_matmul_constants(S, H2, W2, H2, W2, 1, 1, 1, 0,
                                         p["s_w"], p["s_b"])
    x2d = x.reshape(S * H, W)                                  # Cin = 1: lanes = col
    sal2d = pl.pallas_call(
        _global_net_kernel,
        out_shape=jax.ShapeDtypeStruct((S * H2, W2 * nc), jnp.float32),
    )(x2d, L1, M1, b1, L2, M2, b2, Ms[0], bs)
    # rows = (slice, oy), lanes = (ox, class) -> (S, nc, H2, W2)
    return sal2d.reshape(S, H2, W2, nc).transpose(0, 3, 1, 2)


# ----------------------------------------------------------------------------
# Pallas kernel 2: fused local network + GAP + gated-attention MIL head.
# ----------------------------------------------------------------------------
def _local_attn_kernel(x_ref, l1_ref, m1_ref, b1_ref, l2_ref, m2_ref, b2_ref,
                       ag_ref, ac_ref, v_ref, u_ref, wa_ref, wc_ref, bc_ref,
                       y_ref):
    h1 = jnp.maximum(_conv_matmul(x_ref[...], l1_ref, m1_ref, b1_ref), 0.0)
    h2 = jnp.maximum(_conv_matmul(h1, l2_ref, m2_ref, b2_ref), 0.0)
    # global average pool as two constant matmuls -> (K, C2)
    h = jnp.dot(jnp.dot(ag_ref[...], h2, preferred_element_type=jnp.float32),
                ac_ref[...], preferred_element_type=jnp.float32)
    # gated attention
    a_t = jnp.tanh(jnp.dot(h, v_ref[...], preferred_element_type=jnp.float32))
    a_g = jax.nn.sigmoid(jnp.dot(h, u_ref[...], preferred_element_type=jnp.float32))
    scores = jnp.dot(a_t * a_g, wa_ref[...],
                     preferred_element_type=jnp.float32)          # (K, 1)
    m = jnp.max(scores, axis=0, keepdims=True)
    e = jnp.exp(scores - m)
    attn = e / jnp.sum(e, axis=0, keepdims=True)                  # softmax over K
    z = jnp.sum(attn * h, axis=0, keepdims=True)                  # (1, C2)
    y_ref[...] = jax.nn.sigmoid(
        jnp.dot(z, wc_ref[...], preferred_element_type=jnp.float32) + bc_ref[...])


def local_network_and_attention(crops, p, nc):
    """crops: (K, 1, ch, cw) -> y_local (1, nc), one fused kernel."""
    K, _, ch, cw = crops.shape
    c2 = p["l_w2"].shape[0]
    h1, w1, h2, w2 = ch // 2, cw // 2, ch // 4, cw // 4
    L1, M1, b1 = conv_as_matmul_constants(K, ch, cw, h1, w1, 3, 3, 2, 1,
                                          p["l_w1"], p["l_b1"])
    L2, M2, b2 = conv_as_matmul_constants(K, h1, w1, h2, w2, 3, 3, 2, 1,
                                          p["l_w2"], p["l_b2"])
    # GAP: rows (k, oy) averaged per crop, lanes (ox, co) collapsed to co.
    Ag = np.zeros((K, K * h2), np.float32)
    for k in range(K):
        Ag[k, k * h2:(k + 1) * h2] = 1.0 / h2
    Ac = np.zeros((w2 * c2, c2), np.float32)
    for ox in range(w2):
        for co in range(c2):
            Ac[ox * c2 + co, co] = 1.0 / w2
    x2d = crops.reshape(K * ch, cw)
    return pl.pallas_call(
        _local_attn_kernel,
        out_shape=jax.ShapeDtypeStruct((1, nc), jnp.float32),
    )(x2d, L1, M1, b1, L2, M2, b2, jnp.asarray(Ag), jnp.asarray(Ac),
      p["att_V"], p["att_U"], p["att_w"], p["cls_W"], p["cls_b"])


# ----------------------------------------------------------------------------
# Top-t% aggregation (tiny; plain jnp so XLA fuses it).
# ----------------------------------------------------------------------------
def top_t_percent_aggregation(sal_flat, num_slices, percent_t):
    _, nc, L = sal_flat.shape
    per_slice = L // num_slices
    top_t = max(1, int(round(percent_t * per_slice)))
    # TODO(synk): top_k (sort/selection) has no clean Pallas equivalent; it is a
    # handful of elements so it stays as plain XLA ops.
    topv = lax.top_k(sal_flat[0], top_t)[0]                       # (nc, top_t)
    return jnp.mean(topv, axis=1).reshape(1, nc)


# ----------------------------------------------------------------------------
# ROI retrieval: fully on device (no host sync, no Python-over-data loops).
# ----------------------------------------------------------------------------
def retrieve_roi_crops(saliency, image_hw, crop_shape, num_crops):
    """Greedy per-slice ROI selection with masking (device-side)."""
    S, _, h, w = saliency.shape
    H, W = image_hw
    ch = max(1, int(round(crop_shape[0] * h / H)))
    cw = max(1, int(round(crop_shape[1] * w / W)))
    mn = jnp.min(saliency, axis=(2, 3), keepdims=True)
    mx = jnp.max(saliency, axis=(2, 3), keepdims=True)
    cur = jnp.sum((saliency - mn) / (mx - mn + 1e-8), axis=1)     # (S, h, w)
    ow = w - cw + 1
    row_ids = jnp.arange(h)
    col_ids = jnp.arange(w)
    positions, max_slices = [], []
    for _ in range(num_crops):                                    # static trip count
        # sliding-window mean via 2D integral image
        integ = jnp.pad(jnp.cumsum(jnp.cumsum(cur, axis=1), axis=2),
                        ((0, 0), (1, 0), (1, 0)))
        wsum = (integ[:, ch:, cw:] - integ[:, :-ch, cw:]
                - integ[:, ch:, :-cw] + integ[:, :-ch, :-cw])     # (S, oh, ow)
        flat = (wsum / (ch * cw)).reshape(S, -1)
        idx = jnp.argmax(flat, axis=1)                            # per-slice argmax
        yi, xi = idx // ow, idx % ow
        max_slices.append(jnp.argmax(jnp.max(flat, axis=1)))      # globally-best slice
        positions.append(jnp.stack([yi, xi], axis=-1))            # (S, 2)
        # zero out the selected window in every slice (at its own position)
        rmask = (row_ids[None, :] >= yi[:, None]) & (row_ids[None, :] < yi[:, None] + ch)
        cmask = (col_ids[None, :] >= xi[:, None]) & (col_ids[None, :] < xi[:, None] + cw)
        cur = jnp.where(rmask[:, :, None] & cmask[:, None, :], 0.0, cur)
    max_slices = jnp.stack(max_slices)                            # (num_crops,)
    small_x = jnp.stack(positions, axis=1).astype(jnp.float32)    # (S, num_crops, 2)
    return max_slices, max_slices, small_x


def convert_crop_position(crops_x_small, cam_size, image_hw):
    h, w = cam_size
    H, W = image_hw
    ix = jnp.round(crops_x_small[:, :, 0] / h * H)
    iy = jnp.round(crops_x_small[:, :, 1] / w * W)
    return jnp.stack([ix, iy], axis=-1)                           # (S, K, 2)


def retrieve_crop_3d(x, crop_positions, max_slice_numbers, crop_shape):
    """Gather the globally-best crop per step with lax.dynamic_slice (on device)."""
    # TODO(synk): per-crop data-dependent gather uses lax.dynamic_slice rather
    # than a scalar-prefetch Pallas gather (2 tiny crops; not worth a kernel).
    S, _, H, W = x.shape
    ch, cw = crop_shape
    K = crop_positions.shape[1]
    crops = []
    for j in range(K):                                            # static trip count
        s = max_slice_numbers[j]
        pos = crop_positions[s, j]
        y0 = jnp.clip(pos[0].astype(jnp.int32), 0, H - ch)
        x0 = jnp.clip(pos[1].astype(jnp.int32), 0, W - cw)
        crops.append(lax.dynamic_slice(x[s, 0], (y0, x0), (ch, cw)))
    return jnp.stack(crops)[None, :, None, :, :]                  # (1, K, 1, ch, cw)


# ----------------------------------------------------------------------------
# GMIC3D forward
# ----------------------------------------------------------------------------
def gmic3d_forward(x_original, params, cfg):
    N, C, num_slices, H, W = x_original.shape
    assert N == 1, "3D-GMIC is designed to work with batch size of 1"
    assert C == 1, "Input is expected to be 1-channel image"
    nc = cfg["num_classes"]
    x = x_original.reshape(num_slices, 1, H, W)

    # global network + saliency map: one fused Pallas kernel
    saliency = global_network_saliency(x, params, nc)             # (S, nc, h, w)
    S, _, hh, ww = saliency.shape
    cam_size = (hh, ww)

    # top-t% aggregation over the flattened (all-slices) saliency map
    sal_flat = saliency.transpose(1, 0, 2, 3).reshape(1, nc, -1)
    y_global = top_t_percent_aggregation(sal_flat, S, cfg["percent_t"])

    # ROI retrieval (entirely on device)
    _intended, max_slices, small_x = retrieve_roi_crops(
        saliency, (H, W), cfg["crop_shape"], cfg["num_crops"])
    patch_locations = convert_crop_position(small_x, cam_size, (H, W))
    crops = retrieve_crop_3d(x, patch_locations, max_slices, cfg["crop_shape"])

    # local network + GAP + gated attention + classifier: one fused kernel
    bs, K, spp, I, J = crops.shape
    assert bs == 1
    y_local = local_network_and_attention(
        crops.reshape(bs * K, spp, I, J), params, nc)

    return 0.5 * y_global + 0.5 * y_local


# ----------------------------------------------------------------------------
# Deterministic parameter init (synthetic; shapes follow the module structure)
# ----------------------------------------------------------------------------
def init_params(key, nc=2):
    ks = jax.random.split(key, 9)

    def w(k, shape, scale=0.1):
        return scale * jax.random.normal(k, shape, jnp.float32)

    return dict(
        g_w1=w(ks[0], (8, 1, 3, 3)), g_b1=jnp.zeros((8,), jnp.float32),
        g_w2=w(ks[1], (8, 8, 3, 3)), g_b2=jnp.zeros((8,), jnp.float32),
        s_w=w(ks[2], (nc, 8, 1, 1)), s_b=jnp.zeros((nc,), jnp.float32),
        l_w1=w(ks[3], (8, 1, 3, 3)), l_b1=jnp.zeros((8,), jnp.float32),
        l_w2=w(ks[4], (16, 8, 3, 3)), l_b2=jnp.zeros((16,), jnp.float32),
        att_V=w(ks[5], (16, 8)), att_U=w(ks[6], (16, 8)),
        att_w=w(ks[7], (8, 1)),
        cls_W=w(ks[8], (16, nc)), cls_b=jnp.zeros((1, nc), jnp.float32),
    )


if __name__ == "__main__":
    cfg = dict(crop_shape=(16, 16), percent_t=0.1, num_crops=2, num_classes=2)
    key = jax.random.PRNGKey(0)
    kx, kp = jax.random.split(key)
    # x_original: N=1, C=1, num_slices=4, H=32, W=32
    x = jax.random.uniform(kx, (1, 1, 4, 32, 32), jnp.float32)
    params = init_params(kp, nc=cfg["num_classes"])

    forward = jax.jit(lambda xv, pv: gmic3d_forward(xv, pv, cfg))
    out = forward(x, params)
    out = jax.block_until_ready(out)
    assert out.shape == (1, cfg["num_classes"])
    assert bool(jnp.all(jnp.isfinite(out)))
    print("KERNEL_OK")
</pallas_src>

<mosaic_0001>
module attributes {stable_mosaic.version = 11 : i64} {
  func.func @_global_net_kernel(%arg0: memref<128x32xf32, #tpu.memory_space<vmem>>, %arg1: memref<3x64x128xf32, #tpu.memory_space<vmem>>, %arg2: memref<3x32x128xf32, #tpu.memory_space<vmem>>, %arg3: memref<1x128xf32, #tpu.memory_space<vmem>>, %arg4: memref<3x32x64xf32, #tpu.memory_space<vmem>>, %arg5: memref<3x128x64xf32, #tpu.memory_space<vmem>>, %arg6: memref<1x64xf32, #tpu.memory_space<vmem>>, %arg7: memref<64x16xf32, #tpu.memory_space<vmem>>, %arg8: memref<1x16xf32, #tpu.memory_space<vmem>>, %arg9: memref<32x16xf32, #tpu.memory_space<vmem>>) attributes {dimension_semantics = [], scalar_prefetch = 0 : i64, scratch_operands = 0 : i64, tpu.core_type = #tpu.core_type<tc>} {
    %c0 = arith.constant 0 : index
    %c0_0 = arith.constant 0 : index
    %0 = vector.load %arg0[%c0, %c0_0] : memref<128x32xf32, #tpu.memory_space<vmem>>, vector<128x32xf32>
    %c0_1 = arith.constant 0 : index
    %c0_2 = arith.constant 0 : index
    %c0_3 = arith.constant 0 : index
    %1 = vector.load %arg1[%c0_1, %c0_2, %c0_3] : memref<3x64x128xf32, #tpu.memory_space<vmem>>, vector<1x64x128xf32>
    %2 = vector.shape_cast %1 : vector<1x64x128xf32> to vector<64x128xf32>
    %cst = arith.constant dense<0.000000e+00> : vector<64x32xf32>
    %3 = tpu.matmul %2, %0, %cst {dimension_numbers = #tpu.dot_dimension_numbers<[1], [0], [0], [1], [0, 0, 1, 1], [], []>} : vector<64x128xf32>, vector<128x32xf32>, vector<64x32xf32> -> vector<64x32xf32>
    %c0_4 = arith.constant 0 : index
    %c0_5 = arith.constant 0 : index
    %c0_6 = arith.constant 0 : index
    %4 = vector.load %arg2[%c0_4, %c0_5, %c0_6] : memref<3x32x128xf32, #tpu.memory_space<vmem>>, vector<1x32x128xf32>
    %5 = vector.shape_cast %4 : vector<1x32x128xf32> to vector<32x128xf32>
    %cst_7 = arith.constant dense<0.000000e+00> : vector<64x128xf32>
    %6 = tpu.matmul %3, %5, %cst_7 {dimension_numbers = #tpu.dot_dimension_numbers<[1], [0], [0], [1], [0, 0, 1, 1], [], []>} : vector<64x32xf32>, vector<32x128xf32>, vector<64x128xf32> -> vector<64x128xf32>
    %c1 = arith.constant 1 : index
    %c0_8 = arith.constant 0 : index
    %c0_9 = arith.constant 0 : index
    %7 = vector.load %arg1[%c1, %c0_8, %c0_9] : memref<3x64x128xf32, #tpu.memory_space<vmem>>, vector<1x64x128xf32>
    %8 = vector.shape_cast %7 : vector<1x64x128xf32> to vector<64x128xf32>
    %cst_10 = arith.constant dense<0.000000e+00> : vector<64x32xf32>
    %9 = tpu.matmul %8, %0, %cst_10 {dimension_numbers = #tpu.dot_dimension_numbers<[1], [0], [0], [1], [0, 0, 1, 1], [], []>} : vector<64x128xf32>, vector<128x32xf32>, vector<64x32xf32> -> vector<64x32xf32>
    %c1_11 = arith.constant 1 : index
    %c0_12 = arith.constant 0 : index
    %c0_13 = arith.constant 0 : index
    %10 = vector.load %arg2[%c1_11, %c0_12, %c0_13] : memref<3x32x128xf32, #tpu.memory_space<vmem>>, vector<1x32x128xf32>
    %11 = vector.shape_cast %10 : vector<1x32x128xf32> to vector<32x128xf32>
    %cst_14 = arith.constant dense<0.000000e+00> : vector<64x128xf32>
    %12 = tpu.matmul %9, %11, %cst_14 {dimension_numbers = #tpu.dot_dimension_numbers<[1], [0], [0], [1], [0, 0, 1, 1], [], []>} : vector<64x32xf32>, vector<32x128xf32>, vector<64x128xf32> -> vector<64x128xf32>
    %13 = arith.addf %6, %12 : vector<64x128xf32>
    %c2 = arith.constant 2 : index
    %c0_15 = arith.constant 0 : index
    %c0_16 = arith.constant 0 : index
    %14 = vector.load %arg1[%c2, %c0_15, %c0_16] : memref<3x64x128xf32, #tpu.memory_space<vmem>>, vector<1x64x128xf32>
    %15 = vector.shape_cast %14 : vector<1x64x128xf32> to vector<64x128xf32>
    %cst_17 = arith.constant dense<0.000000e+00> : vector<64x32xf32>
    %16 = tpu.matmul %15, %0, %cst_17 {dimension_numbers = #tpu.dot_dimension_numbers<[1], [0], [0], [1], [0, 0, 1, 1], [], []>} : vector<64x128xf32>, vector<128x32xf32>, vector<64x32xf32> -> vector<64x32xf32>
    %c2_18 = arith.constant 2 : index
    %c0_19 = arith.constant 0 : index
    %c0_20 = arith.constant 0 : index
    %17 = vector.load %arg2[%c2_18, %c0_19, %c0_20] : memref<3x32x128xf32, #tpu.memory_space<vmem>>, vector<1x32x128xf32>
    %18 = vector.shape_cast %17 : vector<1x32x128xf32> to vector<32x128xf32>
    %cst_21 = arith.constant dense<0.000000e+00> : vector<64x128xf32>
    %19 = tpu.matmul %16, %18, %cst_21 {dimension_numbers = #tpu.dot_dimension_numbers<[1], [0], [0], [1], [0, 0, 1, 1], [], []>} : vector<64x32xf32>, vector<32x128xf32>, vector<64x128xf32> -> vector<64x128xf32>
    %20 = arith.addf %13, %19 : vector<64x128xf32>
    %c0_22 = arith.constant 0 : index
    %c0_23 = arith.constant 0 : index
    %21 = vector.load %arg3[%c0_22, %c0_23] : memref<1x128xf32, #tpu.memory_space<vmem>>, vector<1x128xf32>
    %22 = vector.broadcast %21 : vector<1x128xf32> to vector<64x128xf32>
    %23 = arith.addf %20, %22 : vector<64x128xf32>
    %cst_24 = arith.constant 0.000000e+00 : f32
    %24 = vector.broadcast %cst_24 : f32 to vector<64x128xf32>
    %25 = arith.maximumf %23, %24 : vector<64x128xf32>
    %c0_25 = arith.constant 0 : index
    %c0_26 = arith.constant 0 : index
    %c0_27 = arith.constant 0 : index
    %26 = vector.load %arg4[%c0_25, %c0_26, %c0_27] : memref<3x32x64xf32, #tpu.memory_space<vmem>>, vector<1x32x64xf32>
    %27 = vector.shape_cast %26 : vector<1x32x64xf32> to vector<32x64xf32>
    %cst_28 = arith.constant dense<0.000000e+00> : vector<32x128xf32>
    %28 = tpu.matmul %27, %25, %cst_28 {dimension_numbers = #tpu.dot_dimension_numbers<[1], [0], [0], [1], [0, 0, 1, 1], [], []>} : vector<32x64xf32>, vector<64x128xf32>, vector<32x128xf32> -> vector<32x128xf32>
    %c0_29 = arith.constant 0 : index
    %c0_30 = arith.constant 0 : index
    %c0_31 = arith.constant 0 : index
    %29 = vector.load %arg5[%c0_29, %c0_30, %c0_31] : memref<3x128x64xf32, #tpu.memory_space<vmem>>, vector<1x128x64xf32>
    %30 = vector.shape_cast %29 : vector<1x128x64xf32> to vector<128x64xf32>
    %cst_32 = arith.constant dense<0.000000e+00> : vector<32x64xf32>
    %31 = tpu.matmul %28, %30, %cst_32 {dimension_numbers = #tpu.dot_dimension_numbers<[1], [0], [0], [1], [0, 0, 1, 1], [], []>} : vector<32x128xf32>, vector<128x64xf32>, vector<32x64xf32> -> vector<32x64xf32>
    %c1_33 = arith.constant 1 : index
    %c0_34 = arith.constant 0 : index
    %c0_35 = arith.constant 0 : index
    %32 = vector.load %arg4[%c1_33, %c0_34, %c0_35] : memref<3x32x64xf32, #tpu.memory_space<vmem>>, vector<1x32x64xf32>
    %33 = vector.shape_cast %32 : vector<1x32x64xf32> to vector<32x64xf32>
    %cst_36 = arith.constant dense<0.000000e+00> : vector<32x128xf32>
    %34 = tpu.matmul %33, %25, %cst_36 {dimension_numbers = #tpu.dot_dimension_numbers<[1], [0], [0], [1], [0, 0, 1, 1], [], []>} : vector<32x64xf32>, vector<64x128xf32>, vector<32x128xf32> -> vector<32x128xf32>
    %c1_37 = arith.constant 1 : index
    %c0_38 = arith.constant 0 : index
    %c0_39 = arith.constant 0 : index
    %35 = vector.load %arg5[%c1_37, %c0_38, %c0_39] : memref<3x128x64xf32, #tpu.memory_space<vmem>>, vector<1x128x64xf32>
    %36 = vector.shape_cast %35 : vector<1x128x64xf32> to vector<128x64xf32>
    %cst_40 = arith.constant dense<0.000000e+00> : vector<32x64xf32>
    %37 = tpu.matmul %34, %36, %cst_40 {dimension_numbers = #tpu.dot_dimension_numbers<[1], [0], [0], [1], [0, 0, 1, 1], [], []>} : vector<32x128xf32>, vector<128x64xf32>, vector<32x64xf32> -> vector<32x64xf32>
    %38 = arith.addf %31, %37 : vector<32x64xf32>
    %c2_41 = arith.constant 2 : index
    %c0_42 = arith.constant 0 : index
    %c0_43 = arith.constant 0 : index
    %39 = vector.load %arg4[%c2_41, %c0_42, %c0_43] : memref<3x32x64xf32, #tpu.memory_space<vmem>>, vector<1x32x64xf32>
    %40 = vector.shape_cast %39 : vector<1x32x64xf32> to vector<32x64xf32>
    %cst_44 = arith.constant dense<0.000000e+00> : vector<32x128xf32>
    %41 = tpu.matmul %40, %25, %cst_44 {dimension_numbers = #tpu.dot_dimension_numbers<[1], [0], [0], [1], [0, 0, 1, 1], [], []>} : vector<32x64xf32>, vector<64x128xf32>, vector<32x128xf32> -> vector<32x128xf32>
    %c2_45 = arith.constant 2 : index
    %c0_46 = arith.constant 0 : index
    %c0_47 = arith.constant 0 : index
    %42 = vector.load %arg5[%c2_45, %c0_46, %c0_47] : memref<3x128x64xf32, #tpu.memory_space<vmem>>, vector<1x128x64xf32>
    %43 = vector.shape_cast %42 : vector<1x128x64xf32> to vector<128x64xf32>
    %cst_48 = arith.constant dense<0.000000e+00> : vector<32x64xf32>
    %44 = tpu.matmul %41, %43, %cst_48 {dimension_numbers = #tpu.dot_dimension_numbers<[1], [0], [0], [1], [0, 0, 1, 1], [], []>} : vector<32x128xf32>, vector<128x64xf32>, vector<32x64xf32> -> vector<32x64xf32>
    %45 = arith.addf %38, %44 : vector<32x64xf32>
    %c0_49 = arith.constant 0 : index
    %c0_50 = arith.constant 0 : index
    %46 = vector.load %arg6[%c0_49, %c0_50] : memref<1x64xf32, #tpu.memory_space<vmem>>, vector<1x64xf32>
    %47 = vector.broadcast %46 : vector<1x64xf32> to vector<32x64xf32>
    %48 = arith.addf %45, %47 : vector<32x64xf32>
    %cst_51 = arith.constant 0.000000e+00 : f32
    %49 = vector.broadcast %cst_51 : f32 to vector<32x64xf32>
    %50 = arith.maximumf %48, %49 : vector<32x64xf32>
    %c0_52 = arith.constant 0 : index
    %c0_53 = arith.constant 0 : index
    %51 = vector.load %arg7[%c0_52, %c0_53] : memref<64x16xf32, #tpu.memory_space<vmem>>, vector<64x16xf32>
    %cst_54 = arith.constant dense<0.000000e+00> : vector<32x16xf32>
    %52 = tpu.matmul %50, %51, %cst_54 {dimension_numbers = #tpu.dot_dimension_numbers<[1], [0], [0], [1], [0, 0, 1, 1], [], []>} : vector<32x64xf32>, vector<64x16xf32>, vector<32x16xf32> -> vector<32x16xf32>
    %c0_55 = arith.constant 0 : index
    %c0_56 = arith.constant 0 : index
    %53 = vector.load %arg8[%c0_55, %c0_56] : memref<1x16xf32, #tpu.memory_space<vmem>>, vector<1x16xf32>
    %54 = vector.broadcast %53 : vector<1x16xf32> to vector<32x16xf32>
    %55 = arith.addf %52, %54 : vector<32x16xf32>
    %56 = arith.negf %55 : vector<32x16xf32>
    %57 = math.exp %56 : vector<32x16xf32>
    %cst_57 = arith.constant 1.000000e+00 : f32
    %58 = vector.broadcast %cst_57 : f32 to vector<32x16xf32>
    %59 = arith.addf %58, %57 : vector<32x16xf32>
    %60 = arith.divf %58, %59 : vector<32x16xf32>
    %c0_58 = arith.constant 0 : index
    %c0_59 = arith.constant 0 : index
    %61 = vector.load %arg9[%c0_58, %c0_59] : memref<32x16xf32, #tpu.memory_space<vmem>>, vector<32x16xf32>
    tpu.vector_store %arg9[%c0_58, %c0_59], %60 {strides = array<i32>} : memref<32x16xf32, #tpu.memory_space<vmem>>, vector<32x16xf32>,
    return
  }
}

module attributes {stable_mosaic.version = 11 : i64} {
  func.func @_local_attn_kernel(%arg0: memref<32x16xf32, #tpu.memory_space<vmem>>, %arg1: memref<3x16x32xf32, #tpu.memory_space<vmem>>, %arg2: memref<3x16x64xf32, #tpu.memory_space<vmem>>, %arg3: memref<1x64xf32, #tpu.memory_space<vmem>>, %arg4: memref<3x8x16xf32, #tpu.memory_space<vmem>>, %arg5: memref<3x64x64xf32, #tpu.memory_space<vmem>>, %arg6: memref<1x64xf32, #tpu.memory_space<vmem>>, %arg7: memref<2x8xf32, #tpu.memory_space<vmem>>, %arg8: memref<64x16xf32, #tpu.memory_space<vmem>>, %arg9: memref<16x8xf32, #tpu.memory_space<vmem>>, %arg10: memref<16x8xf32, #tpu.memory_space<vmem>>, %arg11: memref<8x1xf32, #tpu.memory_space<vmem>>, %arg12: memref<16x2xf32, #tpu.memory_space<vmem>>, %arg13: memref<1x2xf32, #tpu.memory_space<vmem>>, %arg14: memref<1x2xf32, #tpu.memory_space<vmem>>) attributes {dimension_semantics = [], scalar_prefetch = 0 : i64, scratch_operands = 0 : i64, tpu.core_type = #tpu.core_type<tc>} {
    %c0 = arith.constant 0 : index
    %c0_0 = arith.constant 0 : index
    %0 = vector.load %arg0[%c0, %c0_0] : memref<32x16xf32, #tpu.memory_space<vmem>>, vector<32x16xf32>
    %c0_1 = arith.constant 0 : index
    %c0_2 = arith.constant 0 : index
    %c0_3 = arith.constant 0 : index
    %1 = vector.load %arg1[%c0_1, %c0_2, %c0_3] : memref<3x16x32xf32, #tpu.memory_space<vmem>>, vector<1x16x32xf32>
    %2 = vector.shape_cast %1 : vector<1x16x32xf32> to vector<16x32xf32>
    %cst = arith.constant dense<0.000000e+00> : vector<16x16xf32>
    %3 = tpu.matmul %2, %0, %cst {dimension_numbers = #tpu.dot_dimension_numbers<[1], [0], [0], [1], [0, 0, 1, 1], [], []>} : vector<16x32xf32>, vector<32x16xf32>, vector<16x16xf32> -> vector<16x16xf32>
    %c0_4 = arith.constant 0 : index
    %c0_5 = arith.constant 0 : index
    %c0_6 = arith.constant 0 : index
    %4 = vector.load %arg2[%c0_4, %c0_5, %c0_6] : memref<3x16x64xf32, #tpu.memory_space<vmem>>, vector<1x16x64xf32>
    %5 = vector.shape_cast %4 : vector<1x16x64xf32> to vector<16x64xf32>
    %cst_7 = arith.constant dense<0.000000e+00> : vector<16x64xf32>
    %6 = tpu.matmul %3, %5, %cst_7 {dimension_numbers = #tpu.dot_dimension_numbers<[1], [0], [0], [1], [0, 0, 1, 1], [], []>} : vector<16x16xf32>, vector<16x64xf32>, vector<16x64xf32> -> vector<16x64xf32>
    %c1 = arith.constant 1 : index
    %c0_8 = arith.constant 0 : index
    %c0_9 = arith.constant 0 : index
    %7 = vector.load %arg1[%c1, %c0_8, %c0_9] : memref<3x16x32xf32, #tpu.memory_space<vmem>>, vector<1x16x32xf32>
    %8 = vector.shape_cast %7 : vector<1x16x32xf32> to vector<16x32xf32>
    %cst_10 = arith.constant dense<0.000000e+00> : vector<16x16xf32>
    %9 = tpu.matmul %8, %0, %cst_10 {dimension_numbers = #tpu.dot_dimension_numbers<[1], [0], [0], [1], [0, 0, 1, 1], [], []>} : vector<16x32xf32>, vector<32x16xf32>, vector<16x16xf32> -> vector<16x16xf32>
    %c1_11 = arith.constant 1 : index
    %c0_12 = arith.constant 0 : index
    %c0_13 = arith.constant 0 : index
    %10 = vector.load %arg2[%c1_11, %c0_12, %c0_13] : memref<3x16x64xf32, #tpu.memory_space<vmem>>, vector<1x16x64xf32>
    %11 = vector.shape_cast %10 : vector<1x16x64xf32> to vector<16x64xf32>
    %cst_14 = arith.constant dense<0.000000e+00> : vector<16x64xf32>
    %12 = tpu.matmul %9, %11, %cst_14 {dimension_numbers = #tpu.dot_dimension_numbers<[1], [0], [0], [1], [0, 0, 1, 1], [], []>} : vector<16x16xf32>, vector<16x64xf32>, vector<16x64xf32> -> vector<16x64xf32>
    %13 = arith.addf %6, %12 : vector<16x64xf32>
    %c2 = arith.constant 2 : index
    %c0_15 = arith.constant 0 : index
    %c0_16 = arith.constant 0 : index
    %14 = vector.load %arg1[%c2, %c0_15, %c0_16] : memref<3x16x32xf32, #tpu.memory_space<vmem>>, vector<1x16x32xf32>
    %15 = vector.shape_cast %14 : vector<1x16x32xf32> to vector<16x32xf32>
    %cst_17 = arith.constant dense<0.000000e+00> : vector<16x16xf32>
    %16 = tpu.matmul %15, %0, %cst_17 {dimension_numbers = #tpu.dot_dimension_numbers<[1], [0], [0], [1], [0, 0, 1, 1], [], []>} : vector<16x32xf32>, vector<32x16xf32>, vector<16x16xf32> -> vector<16x16xf32>
    %c2_18 = arith.constant 2 : index
    %c0_19 = arith.constant 0 : index
    %c0_20 = arith.constant 0 : index
    %17 = vector.load %arg2[%c2_18, %c0_19, %c0_20] : memref<3x16x64xf32, #tpu.memory_space<vmem>>, vector<1x16x64xf32>
    %18 = vector.shape_cast %17 : vector<1x16x64xf32> to vector<16x64xf32>
    %cst_21 = arith.constant dense<0.000000e+00> : vector<16x64xf32>
    %19 = tpu.matmul %16, %18, %cst_21 {dimension_numbers = #tpu.dot_dimension_numbers<[1], [0], [0], [1], [0, 0, 1, 1], [], []>} : vector<16x16xf32>, vector<16x64xf32>, vector<16x64xf32> -> vector<16x64xf32>
    %20 = arith.addf %13, %19 : vector<16x64xf32>
    %c0_22 = arith.constant 0 : index
    %c0_23 = arith.constant 0 : index
    %21 = vector.load %arg3[%c0_22, %c0_23] : memref<1x64xf32, #tpu.memory_space<vmem>>, vector<1x64xf32>
    %22 = vector.broadcast %21 : vector<1x64xf32> to vector<16x64xf32>
    %23 = arith.addf %20, %22 : vector<16x64xf32>
    %cst_24 = arith.constant 0.000000e+00 : f32
    %24 = vector.broadcast %cst_24 : f32 to vector<16x64xf32>
    %25 = arith.maximumf %23, %24 : vector<16x64xf32>
    %c0_25 = arith.constant 0 : index
    %c0_26 = arith.constant 0 : index
    %c0_27 = arith.constant 0 : index
    %26 = vector.load %arg4[%c0_25, %c0_26, %c0_27] : memref<3x8x16xf32, #tpu.memory_space<vmem>>, vector<1x8x16xf32>
    %27 = vector.shape_cast %26 : vector<1x8x16xf32> to vector<8x16xf32>
    %cst_28 = arith.constant dense<0.000000e+00> : vector<8x64xf32>
    %28 = tpu.matmul %27, %25, %cst_28 {dimension_numbers = #tpu.dot_dimension_numbers<[1], [0], [0], [1], [0, 0, 1, 1], [], []>} : vector<8x16xf32>, vector<16x64xf32>, vector<8x64xf32> -> vector<8x64xf32>
    %c0_29 = arith.constant 0 : index
    %c0_30 = arith.constant 0 : index
    %c0_31 = arith.constant 0 : index
    %29 = vector.load %arg5[%c0_29, %c0_30, %c0_31] : memref<3x64x64xf32, #tpu.memory_space<vmem>>, vector<1x64x64xf32>
    %30 = vector.shape_cast %29 : vector<1x64x64xf32> to vector<64x64xf32>
    %cst_32 = arith.constant dense<0.000000e+00> : vector<8x64xf32>
    %31 = tpu.matmul %28, %30, %cst_32 {dimension_numbers = #tpu.dot_dimension_numbers<[1], [0], [0], [1], [0, 0, 1, 1], [], []>} : vector<8x64xf32>, vector<64x64xf32>, vector<8x64xf32> -> vector<8x64xf32>
    %c1_33 = arith.constant 1 : index
    %c0_34 = arith.constant 0 : index
    %c0_35 = arith.constant 0 : index
    %32 = vector.load %arg4[%c1_33, %c0_34, %c0_35] : memref<3x8x16xf32, #tpu.memory_space<vmem>>, vector<1x8x16xf32>
    %33 = vector.shape_cast %32 : vector<1x8x16xf32> to vector<8x16xf32>
    %cst_36 = arith.constant dense<0.000000e+00> : vector<8x64xf32>
    %34 = tpu.matmul %33, %25, %cst_36 {dimension_numbers = #tpu.dot_dimension_numbers<[1], [0], [0], [1], [0, 0, 1, 1], [], []>} : vector<8x16xf32>, vector<16x64xf32>, vector<8x64xf32> -> vector<8x64xf32>
    %c1_37 = arith.constant 1 : index
    %c0_38 = arith.constant 0 : index
    %c0_39 = arith.constant 0 : index
    %35 = vector.load %arg5[%c1_37, %c0_38, %c0_39] : memref<3x64x64xf32, #tpu.memory_space<vmem>>, vector<1x64x64xf32>
    %36 = vector.shape_cast %35 : vector<1x64x64xf32> to vector<64x64xf32>
    %cst_40 = arith.constant dense<0.000000e+00> : vector<8x64xf32>
    %37 = tpu.matmul %34, %36, %cst_40 {dimension_numbers = #tpu.dot_dimension_numbers<[1], [0], [0], [1], [0, 0, 1, 1], [], []>} : vector<8x64xf32>, vector<64x64xf32>, vector<8x64xf32> -> vector<8x64xf32>
    %38 = arith.addf %31, %37 : vector<8x64xf32>
    %c2_41 = arith.constant 2 : index
    %c0_42 = arith.constant 0 : index
    %c0_43 = arith.constant 0 : index
    %39 = vector.load %arg4[%c2_41, %c0_42, %c0_43] : memref<3x8x16xf32, #tpu.memory_space<vmem>>, vector<1x8x16xf32>
    %40 = vector.shape_cast %39 : vector<1x8x16xf32> to vector<8x16xf32>
    %cst_44 = arith.constant dense<0.000000e+00> : vector<8x64xf32>
    %41 = tpu.matmul %40, %25, %cst_44 {dimension_numbers = #tpu.dot_dimension_numbers<[1], [0], [0], [1], [0, 0, 1, 1], [], []>} : vector<8x16xf32>, vector<16x64xf32>, vector<8x64xf32> -> vector<8x64xf32>
    %c2_45 = arith.constant 2 : index
    %c0_46 = arith.constant 0 : index
    %c0_47 = arith.constant 0 : index
    %42 = vector.load %arg5[%c2_45, %c0_46, %c0_47] : memref<3x64x64xf32, #tpu.memory_space<vmem>>, vector<1x64x64xf32>
    %43 = vector.shape_cast %42 : vector<1x64x64xf32> to vector<64x64xf32>
    %cst_48 = arith.constant dense<0.000000e+00> : vector<8x64xf32>
    %44 = tpu.matmul %41, %43, %cst_48 {dimension_numbers = #tpu.dot_dimension_numbers<[1], [0], [0], [1], [0, 0, 1, 1], [], []>} : vector<8x64xf32>, vector<64x64xf32>, vector<8x64xf32> -> vector<8x64xf32>
    %45 = arith.addf %38, %44 : vector<8x64xf32>
    %c0_49 = arith.constant 0 : index
    %c0_50 = arith.constant 0 : index
    %46 = vector.load %arg6[%c0_49, %c0_50] : memref<1x64xf32, #tpu.memory_space<vmem>>, vector<1x64xf32>
    %47 = vector.broadcast %46 : vector<1x64xf32> to vector<8x64xf32>
    %48 = arith.addf %45, %47 : vector<8x64xf32>
    %cst_51 = arith.constant 0.000000e+00 : f32
    %49 = vector.broadcast %cst_51 : f32 to vector<8x64xf32>
    %50 = arith.maximumf %48, %49 : vector<8x64xf32>
    %c0_52 = arith.constant 0 : index
    %c0_53 = arith.constant 0 : index
    %51 = vector.load %arg7[%c0_52, %c0_53] : memref<2x8xf32, #tpu.memory_space<vmem>>, vector<2x8xf32>
    %cst_54 = arith.constant dense<0.000000e+00> : vector<2x64xf32>
    %52 = tpu.matmul %51, %50, %cst_54 {dimension_numbers = #tpu.dot_dimension_numbers<[1], [0], [0], [1], [0, 0, 1, 1], [], []>} : vector<2x8xf32>, vector<8x64xf32>, vector<2x64xf32> -> vector<2x64xf32>
    %c0_55 = arith.constant 0 : index
    %c0_56 = arith.constant 0 : index
    %53 = vector.load %arg8[%c0_55, %c0_56] : memref<64x16xf32, #tpu.memory_space<vmem>>, vector<64x16xf32>
    %cst_57 = arith.constant dense<0.000000e+00> : vector<2x16xf32>
    %54 = tpu.matmul %52, %53, %cst_57 {dimension_numbers = #tpu.dot_dimension_numbers<[1], [0], [0], [1], [0, 0, 1, 1], [], []>} : vector<2x64xf32>, vector<64x16xf32>, vector<2x16xf32> -> vector<2x16xf32>
    %c0_58 = arith.constant 0 : index
    %c0_59 = arith.constant 0 : index
    %55 = vector.load %arg9[%c0_58, %c0_59] : memref<16x8xf32, #tpu.memory_space<vmem>>, vector<16x8xf32>
    %cst_60 = arith.constant dense<0.000000e+00> : vector<2x8xf32>
    %56 = tpu.matmul %54, %55, %cst_60 {dimension_numbers = #tpu.dot_dimension_numbers<[1], [0], [0], [1], [0, 0, 1, 1], [], []>} : vector<2x16xf32>, vector<16x8xf32>, vector<2x8xf32> -> vector<2x8xf32>
    %57 = math.tanh %56 : vector<2x8xf32>
    %c0_61 = arith.constant 0 : index
    %c0_62 = arith.constant 0 : index
    %58 = vector.load %arg10[%c0_61, %c0_62] : memref<16x8xf32, #tpu.memory_space<vmem>>, vector<16x8xf32>
    %cst_63 = arith.constant dense<0.000000e+00> : vector<2x8xf32>
    %59 = tpu.matmul %54, %58, %cst_63 {dimension_numbers = #tpu.dot_dimension_numbers<[1], [0], [0], [1], [0, 0, 1, 1], [], []>} : vector<2x16xf32>, vector<16x8xf32>, vector<2x8xf32> -> vector<2x8xf32>
    %60 = arith.negf %59 : vector<2x8xf32>
    %61 = math.exp %60 : vector<2x8xf32>
    %cst_64 = arith.constant 1.000000e+00 : f32
    %62 = vector.broadcast %cst_64 : f32 to vector<2x8xf32>
    %63 = arith.addf %62, %61 : vector<2x8xf32>
    %64 = arith.divf %62, %63 : vector<2x8xf32>
    %65 = arith.mulf %57, %64 : vector<2x8xf32>
    %c0_65 = arith.constant 0 : index
    %c0_66 = arith.constant 0 : index
    %66 = vector.load %arg11[%c0_65, %c0_66] : memref<8x1xf32, #tpu.memory_space<vmem>>, vector<8x1xf32>
    %cst_67 = arith.constant dense<0.000000e+00> : vector<2x1xf32>
    %67 = tpu.matmul %65, %66, %cst_67 {dimension_numbers = #tpu.dot_dimension_numbers<[1], [0], [0], [1], [0, 0, 1, 1], [], []>} : vector<2x8xf32>, vector<8x1xf32>, vector<2x1xf32> -> vector<2x1xf32>
    %cst_68 = arith.constant dense<0xFF800000> : vector<1xf32>
    %68 = vector.multi_reduction <maximumf>, %67, %cst_68 [0] : vector<2x1xf32> to vector<1xf32>
    %69 = vector.shape_cast %68 : vector<1xf32> to vector<1x1xf32>
    %70 = vector.broadcast %69 : vector<1x1xf32> to vector<2x1xf32>
    %71 = arith.subf %67, %70 : vector<2x1xf32>
    %72 = math.exp %71 : vector<2x1xf32>
    %cst_69 = arith.constant dense<0.000000e+00> : vector<1xf32>
    %73 = vector.multi_reduction <add>, %72, %cst_69 [0] : vector<2x1xf32> to vector<1xf32>
    %74 = vector.shape_cast %73 : vector<1xf32> to vector<1x1xf32>
    %75 = vector.broadcast %74 : vector<1x1xf32> to vector<2x1xf32>
    %76 = arith.divf %72, %75 : vector<2x1xf32>
    %77 = vector.broadcast %76 : vector<2x1xf32> to vector<2x16xf32>
    %78 = arith.mulf %77, %54 : vector<2x16xf32>
    %cst_70 = arith.constant dense<0.000000e+00> : vector<16xf32>
    %79 = vector.multi_reduction <add>, %78, %cst_70 [0] : vector<2x16xf32> to vector<16xf32>
    %80 = vector.shape_cast %79 : vector<16xf32> to vector<1x16xf32>
    %c0_71 = arith.constant 0 : index
    %c0_72 = arith.constant 0 : index
    %81 = vector.load %arg12[%c0_71, %c0_72] : memref<16x2xf32, #tpu.memory_space<vmem>>, vector<16x2xf32>
    %cst_73 = arith.constant dense<0.000000e+00> : vector<1x2xf32>
    %82 = tpu.matmul %80, %81, %cst_73 {dimension_numbers = #tpu.dot_dimension_numbers<[1], [0], [0], [1], [0, 0, 1, 1], [], []>} : vector<1x16xf32>, vector<16x2xf32>, vector<1x2xf32> -> vector<1x2xf32>
    %c0_74 = arith.constant 0 : index
    %c0_75 = arith.constant 0 : index
    %83 = vector.load %arg13[%c0_74, %c0_75] : memref<1x2xf32, #tpu.memory_space<vmem>>, vector<1x2xf32>
    %84 = arith.addf %82, %83 : vector<1x2xf32>
    %85 = arith.negf %84 : vector<1x2xf32>
    %86 = math.exp %85 : vector<1x2xf32>
    %cst_76 = arith.constant 1.000000e+00 : f32
    %87 = vector.broadcast %cst_76 : f32 to vector<1x2xf32>
    %88 = arith.addf %87, %86 : vector<1x2xf32>
    %89 = arith.divf %87, %88 : vector<1x2xf32>
    %c0_77 = arith.constant 0 : index
    %c0_78 = arith.constant 0 : index
    %90 = vector.load %arg14[%c0_77, %c0_78] : memref<1x2xf32, #tpu.memory_space<vmem>>, vector<1x2xf32>
    tpu.vector_store %arg14[%c0_77, %c0_78], %89 {strides = array<i32>} : memref<1x2xf32, #tpu.memory_space<vmem>>, vector<1x2xf32>,
    return
  }
}

</mosaic_0001>

<llo_original>
// kernel: tile.28
$region0: #{tile.28}
  #allocation0 [shape = 's32[1]{0}', space=sflag, size = 0x4, scoped, tag = 'scoped memory for tile.28']
  %s0 = inlined_call_operand.vmem [shape: f32[8], index: 0, kind: input, shape index: {}]
  %s1 = inlined_call_operand.vmem [shape: f32[16,8], index: 1, kind: output, shape index: {}]
  // Predicated region
  $region2: #{tile.28} parent=0 // pred_check
    _
  $region3: #{tile.28} parent=0 // pred_check_branch
    %3 = sbr.rel (0) target = $region5
  $region4: #{tile.28} parent=0 // pred_region
    _
  $region5: #{tile.28} parent=0 // pred_fallthru
    _
  %v4 = vld [vmem:[%s0] ss:$0 sm:$0xff]
  %5 = vst [vmem:[%s1] sm:$0xff] %v4
  %s6 = scalar_lea.vmem %s1, 8
  %7 = vst [vmem:[%s6] sm:$0xff] %v4

// kernel: tile.29
$region0: #{tile.29}
  %s0 = inlined_call_operand.vmem [shape: f32[16,8], index: 0, kind: input, shape index: {}]
  %s1 = inlined_call_operand.vmem [shape: f32[1,128], index: 1, kind: output, shape index: {}]
  $region1: #{tile.29} parent=0
    #allocation0 [shape = 'u8[4096]{0}', space=vmem, size = 0x1000, scoped, tag = 'scoped mem for output reshape']
    %v2 = vld [vmem:[%s0] sm:$0x1]
    %vm3 = vcmask 64512
    %4 = vst.msk [vmem:[#allocation0] sm:$0x1] %vm3, %v2
    %s5 = scalar_lea.vmem %s0, 15
    %v6 = vld [vmem:[%s5] sm:$0x1]
    %7 = vrot.lane.b32.xlu0 %v6, 120
    %v8 = vpop.permute.xlu0 %7
    %vm9 = vcmask 1048512
    %10 = vst.msk [vmem:[#allocation0] sm:$0x1] %vm9, %v8
    %s11 = scalar_lea.vmem %s0, 14
    %v12 = vld [vmem:[%s11] sm:$0x1]
    %13 = vrot.lane.b32.xlu0 %v12, 112
    %v14 = vpop.permute.xlu0 %13
    %vm15 = vcmask 982912
    %16 = vst.msk [vmem:[#allocation0] sm:$0x1] %vm15, %v14
    %s17 = scalar_lea.vmem %s0, 13
    %v18 = vld [vmem:[%s17] sm:$0x1]
    %19 = vrot.lane.b32.xlu0 %v18, 104
    %v20 = vpop.permute.xlu0 %19
    %vm21 = vcmask 917312
    %22 = vst.msk [vmem:[#allocation0] sm:$0x1] %vm21, %v20
    %s23 = scalar_lea.vmem %s0, 12
    %v24 = vld [vmem:[%s23] sm:$0x1]
    %25 = vrot.lane.b32.xlu0 %v24, 96
    %v26 = vpop.permute.xlu0 %25
    %vm27 = vcmask 851712
    %28 = vst.msk [vmem:[#allocation0] sm:$0x1] %vm27, %v26
    %s29 = scalar_lea.vmem %s0, 11
    %v30 = vld [vmem:[%s29] sm:$0x1]
    %31 = vrot.lane.b32.xlu0 %v30, 88
    %v32 = vpop.permute.xlu0 %31
    %vm33 = vcmask 786112
    %34 = vst.msk [vmem:[#allocation0] sm:$0x1] %vm33, %v32
    %s35 = scalar_lea.vmem %s0, 10
    %v36 = vld [vmem:[%s35] sm:$0x1]
    %37 = vrot.lane.b32.xlu0 %v36, 80
    %v38 = vpop.permute.xlu0 %37
    %vm39 = vcmask 720512
    %40 = vst.msk [vmem:[#allocation0] sm:$0x1] %vm39, %v38
    %s41 = scalar_lea.vmem %s0, 9
    %v42 = vld [vmem:[%s41] sm:$0x1]
    %43 = vrot.lane.b32.xlu0 %v42, 72
    %v44 = vpop.permute.xlu0 %43
    %vm45 = vcmask 654912
    %46 = vst.msk [vmem:[#allocation0] sm:$0x1] %vm45, %v44
    %s47 = scalar_lea.vmem %s0, 8
    %v48 = vld [vmem:[%s47] sm:$0x1]
    %49 = vrot.lane.b32.xlu0 %v48, 64
    %v50 = vpop.permute.xlu0 %49
    %vm51 = vcmask 589312
    %52 = vst.msk [vmem:[#allocation0] sm:$0x1] %vm51, %v50
    %s53 = scalar_lea.vmem %s0, 7
    %v54 = vld [vmem:[%s53] sm:$0x1]
    %55 = vrot.lane.b32.xlu0 %v54, 56
    %v56 = vpop.permute.xlu0 %55
    %vm57 = vcmask 523712
    %58 = vst.msk [vmem:[#allocation0] sm:$0x1] %vm57, %v56
    %s59 = scalar_lea.vmem %s0, 6
    %v60 = vld [vmem:[%s59] sm:$0x1]
    %61 = vrot.lane.b32.xlu0 %v60, 48
    %v62 = vpop.permute.xlu0 %61
    %vm63 = vcmask 458112
    %64 = vst.msk [vmem:[#allocation0] sm:$0x1] %vm63, %v62
    %s65 = scalar_lea.vmem %s0, 5
    %v66 = vld [vmem:[%s65] sm:$0x1]
    %67 = vrot.lane.b32.xlu0 %v66, 40
    %v68 = vpop.permute.xlu0 %67
    %vm69 = vcmask 392512
    %70 = vst.msk [vmem:[#allocation0] sm:$0x1] %vm69, %v68
    %s71 = scalar_lea.vmem %s0, 4
    %v72 = vld [vmem:[%s71] sm:$0x1]
    %73 = vrot.lane.b32.xlu0 %v72, 32
    %v74 = vpop.permute.xlu0 %73
    %vm75 = vcmask 326912
    %76 = vst.msk [vmem:[#allocation0] sm:$0x1] %vm75, %v74
    %s77 = scalar_lea.vmem %s0, 3
    %v78 = vld [vmem:[%s77] sm:$0x1]
    %79 = vrot.lane.b32.xlu0 %v78, 24
    %v80 = vpop.permute.xlu0 %79
    %vm81 = vcmask 261312
    %82 = vst.msk [vmem:[#allocation0] sm:$0x1] %vm81, %v80
    %s83 = scalar_lea.vmem %s0, 2
    %v84 = vld [vmem:[%s83] sm:$0x1]
    %85 = vrot.lane.b32.xlu0 %v84, 16
    %v86 = vpop.permute.xlu0 %85
    %vm87 = vcmask 195712
    %88 = vst.msk [vmem:[#allocation0] sm:$0x1] %vm87, %v86
    %s89 = scalar_lea.vmem %s0, 1
    %v90 = vld [vmem:[%s89] sm:$0x1]
    %91 = vrot.lane.b32.xlu0 %v90, 8
    %v92 = vpop.permute.xlu0 %91
    %vm93 = vcmask 130112
    %94 = vst.msk [vmem:[#allocation0] sm:$0x1] %vm93, %v92
    %s96 = sshll.u32 1, 1
    %s97 = ssub.s32 %s96, 1
    %v99 = vld [vmem:[#allocation0] sm:%s97]
    %s100 = sshll.u32 1, 1
    %s101 = ssub.s32 %s100, 1
    %102 = vst [vmem:[%s1] sm:%s101] %v99

// kernel: tile.33
$region0: #{tile.33}
  #allocation0 [shape = 's32[1]{0}', space=sflag, size = 0x4, scoped, tag = 'scoped memory for tile.33']
  %s0 = inlined_call_operand.vmem [shape: f32[8], index: 0, kind: input, shape index: {}]
  %s1 = inlined_call_operand.vmem [shape: f32[8,8], index: 1, kind: output, shape index: {}]
  // Predicated region
  $region2: #{tile.33} parent=0 // pred_check
    _
  $region3: #{tile.33} parent=0 // pred_check_branch
    %3 = sbr.rel (0) target = $region5
  $region4: #{tile.33} parent=0 // pred_region
    _
  $region5: #{tile.33} parent=0 // pred_fallthru
    _
  %v4 = vld [vmem:[%s0] ss:$0 sm:$0xff]
  %5 = vst [vmem:[%s1] sm:$0xff] %v4

// kernel: tile.34
$region0: #{tile.34}
  %s0 = inlined_call_operand.vmem [shape: f32[8,8], index: 0, kind: input, shape index: {}]
  %s1 = inlined_call_operand.vmem [shape: f32[1,64], index: 1, kind: output, shape index: {}]
  $region1: #{tile.34} parent=0
    #allocation0 [shape = 'u8[4096]{0}', space=vmem, size = 0x1000, scoped, tag = 'scoped mem for output reshape']
    %v2 = vld [vmem:[%s0] sm:$0x1]
    %vm3 = vcmask 64512
    %4 = vst.msk [vmem:[#allocation0] sm:$0x1] %vm3, %v2
    %s5 = scalar_lea.vmem %s0, 7
    %v6 = vld [vmem:[%s5] sm:$0x1]
    %7 = vrot.lane.b32.xlu0 %v6, 56
    %v8 = vpop.permute.xlu0 %7
    %vm9 = vcmask 523712
    %10 = vst.msk [vmem:[#allocation0] sm:$0x1] %vm9, %v8
    %s11 = scalar_lea.vmem %s0, 6
    %v12 = vld [vmem:[%s11] sm:$0x1]
    %13 = vrot.lane.b32.xlu0 %v12, 48
    %v14 = vpop.permute.xlu0 %13
    %vm15 = vcmask 458112
    %16 = vst.msk [vmem:[#allocation0] sm:$0x1] %vm15, %v14
    %s17 = scalar_lea.vmem %s0, 5
    %v18 = vld [vmem:[%s17] sm:$0x1]
    %19 = vrot.lane.b32.xlu0 %v18, 40
    %v20 = vpop.permute.xlu0 %19
    %vm21 = vcmask 392512
    %22 = vst.msk [vmem:[#allocation0] sm:$0x1] %vm21, %v20
    %s23 = scalar_lea.vmem %s0, 4
    %v24 = vld [vmem:[%s23] sm:$0x1]
    %25 = vrot.lane.b32.xlu0 %v24, 32
    %v26 = vpop.permute.xlu0 %25
    %vm27 = vcmask 326912
    %28 = vst.msk [vmem:[#allocation0] sm:$0x1] %vm27, %v26
    %s29 = scalar_lea.vmem %s0, 3
    %v30 = vld [vmem:[%s29] sm:$0x1]
    %31 = vrot.lane.b32.xlu0 %v30, 24
    %v32 = vpop.permute.xlu0 %31
    %vm33 = vcmask 261312
    %34 = vst.msk [vmem:[#allocation0] sm:$0x1] %vm33, %v32
    %s35 = scalar_lea.vmem %s0, 2
    %v36 = vld [vmem:[%s35] sm:$0x1]
    %37 = vrot.lane.b32.xlu0 %v36, 16
    %v38 = vpop.permute.xlu0 %37
    %vm39 = vcmask 195712
    %40 = vst.msk [vmem:[#allocation0] sm:$0x1] %vm39, %v38
    %s41 = scalar_lea.vmem %s0, 1
    %v42 = vld [vmem:[%s41] sm:$0x1]
    %43 = vrot.lane.b32.xlu0 %v42, 8
    %v44 = vpop.permute.xlu0 %43
    %vm45 = vcmask 130112
    %46 = vst.msk [vmem:[#allocation0] sm:$0x1] %vm45, %v44
    %s48 = sshll.u32 1, 1
    %s49 = ssub.s32 %s48, 1
    %v51 = vld [vmem:[#allocation0] sm:%s49]
    %s52 = sshll.u32 1, 1
    %s53 = ssub.s32 %s52, 1
    %54 = vst [vmem:[%s1] sm:%s53] %v51

// kernel: tile.38
$region0: #{tile.38}
  #allocation0 [shape = 's32[1]{0}', space=sflag, size = 0x4, scoped, tag = 'scoped memory for tile.38']
  %s0 = inlined_call_operand.vmem [shape: f32[2], index: 0, kind: input, shape index: {}]
  %s1 = inlined_call_operand.vmem [shape: f32[8,2], index: 1, kind: output, shape index: {}]
  // Predicated region
  $region2: #{tile.38} parent=0 // pred_check
    _
  $region3: #{tile.38} parent=0 // pred_check_branch
    %3 = sbr.rel (0) target = $region5
  $region4: #{tile.38} parent=0 // pred_region
    _
  $region5: #{tile.38} parent=0 // pred_fallthru
    _
  %v4 = vld [vmem:[%s0] ss:$0 sm:$0xff]
  %5 = vst [vmem:[%s1] sm:$0xff] %v4

// kernel: tile.39
$region0: #{tile.39}
  %s0 = inlined_call_operand.vmem [shape: f32[8,2], index: 0, kind: input, shape index: {}]
  %s1 = inlined_call_operand.vmem [shape: f32[1,16], index: 1, kind: output, shape index: {}]
  $region1: #{tile.39} parent=0
    #allocation0 [shape = 'u8[4096]{0}', space=vmem, size = 0x1000, scoped, tag = 'scoped mem for output reshape']
    %v2 = vld [vmem:[%s0] sm:$0x1]
    %vm3 = vcmask 15360
    %4 = vst.msk [vmem:[#allocation0] sm:$0x1] %vm3, %v2
    %s5 = scalar_lea.vmem %s0, 7
    %v6 = vld [vmem:[%s5] sm:$0x1]
    %7 = vrot.lane.b32.xlu0 %v6, 14
    %v8 = vpop.permute.xlu0 %7
    %vm9 = vcmask 130160
    %10 = vst.msk [vmem:[#allocation0] sm:$0x1] %vm9, %v8
    %s11 = scalar_lea.vmem %s0, 6
    %v12 = vld [vmem:[%s11] sm:$0x1]
    %13 = vrot.lane.b32.xlu0 %v12, 12
    %v14 = vpop.permute.xlu0 %13
    %vm15 = vcmask 113760
    %16 = vst.msk [vmem:[#allocation0] sm:$0x1] %vm15, %v14
    %s17 = scalar_lea.vmem %s0, 5
    %v18 = vld [vmem:[%s17] sm:$0x1]
    %19 = vrot.lane.b32.xlu0 %v18, 10
    %v20 = vpop.permute.xlu0 %19
    %vm21 = vcmask 97360
    %22 = vst.msk [vmem:[#allocation0] sm:$0x1] %vm21, %v20
    %s23 = scalar_lea.vmem %s0, 4
    %v24 = vld [vmem:[%s23] sm:$0x1]
    %25 = vrot.lane.b32.xlu0 %v24, 8
    %v26 = vpop.permute.xlu0 %25
    %vm27 = vcmask 80960
    %28 = vst.msk [vmem:[#allocation0] sm:$0x1] %vm27, %v26
    %s29 = scalar_lea.vmem %s0, 3
    %v30 = vld [vmem:[%s29] sm:$0x1]
    %31 = vrot.lane.b32.xlu0 %v30, 6
    %v32 = vpop.permute.xlu0 %31
    %vm33 = vcmask 64560
    %34 = vst.msk [vmem:[#allocation0] sm:$0x1] %vm33, %v32
    %s35 = scalar_lea.vmem %s0, 2
    %v36 = vld [vmem:[%s35] sm:$0x1]
    %37 = vrot.lane.b32.xlu0 %v36, 4
    %v38 = vpop.permute.xlu0 %37
    %vm39 = vcmask 48160
    %40 = vst.msk [vmem:[#allocation0] sm:$0x1] %vm39, %v38
    %s41 = scalar_lea.vmem %s0, 1
    %v42 = vld [vmem:[%s41] sm:$0x1]
    %43 = vrot.lane.b32.xlu0 %v42, 2
    %v44 = vpop.permute.xlu0 %43
    %vm45 = vcmask 31760
    %46 = vst.msk [vmem:[#allocation0] sm:$0x1] %vm45, %v44
    %s48 = sshll.u32 1, 1
    %s49 = ssub.s32 %s48, 1
    %v51 = vld [vmem:[#allocation0] sm:%s49]
    %s52 = sshll.u32 1, 1
    %s53 = ssub.s32 %s52, 1
    %54 = vst [vmem:[%s1] sm:%s53] %v51

// kernel: _lambda_.2
$region0: #{_lambda_.2}
  #allocation0 [shape = 'u32[]', space=smem, size = 0x4, offset = 0x4, fixed_abs, tag = 'smem constant byte address 0x4 - core index']
  #allocation1 [shape = 'u32[144,128]{1,0:T(1,128)}', space=vmem, size = 0x12000, scoped, tag = 'internal scratch']
  %s0 = inlined_call_operand.vmem [shape: f32[128,32], index: 0, kind: input, shape index: {}]
  %s1 = inlined_call_operand.vmem [shape: f32[3,64,128], index: 1, kind: input, shape index: {}]
  %s2 = inlined_call_operand.vmem [shape: f32[3,32,128], index: 2, kind: input, shape index: {}]
  %s3 = inlined_call_operand.vmem [shape: f32[1,128], index: 3, kind: input, shape index: {}]
  %s4 = inlined_call_operand.vmem [shape: f32[3,32,64], index: 4, kind: input, shape index: {}]
  %s5 = inlined_call_operand.vmem [shape: f32[3,128,64], index: 5, kind: input, shape index: {}]
  %s6 = inlined_call_operand.vmem [shape: f32[1,64], index: 6, kind: input, shape index: {}]
  %s7 = inlined_call_operand.vmem [shape: f32[64,16], index: 7, kind: input, shape index: {}]
  %s8 = inlined_call_operand.vmem [shape: f32[1,16], index: 8, kind: input, shape index: {}]
  %s9 = inlined_call_operand.vmem [shape: f32[32,16], index: 9, kind: output, shape index: {}]
  %s10 = sld [smem:[#allocation0]]
  $region46: #{_lambda_.2} parent=0
    _
  %s12 = ssub.s32 1, %s10
  %s13 = scalar_select 0, %s12, %s10
  // Predicated region
  $region2: #{_lambda_.2} parent=0 // pred_check
    _
  $region3: #{_lambda_.2} parent=0 // pred_check_branch
    %15 = sbr.rel (0) target = $region5
  $region4: #{_lambda_.2} parent=0 // pred_region
    _
  $region5: #{_lambda_.2} parent=0 // pred_fallthru
    _
  // Predicated region
  $region6: #{_lambda_.2} parent=0 // pred_check
    _
  $region7: #{_lambda_.2} parent=0 // pred_check_branch
    %17 = sbr.rel (0) target = $region9
  $region8: #{_lambda_.2} parent=0 // pred_region
    _
  $region9: #{_lambda_.2} parent=0 // pred_fallthru
    _
  // Predicated region
  $region10: #{_lambda_.2} parent=0 // pred_check
    _
  $region11: #{_lambda_.2} parent=0 // pred_check_branch
    %19 = sbr.rel (0) target = $region13
  $region12: #{_lambda_.2} parent=0 // pred_region
    _
  $region13: #{_lambda_.2} parent=0 // pred_fallthru
    _
  // Predicated region
  $region14: #{_lambda_.2} parent=0 // pred_check
    _
  $region15: #{_lambda_.2} parent=0 // pred_check_branch
    %21 = sbr.rel (0) target = $region17
  $region16: #{_lambda_.2} parent=0 // pred_region
    _
  $region17: #{_lambda_.2} parent=0 // pred_fallthru
    _
  // Predicated region
  $region18: #{_lambda_.2} parent=0 // pred_check
    _
  $region19: #{_lambda_.2} parent=0 // pred_check_branch
    %23 = sbr.rel (0) target = $region21
  $region20: #{_lambda_.2} parent=0 // pred_region
    _
  $region21: #{_lambda_.2} parent=0 // pred_fallthru
    _
  // Predicated region
  $region22: #{_lambda_.2} parent=0 // pred_check
    _
  $region23: #{_lambda_.2} parent=0 // pred_check_branch
    %25 = sbr.rel (0) target = $region25
  $region24: #{_lambda_.2} parent=0 // pred_region
    _
  $region25: #{_lambda_.2} parent=0 // pred_fallthru
    _
  // Predicated region
  $region26: #{_lambda_.2} parent=0 // pred_check
    _
  $region27: #{_lambda_.2} parent=0 // pred_check_branch
    %27 = sbr.rel (0) target = $region29
  $region28: #{_lambda_.2} parent=0 // pred_region
    _
  $region29: #{_lambda_.2} parent=0 // pred_fallthru
    _
  // Predicated region
  $region30: #{_lambda_.2} parent=0 // pred_check
    _
  $region31: #{_lambda_.2} parent=0 // pred_check_branch
    %29 = sbr.rel (0) target = $region33
  $region32: #{_lambda_.2} parent=0 // pred_region
    _
  $region33: #{_lambda_.2} parent=0 // pred_fallthru
    _
  // Predicated region
  $region34: #{_lambda_.2} parent=0 // pred_check
    _
  $region35: #{_lambda_.2} parent=0 // pred_check_branch
    %31 = sbr.rel (0) target = $region37
  $region36: #{_lambda_.2} parent=0 // pred_region
    _
  $region37: #{_lambda_.2} parent=0 // pred_fallthru
    _
  %v32 = vld [vmem:[%s0] sm:$0xff]
  %v33 = vld [vmem:[%s0 + $0x8] sm:$0xff]
  %v34 = vld [vmem:[%s0 + $0x10] sm:$0xff]
  %v35 = vld [vmem:[%s0 + $0x18] sm:$0xff]
  %v36 = vld [vmem:[%s0 + $0x20] sm:$0xff]
  %v37 = vld [vmem:[%s0 + $0x28] sm:$0xff]
  %v38 = vld [vmem:[%s0 + $0x30] sm:$0xff]
  %v39 = vld [vmem:[%s0 + $0x38] sm:$0xff]
  %v40 = vld [vmem:[%s0 + $0x40] sm:$0xff]
  %v41 = vld [vmem:[%s0 + $0x48] sm:$0xff]
  %v42 = vld [vmem:[%s0 + $0x50] sm:$0xff]
  %v43 = vld [vmem:[%s0 + $0x58] sm:$0xff]
  %v44 = vld [vmem:[%s0 + $0x60] sm:$0xff]
  %v45 = vld [vmem:[%s0 + $0x68] sm:$0xff]
  %v46 = vld [vmem:[%s0 + $0x70] sm:$0xff]
  %v47 = vld [vmem:[%s0 + $0x78] sm:$0xff]
  %v48 = vld [vmem:[%s1] sm:$0xff]
  %v49 = vld [vmem:[%s1 + $0x8] sm:$0xff]
  %v50 = vld [vmem:[%s1 + $0x10] sm:$0xff]
  %v51 = vld [vmem:[%s1 + $0x18] sm:$0xff]
  %v52 = vld [vmem:[%s1 + $0x20] sm:$0xff]
  %v53 = vld [vmem:[%s1 + $0x28] sm:$0xff]
  %v54 = vld [vmem:[%s1 + $0x30] sm:$0xff]
  %v55 = vld [vmem:[%s1 + $0x38] sm:$0xff]
  %56 = vmatprep.subr.mxu0 0.0
  %57 = vmatpush1.msra.mxu0 %v47
  %58 = vmatprep.subr.mxu0 0.0
  %59 = vmatpush1.msra.mxu0 %v46
  %60 = vmatprep.subr.mxu0 0.0
  %61 = vmatpush1.msra.mxu0 %v45
  %62 = vmatprep.subr.mxu0 0.0
  %63 = vmatpush1.msra.mxu0 %v44
  %64 = vmatprep.subr.mxu0 0.0
  %65 = vmatpush1.msra.mxu0 %v43
  %66 = vmatprep.subr.mxu0 0.0
  %67 = vmatpush1.msra.mxu0 %v42
  %68 = vmatprep.subr.mxu0 0.0
  %69 = vmatpush1.msra.mxu0 %v41
  %70 = vmatprep.subr.mxu0 0.0
  %71 = vmatpush1.msra.mxu0 %v40
  %72 = vmatprep.subr.mxu0 0.0
  %73 = vmatpush1.msra.mxu0 %v39
  %74 = vmatprep.subr.mxu0 0.0
  %75 = vmatpush1.msra.mxu0 %v38
  %76 = vmatprep.subr.mxu0 0.0
  %77 = vmatpush1.msra.mxu0 %v37
  %78 = vmatprep.subr.mxu0 0.0
  %79 = vmatpush1.msra.mxu0 %v36
  %80 = vmatprep.subr.mxu0 0.0
  %81 = vmatpush1.msra.mxu0 %v35
  %82 = vmatprep.subr.mxu0 0.0
  %83 = vmatpush1.msra.mxu0 %v34
  %84 = vmatprep.subr.mxu0 0.0
  %85 = vmatpush1.msra.mxu0 %v33
  %86 = vmatprep.subr.mxu0 0.0
  %87 = vmatpush1.msra.mxu0 %v32
  %88 = vmatprep.subr.mxu0 0.0
  %89 = vmatpush2.msra.mxu0 0.0
  %90 = vmatprep.subr.mxu0 0.0
  %91 = vmatpush2.msra.mxu0 0.0
  %92 = vmatprep.subr.mxu0 0.0
  %93 = vmatpush2.msra.mxu0 0.0
  %94 = vmatprep.subr.mxu0 0.0
  %95 = vmatpush2.msra.mxu0 0.0
  %96 = vmatprep.subr.mxu0 0.0
  %97 = vmatpush2.msra.mxu0 0.0
  %98 = vmatprep.subr.mxu0 0.0
  %99 = vmatpush2.msra.mxu0 0.0
  %100 = vmatprep.subr.mxu0 0.0
  %101 = vmatpush2.msra.mxu0 0.0
  %102 = vmatprep.subr.mxu0 0.0
  %103 = vmatpush2.msra.mxu0 0.0
  %104 = vmatprep.subr.mxu0 0.0
  %105 = vmatpush2.msra.mxu0 0.0
  %106 = vmatprep.subr.mxu0 0.0
  %107 = vmatpush2.msra.mxu0 0.0
  %108 = vmatprep.subr.mxu0 0.0
  %109 = vmatpush2.msra.mxu0 0.0
  %110 = vmatprep.subr.mxu0 0.0
  %111 = vmatpush2.msra.mxu0 0.0
  %112 = vmatprep.subr.mxu0 0.0
  %113 = vmatpush2.msra.mxu0 0.0
  %114 = vmatprep.subr.mxu0 0.0
  %115 = vmatpush2.msra.mxu0 0.0
  %116 = vmatprep.subr.mxu0 0.0
  %117 = vmatpush2.msra.mxu0 0.0
  %118 = vmatprep.subr.mxu0 0.0
  %119 = vmatpush2.msra.mxu0 0.0
  %120 = vmatprep.mubr.f32.mxu0 0.0
  %121 = vmatmul.mubr.f32.gmra.mxu0 %v48
  %v122 = vpop.f32.mrf.mxu0
  %v123 = vadd.f32 0.0, %v122
  %v124 = vpop.f32.mrf.mxu0
  %125 = vmatprep.mubr.f32.mxu0 0.0
  %126 = vmatmul.mubr.f32.gmra.mxu0 %v49
  %v127 = vpop.f32.mrf.mxu0
  %v128 = vadd.f32 0.0, %v127
  %v129 = vpop.f32.mrf.mxu0
  %130 = vmatprep.mubr.f32.mxu0 0.0
  %131 = vmatmul.mubr.f32.gmra.mxu0 %v50
  %v132 = vpop.f32.mrf.mxu0
  %v133 = vadd.f32 0.0, %v132
  %v134 = vpop.f32.mrf.mxu0
  %135 = vmatprep.mubr.f32.mxu0 0.0
  %136 = vmatmul.mubr.f32.gmra.mxu0 %v51
  %v137 = vpop.f32.mrf.mxu0
  %v138 = vadd.f32 0.0, %v137
  %v139 = vpop.f32.mrf.mxu0
  %140 = vmatprep.mubr.f32.mxu0 0.0
  %141 = vmatmul.mubr.f32.gmra.mxu0 %v52
  %v142 = vpop.f32.mrf.mxu0
  %v143 = vadd.f32 0.0, %v142
  %v144 = vpop.f32.mrf.mxu0
  %145 = vmatprep.mubr.f32.mxu0 0.0
  %146 = vmatmul.mubr.f32.gmra.mxu0 %v53
  %v147 = vpop.f32.mrf.mxu0
  %v148 = vadd.f32 0.0, %v147
  %v149 = vpop.f32.mrf.mxu0
  %150 = vmatprep.mubr.f32.mxu0 0.0
  %151 = vmatmul.mubr.f32.gmra.mxu0 %v54
  %v152 = vpop.f32.mrf.mxu0
  %v153 = vadd.f32 0.0, %v152
  %v154 = vpop.f32.mrf.mxu0
  %155 = vmatprep.mubr.f32.mxu0 0.0
  %156 = vmatmul.mubr.f32.gmra.mxu0 %v55
  %v157 = vpop.f32.mrf.mxu0
  %v158 = vadd.f32 0.0, %v157
  %v159 = vpop.f32.mrf.mxu0
  %160 = vdwg.mxu0
  %v161 = vld [vmem:[%s2] sm:$0xff]
  %v162 = vld [vmem:[%s2 + $0x8] sm:$0xff]
  %v163 = vld [vmem:[%s2 + $0x10] sm:$0xff]
  %v164 = vld [vmem:[%s2 + $0x18] sm:$0xff]
  %s165 = scalar_lea.vmem %s1, 64
  %v166 = vld [vmem:[%s165] sm:$0xff]
  %v167 = vld [vmem:[%s165 + $0x8] sm:$0xff]
  %v168 = vld [vmem:[%s165 + $0x10] sm:$0xff]
  %v169 = vld [vmem:[%s165 + $0x18] sm:$0xff]
  %v170 = vld [vmem:[%s165 + $0x20] sm:$0xff]
  %v171 = vld [vmem:[%s165 + $0x28] sm:$0xff]
  %v172 = vld [vmem:[%s165 + $0x30] sm:$0xff]
  %v173 = vld [vmem:[%s165 + $0x38] sm:$0xff]
  %174 = vmatprep.subr.mxu0 0.0
  %175 = vmatpush1.msra.mxu0 %v47
  %176 = vmatprep.subr.mxu0 0.0
  %177 = vmatpush1.msra.mxu0 %v46
  %178 = vmatprep.subr.mxu0 0.0
  %179 = vmatpush1.msra.mxu0 %v45
  %180 = vmatprep.subr.mxu0 0.0
  %181 = vmatpush1.msra.mxu0 %v44
  %182 = vmatprep.subr.mxu0 0.0
  %183 = vmatpush1.msra.mxu0 %v43
  %184 = vmatprep.subr.mxu0 0.0
  %185 = vmatpush1.msra.mxu0 %v42
  %186 = vmatprep.subr.mxu0 0.0
  %187 = vmatpush1.msra.mxu0 %v41
  %188 = vmatprep.subr.mxu0 0.0
  %189 = vmatpush1.msra.mxu0 %v40
  %190 = vmatprep.subr.mxu0 0.0
  %191 = vmatpush1.msra.mxu0 %v39
  %192 = vmatprep.subr.mxu0 0.0
  %193 = vmatpush1.msra.mxu0 %v38
  %194 = vmatprep.subr.mxu0 0.0
  %195 = vmatpush1.msra.mxu0 %v37
  %196 = vmatprep.subr.mxu0 0.0
  %197 = vmatpush1.msra.mxu0 %v36
  %198 = vmatprep.subr.mxu0 0.0
  %199 = vmatpush1.msra.mxu0 %v35
  %200 = vmatprep.subr.mxu0 0.0
  %201 = vmatpush1.msra.mxu0 %v34
  %202 = vmatprep.subr.mxu0 0.0
  %203 = vmatpush1.msra.mxu0 %v33
  %204 = vmatprep.subr.mxu0 0.0
  %205 = vmatpush1.msra.mxu0 %v32
  %206 = vmatprep.subr.mxu0 0.0
  %207 = vmatpush2.msra.mxu0 0.0
  %208 = vmatprep.subr.mxu0 0.0
  %209 = vmatpush2.msra.mxu0 0.0
  %210 = vmatprep.subr.mxu0 0.0
  %211 = vmatpush2.msra.mxu0 0.0
  %212 = vmatprep.subr.mxu0 0.0
  %213 = vmatpush2.msra.mxu0 0.0
  %214 = vmatprep.subr.mxu0 0.0
  %215 = vmatpush2.msra.mxu0 0.0
  %216 = vmatprep.subr.mxu0 0.0
  %217 = vmatpush2.msra.mxu0 0.0
  %218 = vmatprep.subr.mxu0 0.0
  %219 = vmatpush2.msra.mxu0 0.0
  %220 = vmatprep.subr.mxu0 0.0
  %221 = vmatpush2.msra.mxu0 0.0
  %222 = vmatprep.subr.mxu0 0.0
  %223 = vmatpush2.msra.mxu0 0.0
  %224 = vmatprep.subr.mxu0 0.0
  %225 = vmatpush2.msra.mxu0 0.0
  %226 = vmatprep.subr.mxu0 0.0
  %227 = vmatpush2.msra.mxu0 0.0
  %228 = vmatprep.subr.mxu0 0.0
  %229 = vmatpush2.msra.mxu0 0.0
  %230 = vmatprep.subr.mxu0 0.0
  %231 = vmatpush2.msra.mxu0 0.0
  %232 = vmatprep.subr.mxu0 0.0
  %233 = vmatpush2.msra.mxu0 0.0
  %234 = vmatprep.subr.mxu0 0.0
  %235 = vmatpush2.msra.mxu0 0.0
  %236 = vmatprep.subr.mxu0 0.0
  %237 = vmatpush2.msra.mxu0 0.0
  %238 = vmatprep.mubr.f32.mxu0 0.0
  %239 = vmatmul.mubr.f32.gmra.mxu0 %v166
  %v240 = vpop.f32.mrf.mxu0
  %v241 = vadd.f32 0.0, %v240
  %v242 = vpop.f32.mrf.mxu0
  %243 = vmatprep.mubr.f32.mxu0 0.0
  %244 = vmatmul.mubr.f32.gmra.mxu0 %v167
  %v245 = vpop.f32.mrf.mxu0
  %v246 = vadd.f32 0.0, %v245
  %v247 = vpop.f32.mrf.mxu0
  %248 = vmatprep.mubr.f32.mxu0 0.0
  %249 = vmatmul.mubr.f32.gmra.mxu0 %v168
  %v250 = vpop.f32.mrf.mxu0
  %v251 = vadd.f32 0.0, %v250
  %v252 = vpop.f32.mrf.mxu0
  %253 = vmatprep.mubr.f32.mxu0 0.0
  %254 = vmatmul.mubr.f32.gmra.mxu0 %v169
  %v255 = vpop.f32.mrf.mxu0
  %v256 = vadd.f32 0.0, %v255
  %v257 = vpop.f32.mrf.mxu0
  %258 = vmatprep.mubr.f32.mxu0 0.0
  %259 = vmatmul.mubr.f32.gmra.mxu0 %v170
  %v260 = vpop.f32.mrf.mxu0
  %v261 = vadd.f32 0.0, %v260
  %v262 = vpop.f32.mrf.mxu0
  %263 = vmatprep.mubr.f32.mxu0 0.0
  %264 = vmatmul.mubr.f32.gmra.mxu0 %v171
  %v265 = vpop.f32.mrf.mxu0
  %v266 = vadd.f32 0.0, %v265
  %v267 = vpop.f32.mrf.mxu0
  %268 = vmatprep.mubr.f32.mxu0 0.0
  %269 = vmatmul.mubr.f32.gmra.mxu0 %v172
  %v270 = vpop.f32.mrf.mxu0
  %v271 = vadd.f32 0.0, %v270
  %v272 = vpop.f32.mrf.mxu0
  %273 = vmatprep.mubr.f32.mxu0 0.0
  %274 = vmatmul.mubr.f32.gmra.mxu0 %v173
  %v275 = vpop.f32.mrf.mxu0
  %v276 = vadd.f32 0.0, %v275
  %v277 = vpop.f32.mrf.mxu0
  %278 = vdwg.mxu0
  %s279 = scalar_lea.vmem %s2, 32
  %v280 = vld [vmem:[%s279] sm:$0xff]
  %v281 = vld [vmem:[%s279 + $0x8] sm:$0xff]
  %v282 = vld [vmem:[%s279 + $0x10] sm:$0xff]
  %v283 = vld [vmem:[%s279 + $0x18] sm:$0xff]
  %vm284 = vcmask 261120
  %v286 = vsel %vm284, %v241, 0
  %v289 = vsel %vm284, %v246, 0
  %v292 = vsel %vm284, %v251, 0
  %v295 = vsel %vm284, %v256, 0
  %v298 = vsel %vm284, %v261, 0
  %v301 = vsel %vm284, %v266, 0
  %v304 = vsel %vm284, %v271, 0
  %v307 = vsel %vm284, %v276, 0
  %309 = vmatprep.subr.mxu0 0.0
  %310 = vmatpush1.msra.mxu0 0.0
  %311 = vmatprep.subr.mxu0 0.0
  %312 = vmatpush1.msra.mxu0 0.0
  %313 = vmatprep.subr.mxu0 0.0
  %314 = vmatpush1.msra.mxu0 0.0
  %315 = vmatprep.subr.mxu0 0.0
  %316 = vmatpush1.msra.mxu0 0.0
  %317 = vmatprep.subr.mxu0 0.0
  %318 = vmatpush1.msra.mxu0 0.0
  %319 = vmatprep.subr.mxu0 0.0
  %320 = vmatpush1.msra.mxu0 0.0
  %321 = vmatprep.subr.mxu0 0.0
  %322 = vmatpush1.msra.mxu0 0.0
  %323 = vmatprep.subr.mxu0 0.0
  %324 = vmatpush1.msra.mxu0 0.0
  %325 = vmatprep.subr.mxu0 0.0
  %326 = vmatpush1.msra.mxu0 0.0
  %327 = vmatprep.subr.mxu0 0.0
  %328 = vmatpush1.msra.mxu0 0.0
  %329 = vmatprep.subr.mxu0 0.0
  %330 = vmatpush1.msra.mxu0 0.0
  %331 = vmatprep.subr.mxu0 0.0
  %332 = vmatpush1.msra.mxu0 0.0
  %333 = vmatprep.subr.mxu0 0.0
  %334 = vmatpush1.msra.mxu0 %v283
  %335 = vmatprep.subr.mxu0 0.0
  %336 = vmatpush1.msra.mxu0 %v282
  %337 = vmatprep.subr.mxu0 0.0
  %338 = vmatpush1.msra.mxu0 %v281
  %339 = vmatprep.subr.mxu0 0.0
  %340 = vmatpush1.msra.mxu0 %v280
  %341 = vmatprep.subr.mxu0 0.0
  %342 = vmatpush2.msra.mxu0 0.0
  %343 = vmatprep.subr.mxu0 0.0
  %344 = vmatpush2.msra.mxu0 0.0
  %345 = vmatprep.subr.mxu0 0.0
  %346 = vmatpush2.msra.mxu0 0.0
  %347 = vmatprep.subr.mxu0 0.0
  %348 = vmatpush2.msra.mxu0 0.0
  %349 = vmatprep.subr.mxu0 0.0
  %350 = vmatpush2.msra.mxu0 0.0
  %351 = vmatprep.subr.mxu0 0.0
  %352 = vmatpush2.msra.mxu0 0.0
  %353 = vmatprep.subr.mxu0 0.0
  %354 = vmatpush2.msra.mxu0 0.0
  %355 = vmatprep.subr.mxu0 0.0
  %356 = vmatpush2.msra.mxu0 0.0
  %357 = vmatprep.subr.mxu0 0.0
  %358 = vmatpush2.msra.mxu0 0.0
  %359 = vmatprep.subr.mxu0 0.0
  %360 = vmatpush2.msra.mxu0 0.0
  %361 = vmatprep.subr.mxu0 0.0
  %362 = vmatpush2.msra.mxu0 0.0
  %363 = vmatprep.subr.mxu0 0.0
  %364 = vmatpush2.msra.mxu0 0.0
  %365 = vmatprep.subr.mxu0 0.0
  %366 = vmatpush2.msra.mxu0 0.0
  %367 = vmatprep.subr.mxu0 0.0
  %368 = vmatpush2.msra.mxu0 0.0
  %369 = vmatprep.subr.mxu0 0.0
  %370 = vmatpush2.msra.mxu0 0.0
  %371 = vmatprep.subr.mxu0 0.0
  %372 = vmatpush2.msra.mxu0 0.0
  %373 = vmatprep.mubr.f32.mxu0 0.0
  %374 = vmatmul.mubr.f32.gmra.mxu0 %v286
  %v375 = vpop.f32.mrf.mxu0
  %v376 = vadd.f32 0.0, %v375
  %v377 = vpop.f32.mrf.mxu0
  %378 = vmatprep.mubr.f32.mxu0 0.0
  %379 = vmatmul.mubr.f32.gmra.mxu0 %v289
  %v380 = vpop.f32.mrf.mxu0
  %v381 = vadd.f32 0.0, %v380
  %v382 = vpop.f32.mrf.mxu0
  %383 = vmatprep.mubr.f32.mxu0 0.0
  %384 = vmatmul.mubr.f32.gmra.mxu0 %v292
  %v385 = vpop.f32.mrf.mxu0
  %v386 = vadd.f32 0.0, %v385
  %v387 = vpop.f32.mrf.mxu0
  %388 = vmatprep.mubr.f32.mxu0 0.0
  %389 = vmatmul.mubr.f32.gmra.mxu0 %v295
  %v390 = vpop.f32.mrf.mxu0
  %v391 = vadd.f32 0.0, %v390
  %v392 = vpop.f32.mrf.mxu0
  %393 = vmatprep.mubr.f32.mxu0 0.0
  %394 = vmatmul.mubr.f32.gmra.mxu0 %v298
  %v395 = vpop.f32.mrf.mxu0
  %v396 = vadd.f32 0.0, %v395
  %v397 = vpop.f32.mrf.mxu0
  %398 = vmatprep.mubr.f32.mxu0 0.0
  %399 = vmatmul.mubr.f32.gmra.mxu0 %v301
  %v400 = vpop.f32.mrf.mxu0
  %v401 = vadd.f32 0.0, %v400
  %v402 = vpop.f32.mrf.mxu0
  %403 = vmatprep.mubr.f32.mxu0 0.0
  %404 = vmatmul.mubr.f32.gmra.mxu0 %v304
  %v405 = vpop.f32.mrf.mxu0
  %v406 = vadd.f32 0.0, %v405
  %v407 = vpop.f32.mrf.mxu0
  %408 = vmatprep.mubr.f32.mxu0 0.0
  %409 = vmatmul.mubr.f32.gmra.mxu0 %v307
  %v410 = vpop.f32.mrf.mxu0
  %v411 = vadd.f32 0.0, %v410
  %v412 = vpop.f32.mrf.mxu0
  %413 = vdwg.mxu0
  %v415 = vsel %vm284, %v123, 0
  %v418 = vsel %vm284, %v128, 0
  %v421 = vsel %vm284, %v133, 0
  %v424 = vsel %vm284, %v138, 0
  %v427 = vsel %vm284, %v143, 0
  %v430 = vsel %vm284, %v148, 0
  %v433 = vsel %vm284, %v153, 0
  %v436 = vsel %vm284, %v158, 0
  %438 = vmatprep.subr.mxu0 0.0
  %439 = vmatpush1.msra.mxu0 0.0
  %440 = vmatprep.subr.mxu0 0.0
  %441 = vmatpush1.msra.mxu0 0.0
  %442 = vmatprep.subr.mxu0 0.0
  %443 = vmatpush1.msra.mxu0 0.0
  %444 = vmatprep.subr.mxu0 0.0
  %445 = vmatpush1.msra.mxu0 0.0
  %446 = vmatprep.subr.mxu0 0.0
  %447 = vmatpush1.msra.mxu0 0.0
  %448 = vmatprep.subr.mxu0 0.0
  %449 = vmatpush1.msra.mxu0 0.0
  %450 = vmatprep.subr.mxu0 0.0
  %451 = vmatpush1.msra.mxu0 0.0
  %452 = vmatprep.subr.mxu0 0.0
  %453 = vmatpush1.msra.mxu0 0.0
  %454 = vmatprep.subr.mxu0 0.0
  %455 = vmatpush1.msra.mxu0 0.0
  %456 = vmatprep.subr.mxu0 0.0
  %457 = vmatpush1.msra.mxu0 0.0
  %458 = vmatprep.subr.mxu0 0.0
  %459 = vmatpush1.msra.mxu0 0.0
  %460 = vmatprep.subr.mxu0 0.0
  %461 = vmatpush1.msra.mxu0 0.0
  %462 = vmatprep.subr.mxu0 0.0
  %463 = vmatpush1.msra.mxu0 %v164
  %464 = vmatprep.subr.mxu0 0.0
  %465 = vmatpush1.msra.mxu0 %v163
  %466 = vmatprep.subr.mxu0 0.0
  %467 = vmatpush1.msra.mxu0 %v162
  %468 = vmatprep.subr.mxu0 0.0
  %469 = vmatpush1.msra.mxu0 %v161
  %470 = vmatprep.subr.mxu0 0.0
  %471 = vmatpush2.msra.mxu0 0.0
  %472 = vmatprep.subr.mxu0 0.0
  %473 = vmatpush2.msra.mxu0 0.0
  %474 = vmatprep.subr.mxu0 0.0
  %475 = vmatpush2.msra.mxu0 0.0
  %476 = vmatprep.subr.mxu0 0.0
  %477 = vmatpush2.msra.mxu0 0.0
  %478 = vmatprep.subr.mxu0 0.0
  %479 = vmatpush2.msra.mxu0 0.0
  %480 = vmatprep.subr.mxu0 0.0
  %481 = vmatpush2.msra.mxu0 0.0
  %482 = vmatprep.subr.mxu0 0.0
  %483 = vmatpush2.msra.mxu0 0.0
  %484 = vmatprep.subr.mxu0 0.0
  %485 = vmatpush2.msra.mxu0 0.0
  %486 = vmatprep.subr.mxu0 0.0
  %487 = vmatpush2.msra.mxu0 0.0
  %488 = vmatprep.subr.mxu0 0.0
  %489 = vmatpush2.msra.mxu0 0.0
  %490 = vmatprep.subr.mxu0 0.0
  %491 = vmatpush2.msra.mxu0 0.0
  %492 = vmatprep.subr.mxu0 0.0
  %493 = vmatpush2.msra.mxu0 0.0
  %494 = vmatprep.subr.mxu0 0.0
  %495 = vmatpush2.msra.mxu0 0.0
  %496 = vmatprep.subr.mxu0 0.0
  %497 = vmatpush2.msra.mxu0 0.0
  %498 = vmatprep.subr.mxu0 0.0
  %499 = vmatpush2.msra.mxu0 0.0
  %500 = vmatprep.subr.mxu0 0.0
  %501 = vmatpush2.msra.mxu0 0.0
  %502 = vmatprep.mubr.f32.mxu0 0.0
  %503 = vmatmul.mubr.f32.gmra.mxu0 %v415
  %v504 = vpop.f32.mrf.mxu0
  %v505 = vadd.f32 %v376, %v504
  %v506 = vpop.f32.mrf.mxu0
  %507 = vmatprep.mubr.f32.mxu0 0.0
  %508 = vmatmul.mubr.f32.gmra.mxu0 %v418
  %v509 = vpop.f32.mrf.mxu0
  %v510 = vadd.f32 %v381, %v509
  %v511 = vpop.f32.mrf.mxu0
  %512 = vmatprep.mubr.f32.mxu0 0.0
  %513 = vmatmul.mubr.f32.gmra.mxu0 %v421
  %v514 = vpop.f32.mrf.mxu0
  %v515 = vadd.f32 %v386, %v514
  %v516 = vpop.f32.mrf.mxu0
  %517 = vmatprep.mubr.f32.mxu0 0.0
  %518 = vmatmul.mubr.f32.gmra.mxu0 %v424
  %v519 = vpop.f32.mrf.mxu0
  %v520 = vadd.f32 %v391, %v519
  %v521 = vpop.f32.mrf.mxu0
  %522 = vmatprep.mubr.f32.mxu0 0.0
  %523 = vmatmul.mubr.f32.gmra.mxu0 %v427
  %v524 = vpop.f32.mrf.mxu0
  %v525 = vadd.f32 %v396, %v524
  %v526 = vpop.f32.mrf.mxu0
  %527 = vmatprep.mubr.f32.mxu0 0.0
  %528 = vmatmul.mubr.f32.gmra.mxu0 %v430
  %v529 = vpop.f32.mrf.mxu0
  %v530 = vadd.f32 %v401, %v529
  %v531 = vpop.f32.mrf.mxu0
  %532 = vmatprep.mubr.f32.mxu0 0.0
  %533 = vmatmul.mubr.f32.gmra.mxu0 %v433
  %v534 = vpop.f32.mrf.mxu0
  %v535 = vadd.f32 %v406, %v534
  %v536 = vpop.f32.mrf.mxu0
  %537 = vmatprep.mubr.f32.mxu0 0.0
  %538 = vmatmul.mubr.f32.gmra.mxu0 %v436
  %v539 = vpop.f32.mrf.mxu0
  %v540 = vadd.f32 %v411, %v539
  %v541 = vpop.f32.mrf.mxu0
  %542 = vdwg.mxu0
  %s543 = scalar_lea.vmem %s1, 128
  %v544 = vld [vmem:[%s543] sm:$0xff]
  %v545 = vld [vmem:[%s543 + $0x8] sm:$0xff]
  %v546 = vld [vmem:[%s543 + $0x10] sm:$0xff]
  %v547 = vld [vmem:[%s543 + $0x18] sm:$0xff]
  %v548 = vld [vmem:[%s543 + $0x20] sm:$0xff]
  %v549 = vld [vmem:[%s543 + $0x28] sm:$0xff]
  %v550 = vld [vmem:[%s543 + $0x30] sm:$0xff]
  %v551 = vld [vmem:[%s543 + $0x38] sm:$0xff]
  %552 = vmatprep.subr.mxu0 0.0
  %553 = vmatpush1.msra.mxu0 %v47
  %554 = vmatprep.subr.mxu0 0.0
  %555 = vmatpush1.msra.mxu0 %v46
  %556 = vmatprep.subr.mxu0 0.0
  %557 = vmatpush1.msra.mxu0 %v45
  %558 = vmatprep.subr.mxu0 0.0
  %559 = vmatpush1.msra.mxu0 %v44
  %560 = vmatprep.subr.mxu0 0.0
  %561 = vmatpush1.msra.mxu0 %v43
  %562 = vmatprep.subr.mxu0 0.0
  %563 = vmatpush1.msra.mxu0 %v42
  %564 = vmatprep.subr.mxu0 0.0
  %565 = vmatpush1.msra.mxu0 %v41
  %566 = vmatprep.subr.mxu0 0.0
  %567 = vmatpush1.msra.mxu0 %v40
  %568 = vmatprep.subr.mxu0 0.0
  %569 = vmatpush1.msra.mxu0 %v39
  %570 = vmatprep.subr.mxu0 0.0
  %571 = vmatpush1.msra.mxu0 %v38
  %572 = vmatprep.subr.mxu0 0.0
  %573 = vmatpush1.msra.mxu0 %v37
  %574 = vmatprep.subr.mxu0 0.0
  %575 = vmatpush1.msra.mxu0 %v36
  %576 = vmatprep.subr.mxu0 0.0
  %577 = vmatpush1.msra.mxu0 %v35
  %578 = vmatprep.subr.mxu0 0.0
  %579 = vmatpush1.msra.mxu0 %v34
  %580 = vmatprep.subr.mxu0 0.0
  %581 = vmatpush1.msra.mxu0 %v33
  %582 = vmatprep.subr.mxu0 0.0
  %583 = vmatpush1.msra.mxu0 %v32
  %584 = vmatprep.subr.mxu0 0.0
  %585 = vmatpush2.msra.mxu0 0.0
  %586 = vmatprep.subr.mxu0 0.0
  %587 = vmatpush2.msra.mxu0 0.0
  %588 = vmatprep.subr.mxu0 0.0
  %589 = vmatpush2.msra.mxu0 0.0
  %590 = vmatprep.subr.mxu0 0.0
  %591 = vmatpush2.msra.mxu0 0.0
  %592 = vmatprep.subr.mxu0 0.0
  %593 = vmatpush2.msra.mxu0 0.0
  %594 = vmatprep.subr.mxu0 0.0
  %595 = vmatpush2.msra.mxu0 0.0
  %596 = vmatprep.subr.mxu0 0.0
  %597 = vmatpush2.msra.mxu0 0.0
  %598 = vmatprep.subr.mxu0 0.0
  %599 = vmatpush2.msra.mxu0 0.0
  %600 = vmatprep.subr.mxu0 0.0
  %601 = vmatpush2.msra.mxu0 0.0
  %602 = vmatprep.subr.mxu0 0.0
  %603 = vmatpush2.msra.mxu0 0.0
  %604 = vmatprep.subr.mxu0 0.0
  %605 = vmatpush2.msra.mxu0 0.0
  %606 = vmatprep.subr.mxu0 0.0
  %607 = vmatpush2.msra.mxu0 0.0
  %608 = vmatprep.subr.mxu0 0.0
  %609 = vmatpush2.msra.mxu0 0.0
  %610 = vmatprep.subr.mxu0 0.0
  %611 = vmatpush2.msra.mxu0 0.0
  %612 = vmatprep.subr.mxu0 0.0
  %613 = vmatpush2.msra.mxu0 0.0
  %614 = vmatprep.subr.mxu0 0.0
  %615 = vmatpush2.msra.mxu0 0.0
  %616 = vmatprep.mubr.f32.mxu0 0.0
  %617 = vmatmul.mubr.f32.gmra.mxu0 %v544
  %v618 = vpop.f32.mrf.mxu0
  %v619 = vadd.f32 0.0, %v618
  %v620 = vpop.f32.mrf.mxu0
  %621 = vmatprep.mubr.f32.mxu0 0.0
  %622 = vmatmul.mubr.f32.gmra.mxu0 %v545
  %v623 = vpop.f32.mrf.mxu0
  %v624 = vadd.f32 0.0, %v623
  %v625 = vpop.f32.mrf.mxu0
  %626 = vmatprep.mubr.f32.mxu0 0.0
  %627 = vmatmul.mubr.f32.gmra.mxu0 %v546
  %v628 = vpop.f32.mrf.mxu0
  %v629 = vadd.f32 0.0, %v628
  %v630 = vpop.f32.mrf.mxu0
  %631 = vmatprep.mubr.f32.mxu0 0.0
  %632 = vmatmul.mubr.f32.gmra.mxu0 %v547
  %v633 = vpop.f32.mrf.mxu0
  %v634 = vadd.f32 0.0, %v633
  %v635 = vpop.f32.mrf.mxu0
  %636 = vmatprep.mubr.f32.mxu0 0.0
  %637 = vmatmul.mubr.f32.gmra.mxu0 %v548
  %v638 = vpop.f32.mrf.mxu0
  %v639 = vadd.f32 0.0, %v638
  %v640 = vpop.f32.mrf.mxu0
  %641 = vmatprep.mubr.f32.mxu0 0.0
  %642 = vmatmul.mubr.f32.gmra.mxu0 %v549
  %v643 = vpop.f32.mrf.mxu0
  %v644 = vadd.f32 0.0, %v643
  %v645 = vpop.f32.mrf.mxu0
  %646 = vmatprep.mubr.f32.mxu0 0.0
  %647 = vmatmul.mubr.f32.gmra.mxu0 %v550
  %v648 = vpop.f32.mrf.mxu0
  %v649 = vadd.f32 0.0, %v648
  %v650 = vpop.f32.mrf.mxu0
  %651 = vmatprep.mubr.f32.mxu0 0.0
  %652 = vmatmul.mubr.f32.gmra.mxu0 %v551
  %v653 = vpop.f32.mrf.mxu0
  %v654 = vadd.f32 0.0, %v653
  %v655 = vpop.f32.mrf.mxu0
  %656 = vdwg.mxu0
  %s657 = scalar_lea.vmem %s2, 64
  %v658 = vld [vmem:[%s657] sm:$0xff]
  %v659 = vld [vmem:[%s657 + $0x8] sm:$0xff]
  %v660 = vld [vmem:[%s657 + $0x10] sm:$0xff]
  %v661 = vld [vmem:[%s657 + $0x18] sm:$0xff]
  %v663 = vsel %vm284, %v619, 0
  %v666 = vsel %vm284, %v624, 0
  %v669 = vsel %vm284, %v629, 0
  %v672 = vsel %vm284, %v634, 0
  %v675 = vsel %vm284, %v639, 0
  %v678 = vsel %vm284, %v644, 0
  %v681 = vsel %vm284, %v649, 0
  %v684 = vsel %vm284, %v654, 0
  %686 = vmatprep.subr.mxu0 0.0
  %687 = vmatpush1.msra.mxu0 0.0
  %688 = vmatprep.subr.mxu0 0.0
  %689 = vmatpush1.msra.mxu0 0.0
  %690 = vmatprep.subr.mxu0 0.0
  %691 = vmatpush1.msra.mxu0 0.0
  %692 = vmatprep.subr.mxu0 0.0
  %693 = vmatpush1.msra.mxu0 0.0
  %694 = vmatprep.subr.mxu0 0.0
  %695 = vmatpush1.msra.mxu0 0.0
  %696 = vmatprep.subr.mxu0 0.0
  %697 = vmatpush1.msra.mxu0 0.0
  %698 = vmatprep.subr.mxu0 0.0
  %699 = vmatpush1.msra.mxu0 0.0
  %700 = vmatprep.subr.mxu0 0.0
  %701 = vmatpush1.msra.mxu0 0.0
  %702 = vmatprep.subr.mxu0 0.0
  %703 = vmatpush1.msra.mxu0 0.0
  %704 = vmatprep.subr.mxu0 0.0
  %705 = vmatpush1.msra.mxu0 0.0
  %706 = vmatprep.subr.mxu0 0.0
  %707 = vmatpush1.msra.mxu0 0.0
  %708 = vmatprep.subr.mxu0 0.0
  %709 = vmatpush1.msra.mxu0 0.0
  %710 = vmatprep.subr.mxu0 0.0
  %711 = vmatpush1.msra.mxu0 %v661
  %712 = vmatprep.subr.mxu0 0.0
  %713 = vmatpush1.msra.mxu0 %v660
  %714 = vmatprep.subr.mxu0 0.0
  %715 = vmatpush1.msra.mxu0 %v659
  %716 = vmatprep.subr.mxu0 0.0
  %717 = vmatpush1.msra.mxu0 %v658
  %718 = vmatprep.subr.mxu0 0.0
  %719 = vmatpush2.msra.mxu0 0.0
  %720 = vmatprep.subr.mxu0 0.0
  %721 = vmatpush2.msra.mxu0 0.0
  %722 = vmatprep.subr.mxu0 0.0
  %723 = vmatpush2.msra.mxu0 0.0
  %724 = vmatprep.subr.mxu0 0.0
  %725 = vmatpush2.msra.mxu0 0.0
  %726 = vmatprep.subr.mxu0 0.0
  %727 = vmatpush2.msra.mxu0 0.0
  %728 = vmatprep.subr.mxu0 0.0
  %729 = vmatpush2.msra.mxu0 0.0
  %730 = vmatprep.subr.mxu0 0.0
  %731 = vmatpush2.msra.mxu0 0.0
  %732 = vmatprep.subr.mxu0 0.0
  %733 = vmatpush2.msra.mxu0 0.0
  %734 = vmatprep.subr.mxu0 0.0
  %735 = vmatpush2.msra.mxu0 0.0
  %736 = vmatprep.subr.mxu0 0.0
  %737 = vmatpush2.msra.mxu0 0.0
  %738 = vmatprep.subr.mxu0 0.0
  %739 = vmatpush2.msra.mxu0 0.0
  %740 = vmatprep.subr.mxu0 0.0
  %741 = vmatpush2.msra.mxu0 0.0
  %742 = vmatprep.subr.mxu0 0.0
  %743 = vmatpush2.msra.mxu0 0.0
  %744 = vmatprep.subr.mxu0 0.0
  %745 = vmatpush2.msra.mxu0 0.0
  %746 = vmatprep.subr.mxu0 0.0
  %747 = vmatpush2.msra.mxu0 0.0
  %748 = vmatprep.subr.mxu0 0.0
  %749 = vmatpush2.msra.mxu0 0.0
  %750 = vmatprep.mubr.f32.mxu0 0.0
  %751 = vmatmul.mubr.f32.gmra.mxu0 %v663
  %v752 = vpop.f32.mrf.mxu0
  %v753 = vadd.f32 0.0, %v752
  %v754 = vpop.f32.mrf.mxu0
  %755 = vmatprep.mubr.f32.mxu0 0.0
  %756 = vmatmul.mubr.f32.gmra.mxu0 %v666
  %v757 = vpop.f32.mrf.mxu0
  %v758 = vadd.f32 0.0, %v757
  %v759 = vpop.f32.mrf.mxu0
  %760 = vmatprep.mubr.f32.mxu0 0.0
  %761 = vmatmul.mubr.f32.gmra.mxu0 %v669
  %v762 = vpop.f32.mrf.mxu0
  %v763 = vadd.f32 0.0, %v762
  %v764 = vpop.f32.mrf.mxu0
  %765 = vmatprep.mubr.f32.mxu0 0.0
  %766 = vmatmul.mubr.f32.gmra.mxu0 %v672
  %v767 = vpop.f32.mrf.mxu0
  %v768 = vadd.f32 0.0, %v767
  %v769 = vpop.f32.mrf.mxu0
  %770 = vmatprep.mubr.f32.mxu0 0.0
  %771 = vmatmul.mubr.f32.gmra.mxu0 %v675
  %v772 = vpop.f32.mrf.mxu0
  %v773 = vadd.f32 0.0, %v772
  %v774 = vpop.f32.mrf.mxu0
  %775 = vmatprep.mubr.f32.mxu0 0.0
  %776 = vmatmul.mubr.f32.gmra.mxu0 %v678
  %v777 = vpop.f32.mrf.mxu0
  %v778 = vadd.f32 0.0, %v777
  %v779 = vpop.f32.mrf.mxu0
  %780 = vmatprep.mubr.f32.mxu0 0.0
  %781 = vmatmul.mubr.f32.gmra.mxu0 %v681
  %v782 = vpop.f32.mrf.mxu0
  %v783 = vadd.f32 0.0, %v782
  %v784 = vpop.f32.mrf.mxu0
  %785 = vmatprep.mubr.f32.mxu0 0.0
  %786 = vmatmul.mubr.f32.gmra.mxu0 %v684
  %v787 = vpop.f32.mrf.mxu0
  %v788 = vadd.f32 0.0, %v787
  %v789 = vpop.f32.mrf.mxu0
  %790 = vdwg.mxu0
  %v791 = vadd.f32 %v505, %v753
  %v792 = vadd.f32 %v510, %v758
  %v793 = vadd.f32 %v515, %v763
  %v794 = vadd.f32 %v520, %v768
  %v795 = vadd.f32 %v525, %v773
  %v796 = vadd.f32 %v530, %v778
  %v797 = vadd.f32 %v535, %v783
  %v798 = vadd.f32 %v540, %v788
  %v799 = vld [vmem:[%s3] sm:$0x1]
  %v801 = vlaneseq
  %v802 = vshrl.u32 %v801, 7
  %v803 = vsub.s32 0, %v802
  %v804 = vrot.slane %v799, %v803
  %v806 = vadd.f32 %v791, %v804
  %v807 = vadd.f32 %v792, %v804
  %v808 = vadd.f32 %v793, %v804
  %v809 = vadd.f32 %v794, %v804
  %v810 = vadd.f32 %v795, %v804
  %v811 = vadd.f32 %v796, %v804
  %v812 = vadd.f32 %v797, %v804
  %v813 = vadd.f32 %v798, %v804
  %v814 = vmax.f32 %v806, 0.0
  %v815 = vmax.f32 %v807, 0.0
  %v816 = vmax.f32 %v808, 0.0
  %v817 = vmax.f32 %v809, 0.0
  %v818 = vmax.f32 %v810, 0.0
  %v819 = vmax.f32 %v811, 0.0
  %v820 = vmax.f32 %v812, 0.0
  %v821 = vmax.f32 %v813, 0.0
  %v822 = vld [vmem:[%s4] sm:$0xff]
  %v823 = vld [vmem:[%s4 + $0x8] sm:$0xff]
  %v824 = vld [vmem:[%s4 + $0x10] sm:$0xff]
  %v825 = vld [vmem:[%s4 + $0x18] sm:$0xff]
  %vm826 = vcmask 523264
  %v828 = vsel %vm826, %v822, 0
  %v831 = vsel %vm826, %v823, 0
  %v834 = vsel %vm826, %v824, 0
  %v837 = vsel %vm826, %v825, 0
  %839 = vmatprep.subr.mxu0 0.0
  %840 = vmatpush1.msra.mxu0 0.0
  %841 = vmatprep.subr.mxu0 0.0
  %842 = vmatpush1.msra.mxu0 0.0
  %843 = vmatprep.subr.mxu0 0.0
  %844 = vmatpush1.msra.mxu0 0.0
  %845 = vmatprep.subr.mxu0 0.0
  %846 = vmatpush1.msra.mxu0 0.0
  %847 = vmatprep.subr.mxu0 0.0
  %848 = vmatpush1.msra.mxu0 0.0
  %849 = vmatprep.subr.mxu0 0.0
  %850 = vmatpush1.msra.mxu0 0.0
  %851 = vmatprep.subr.mxu0 0.0
  %852 = vmatpush1.msra.mxu0 0.0
  %853 = vmatprep.subr.mxu0 0.0
  %854 = vmatpush1.msra.mxu0 0.0
  %855 = vmatprep.subr.mxu0 0.0
  %856 = vmatpush1.msra.mxu0 %v821
  %857 = vmatprep.subr.mxu0 0.0
  %858 = vmatpush1.msra.mxu0 %v820
  %859 = vmatprep.subr.mxu0 0.0
  %860 = vmatpush1.msra.mxu0 %v819
  %861 = vmatprep.subr.mxu0 0.0
  %862 = vmatpush1.msra.mxu0 %v818
  %863 = vmatprep.subr.mxu0 0.0
  %864 = vmatpush1.msra.mxu0 %v817
  %865 = vmatprep.subr.mxu0 0.0
  %866 = vmatpush1.msra.mxu0 %v816
  %867 = vmatprep.subr.mxu0 0.0
  %868 = vmatpush1.msra.mxu0 %v815
  %869 = vmatprep.subr.mxu0 0.0
  %870 = vmatpush1.msra.mxu0 %v814
  %871 = vmatprep.subr.mxu0 0.0
  %872 = vmatpush2.msra.mxu0 0.0
  %873 = vmatprep.subr.mxu0 0.0
  %874 = vmatpush2.msra.mxu0 0.0
  %875 = vmatprep.subr.mxu0 0.0
  %876 = vmatpush2.msra.mxu0 0.0
  %877 = vmatprep.subr.mxu0 0.0
  %878 = vmatpush2.msra.mxu0 0.0
  %879 = vmatprep.subr.mxu0 0.0
  %880 = vmatpush2.msra.mxu0 0.0
  %881 = vmatprep.subr.mxu0 0.0
  %882 = vmatpush2.msra.mxu0 0.0
  %883 = vmatprep.subr.mxu0 0.0
  %884 = vmatpush2.msra.mxu0 0.0
  %885 = vmatprep.subr.mxu0 0.0
  %886 = vmatpush2.msra.mxu0 0.0
  %887 = vmatprep.subr.mxu0 0.0
  %888 = vmatpush2.msra.mxu0 0.0
  %889 = vmatprep.subr.mxu0 0.0
  %890 = vmatpush2.msra.mxu0 0.0
  %891 = vmatprep.subr.mxu0 0.0
  %892 = vmatpush2.msra.mxu0 0.0
  %893 = vmatprep.subr.mxu0 0.0
  %894 = vmatpush2.msra.mxu0 0.0
  %895 = vmatprep.subr.mxu0 0.0
  %896 = vmatpush2.msra.mxu0 0.0
  %897 = vmatprep.subr.mxu0 0.0
  %898 = vmatpush2.msra.mxu0 0.0
  %899 = vmatprep.subr.mxu0 0.0
  %900 = vmatpush2.msra.mxu0 0.0
  %901 = vmatprep.subr.mxu0 0.0
  %902 = vmatpush2.msra.mxu0 0.0
  %903 = vmatprep.mubr.f32.mxu0 0.0
  %904 = vmatmul.mubr.f32.gmra.mxu0 %v828
  %v905 = vpop.f32.mrf.mxu0
  %v906 = vadd.f32 0.0, %v905
  %v907 = vpop.f32.mrf.mxu0
  %908 = vmatprep.mubr.f32.mxu0 0.0
  %909 = vmatmul.mubr.f32.gmra.mxu0 %v831
  %v910 = vpop.f32.mrf.mxu0
  %v911 = vadd.f32 0.0, %v910
  %v912 = vpop.f32.mrf.mxu0
  %913 = vmatprep.mubr.f32.mxu0 0.0
  %914 = vmatmul.mubr.f32.gmra.mxu0 %v834
  %v915 = vpop.f32.mrf.mxu0
  %v916 = vadd.f32 0.0, %v915
  %v917 = vpop.f32.mrf.mxu0
  %918 = vmatprep.mubr.f32.mxu0 0.0
  %919 = vmatmul.mubr.f32.gmra.mxu0 %v837
  %v920 = vpop.f32.mrf.mxu0
  %v921 = vadd.f32 0.0, %v920
  %v922 = vpop.f32.mrf.mxu0
  %923 = vdwg.mxu0
  %v924 = vld [vmem:[%s5] sm:$0xff]
  %v925 = vld [vmem:[%s5 + $0x8] sm:$0xff]
  %v926 = vld [vmem:[%s5 + $0x10] sm:$0xff]
  %v927 = vld [vmem:[%s5 + $0x18] sm:$0xff]
  %v928 = vld [vmem:[%s5 + $0x20] sm:$0xff]
  %v929 = vld [vmem:[%s5 + $0x28] sm:$0xff]
  %v930 = vld [vmem:[%s5 + $0x30] sm:$0xff]
  %v931 = vld [vmem:[%s5 + $0x38] sm:$0xff]
  %v932 = vld [vmem:[%s5 + $0x40] sm:$0xff]
  %v933 = vld [vmem:[%s5 + $0x48] sm:$0xff]
  %v934 = vld [vmem:[%s5 + $0x50] sm:$0xff]
  %v935 = vld [vmem:[%s5 + $0x58] sm:$0xff]
  %v936 = vld [vmem:[%s5 + $0x60] sm:$0xff]
  %v937 = vld [vmem:[%s5 + $0x68] sm:$0xff]
  %v938 = vld [vmem:[%s5 + $0x70] sm:$0xff]
  %v939 = vld [vmem:[%s5 + $0x78] sm:$0xff]
  %s940 = scalar_lea.vmem %s4, 32
  %v941 = vld [vmem:[%s940] sm:$0xff]
  %v942 = vld [vmem:[%s940 + $0x8] sm:$0xff]
  %v943 = vld [vmem:[%s940 + $0x10] sm:$0xff]
  %v944 = vld [vmem:[%s940 + $0x18] sm:$0xff]
  %v946 = vsel %vm826, %v941, 0
  %v949 = vsel %vm826, %v942, 0
  %v952 = vsel %vm826, %v943, 0
  %v955 = vsel %vm826, %v944, 0
  %957 = vmatprep.subr.mxu0 0.0
  %958 = vmatpush1.msra.mxu0 0.0
  %959 = vmatprep.subr.mxu0 0.0
  %960 = vmatpush1.msra.mxu0 0.0
  %961 = vmatprep.subr.mxu0 0.0
  %962 = vmatpush1.msra.mxu0 0.0
  %963 = vmatprep.subr.mxu0 0.0
  %964 = vmatpush1.msra.mxu0 0.0
  %965 = vmatprep.subr.mxu0 0.0
  %966 = vmatpush1.msra.mxu0 0.0
  %967 = vmatprep.subr.mxu0 0.0
  %968 = vmatpush1.msra.mxu0 0.0
  %969 = vmatprep.subr.mxu0 0.0
  %970 = vmatpush1.msra.mxu0 0.0
  %971 = vmatprep.subr.mxu0 0.0
  %972 = vmatpush1.msra.mxu0 0.0
  %973 = vmatprep.subr.mxu0 0.0
  %974 = vmatpush1.msra.mxu0 %v821
  %975 = vmatprep.subr.mxu0 0.0
  %976 = vmatpush1.msra.mxu0 %v820
  %977 = vmatprep.subr.mxu0 0.0
  %978 = vmatpush1.msra.mxu0 %v819
  %979 = vmatprep.subr.mxu0 0.0
  %980 = vmatpush1.msra.mxu0 %v818
  %981 = vmatprep.subr.mxu0 0.0
  %982 = vmatpush1.msra.mxu0 %v817
  %983 = vmatprep.subr.mxu0 0.0
  %984 = vmatpush1.msra.mxu0 %v816
  %985 = vmatprep.subr.mxu0 0.0
  %986 = vmatpush1.msra.mxu0 %v815
  %987 = vmatprep.subr.mxu0 0.0
  %988 = vmatpush1.msra.mxu0 %v814
  %989 = vmatprep.subr.mxu0 0.0
  %990 = vmatpush2.msra.mxu0 0.0
  %991 = vmatprep.subr.mxu0 0.0
  %992 = vmatpush2.msra.mxu0 0.0
  %993 = vmatprep.subr.mxu0 0.0
  %994 = vmatpush2.msra.mxu0 0.0
  %995 = vmatprep.subr.mxu0 0.0
  %996 = vmatpush2.msra.mxu0 0.0
  %997 = vmatprep.subr.mxu0 0.0
  %998 = vmatpush2.msra.mxu0 0.0
  %999 = vmatprep.subr.mxu0 0.0
  %1000 = vmatpush2.msra.mxu0 0.0
  %1001 = vmatprep.subr.mxu0 0.0
  %1002 = vmatpush2.msra.mxu0 0.0
  %1003 = vmatprep.subr.mxu0 0.0
  %1004 = vmatpush2.msra.mxu0 0.0
  %1005 = vmatprep.subr.mxu0 0.0
  %1006 = vmatpush2.msra.mxu0 0.0
  %1007 = vmatprep.subr.mxu0 0.0
  %1008 = vmatpush2.msra.mxu0 0.0
  %1009 = vmatprep.subr.mxu0 0.0
  %1010 = vmatpush2.msra.mxu0 0.0
  %1011 = vmatprep.subr.mxu0 0.0
  %1012 = vmatpush2.msra.mxu0 0.0
  %1013 = vmatprep.subr.mxu0 0.0
  %1014 = vmatpush2.msra.mxu0 0.0
  %1015 = vmatprep.subr.mxu0 0.0
  %1016 = vmatpush2.msra.mxu0 0.0
  %1017 = vmatprep.subr.mxu0 0.0
  %1018 = vmatpush2.msra.mxu0 0.0
  %1019 = vmatprep.subr.mxu0 0.0
  %1020 = vmatpush2.msra.mxu0 0.0
  %1021 = vmatprep.mubr.f32.mxu0 0.0
  %1022 = vmatmul.mubr.f32.gmra.mxu0 %v946
  %v1023 = vpop.f32.mrf.mxu0
  %v1024 = vadd.f32 0.0, %v1023
  %v1025 = vpop.f32.mrf.mxu0
  %1026 = vmatprep.mubr.f32.mxu0 0.0
  %1027 = vmatmul.mubr.f32.gmra.mxu0 %v949
  %v1028 = vpop.f32.mrf.mxu0
  %v1029 = vadd.f32 0.0, %v1028
  %v1030 = vpop.f32.mrf.mxu0
  %1031 = vmatprep.mubr.f32.mxu0 0.0
  %1032 = vmatmul.mubr.f32.gmra.mxu0 %v952
  %v1033 = vpop.f32.mrf.mxu0
  %v1034 = vadd.f32 0.0, %v1033
  %v1035 = vpop.f32.mrf.mxu0
  %1036 = vmatprep.mubr.f32.mxu0 0.0
  %1037 = vmatmul.mubr.f32.gmra.mxu0 %v955
  %v1038 = vpop.f32.mrf.mxu0
  %v1039 = vadd.f32 0.0, %v1038
  %v1040 = vpop.f32.mrf.mxu0
  %1041 = vdwg.mxu0
  %s1042 = scalar_lea.vmem %s5, 128
  %v1043 = vld [vmem:[%s1042] sm:$0xff]
  %v1044 = vld [vmem:[%s1042 + $0x8] sm:$0xff]
  %v1045 = vld [vmem:[%s1042 + $0x10] sm:$0xff]
  %v1046 = vld [vmem:[%s1042 + $0x18] sm:$0xff]
  %v1047 = vld [vmem:[%s1042 + $0x20] sm:$0xff]
  %v1048 = vld [vmem:[%s1042 + $0x28] sm:$0xff]
  %v1049 = vld [vmem:[%s1042 + $0x30] sm:$0xff]
  %v1050 = vld [vmem:[%s1042 + $0x38] sm:$0xff]
  %v1051 = vld [vmem:[%s1042 + $0x40] sm:$0xff]
  %v1052 = vld [vmem:[%s1042 + $0x48] sm:$0xff]
  %v1053 = vld [vmem:[%s1042 + $0x50] sm:$0xff]
  %v1054 = vld [vmem:[%s1042 + $0x58] sm:$0xff]
  %v1055 = vld [vmem:[%s1042 + $0x60] sm:$0xff]
  %v1056 = vld [vmem:[%s1042 + $0x68] sm:$0xff]
  %v1057 = vld [vmem:[%s1042 + $0x70] sm:$0xff]
  %v1058 = vld [vmem:[%s1042 + $0x78] sm:$0xff]
  %1059 = vmatprep.subr.mxu0 0.0
  %1060 = vmatpush1.msra.mxu0 %v1058
  %1061 = vmatprep.subr.mxu0 0.0
  %1062 = vmatpush1.msra.mxu0 %v1057
  %1063 = vmatprep.subr.mxu0 0.0
  %1064 = vmatpush1.msra.mxu0 %v1056
  %1065 = vmatprep.subr.mxu0 0.0
  %1066 = vmatpush1.msra.mxu0 %v1055
  %1067 = vmatprep.subr.mxu0 0.0
  %1068 = vmatpush1.msra.mxu0 %v1054
  %1069 = vmatprep.subr.mxu0 0.0
  %1070 = vmatpush1.msra.mxu0 %v1053
  %1071 = vmatprep.subr.mxu0 0.0
  %1072 = vmatpush1.msra.mxu0 %v1052
  %1073 = vmatprep.subr.mxu0 0.0
  %1074 = vmatpush1.msra.mxu0 %v1051
  %1075 = vmatprep.subr.mxu0 0.0
  %1076 = vmatpush1.msra.mxu0 %v1050
  %1077 = vmatprep.subr.mxu0 0.0
  %1078 = vmatpush1.msra.mxu0 %v1049
  %1079 = vmatprep.subr.mxu0 0.0
  %1080 = vmatpush1.msra.mxu0 %v1048
  %1081 = vmatprep.subr.mxu0 0.0
  %1082 = vmatpush1.msra.mxu0 %v1047
  %1083 = vmatprep.subr.mxu0 0.0
  %1084 = vmatpush1.msra.mxu0 %v1046
  %1085 = vmatprep.subr.mxu0 0.0
  %1086 = vmatpush1.msra.mxu0 %v1045
  %1087 = vmatprep.subr.mxu0 0.0
  %1088 = vmatpush1.msra.mxu0 %v1044
  %1089 = vmatprep.subr.mxu0 0.0
  %1090 = vmatpush1.msra.mxu0 %v1043
  %1091 = vmatprep.subr.mxu0 0.0
  %1092 = vmatpush2.msra.mxu0 0.0
  %1093 = vmatprep.subr.mxu0 0.0
  %1094 = vmatpush2.msra.mxu0 0.0
  %1095 = vmatprep.subr.mxu0 0.0
  %1096 = vmatpush2.msra.mxu0 0.0
  %1097 = vmatprep.subr.mxu0 0.0
  %1098 = vmatpush2.msra.mxu0 0.0
  %1099 = vmatprep.subr.mxu0 0.0
  %1100 = vmatpush2.msra.mxu0 0.0
  %1101 = vmatprep.subr.mxu0 0.0
  %1102 = vmatpush2.msra.mxu0 0.0
  %1103 = vmatprep.subr.mxu0 0.0
  %1104 = vmatpush2.msra.mxu0 0.0
  %1105 = vmatprep.subr.mxu0 0.0
  %1106 = vmatpush2.msra.mxu0 0.0
  %1107 = vmatprep.subr.mxu0 0.0
  %1108 = vmatpush2.msra.mxu0 0.0
  %1109 = vmatprep.subr.mxu0 0.0
  %1110 = vmatpush2.msra.mxu0 0.0
  %1111 = vmatprep.subr.mxu0 0.0
  %1112 = vmatpush2.msra.mxu0 0.0
  %1113 = vmatprep.subr.mxu0 0.0
  %1114 = vmatpush2.msra.mxu0 0.0
  %1115 = vmatprep.subr.mxu0 0.0
  %1116 = vmatpush2.msra.mxu0 0.0
  %1117 = vmatprep.subr.mxu0 0.0
  %1118 = vmatpush2.msra.mxu0 0.0
  %1119 = vmatprep.subr.mxu0 0.0
  %1120 = vmatpush2.msra.mxu0 0.0
  %1121 = vmatprep.subr.mxu0 0.0
  %1122 = vmatpush2.msra.mxu0 0.0
  %1123 = vmatprep.mubr.f32.mxu0 0.0
  %1124 = vmatmul.mubr.f32.gmra.mxu0 %v1024
  %v1125 = vpop.f32.mrf.mxu0
  %v1126 = vadd.f32 0.0, %v1125
  %v1127 = vpop.f32.mrf.mxu0
  %1128 = vmatprep.mubr.f32.mxu0 0.0
  %1129 = vmatmul.mubr.f32.gmra.mxu0 %v1029
  %v1130 = vpop.f32.mrf.mxu0
  %v1131 = vadd.f32 0.0, %v1130
  %v1132 = vpop.f32.mrf.mxu0
  %1133 = vmatprep.mubr.f32.mxu0 0.0
  %1134 = vmatmul.mubr.f32.gmra.mxu0 %v1034
  %v1135 = vpop.f32.mrf.mxu0
  %v1136 = vadd.f32 0.0, %v1135
  %v1137 = vpop.f32.mrf.mxu0
  %1138 = vmatprep.mubr.f32.mxu0 0.0
  %1139 = vmatmul.mubr.f32.gmra.mxu0 %v1039
  %v1140 = vpop.f32.mrf.mxu0
  %v1141 = vadd.f32 0.0, %v1140
  %v1142 = vpop.f32.mrf.mxu0
  %1143 = vdwg.mxu0
  %1144 = vmatprep.subr.mxu0 0.0
  %1145 = vmatpush1.msra.mxu0 %v939
  %1146 = vmatprep.subr.mxu0 0.0
  %1147 = vmatpush1.msra.mxu0 %v938
  %1148 = vmatprep.subr.mxu0 0.0
  %1149 = vmatpush1.msra.mxu0 %v937
  %1150 = vmatprep.subr.mxu0 0.0
  %1151 = vmatpush1.msra.mxu0 %v936
  %1152 = vmatprep.subr.mxu0 0.0
  %1153 = vmatpush1.msra.mxu0 %v935
  %1154 = vmatprep.subr.mxu0 0.0
  %1155 = vmatpush1.msra.mxu0 %v934
  %1156 = vmatprep.subr.mxu0 0.0
  %1157 = vmatpush1.msra.mxu0 %v933
  %1158 = vmatprep.subr.mxu0 0.0
  %1159 = vmatpush1.msra.mxu0 %v932
  %1160 = vmatprep.subr.mxu0 0.0
  %1161 = vmatpush1.msra.mxu0 %v931
  %1162 = vmatprep.subr.mxu0 0.0
  %1163 = vmatpush1.msra.mxu0 %v930
  %1164 = vmatprep.subr.mxu0 0.0
  %1165 = vmatpush1.msra.mxu0 %v929
  %1166 = vmatprep.subr.mxu0 0.0
  %1167 = vmatpush1.msra.mxu0 %v928
  %1168 = vmatprep.subr.mxu0 0.0
  %1169 = vmatpush1.msra.mxu0 %v927
  %1170 = vmatprep.subr.mxu0 0.0
  %1171 = vmatpush1.msra.mxu0 %v926
  %1172 = vmatprep.subr.mxu0 0.0
  %1173 = vmatpush1.msra.mxu0 %v925
  %1174 = vmatprep.subr.mxu0 0.0
  %1175 = vmatpush1.msra.mxu0 %v924
  %1176 = vmatprep.subr.mxu0 0.0
  %1177 = vmatpush2.msra.mxu0 0.0
  %1178 = vmatprep.subr.mxu0 0.0
  %1179 = vmatpush2.msra.mxu0 0.0
  %1180 = vmatprep.subr.mxu0 0.0
  %1181 = vmatpush2.msra.mxu0 0.0
  %1182 = vmatprep.subr.mxu0 0.0
  %1183 = vmatpush2.msra.mxu0 0.0
  %1184 = vmatprep.subr.mxu0 0.0
  %1185 = vmatpush2.msra.mxu0 0.0
  %1186 = vmatprep.subr.mxu0 0.0
  %1187 = vmatpush2.msra.mxu0 0.0
  %1188 = vmatprep.subr.mxu0 0.0
  %1189 = vmatpush2.msra.mxu0 0.0
  %1190 = vmatprep.subr.mxu0 0.0
  %1191 = vmatpush2.msra.mxu0 0.0
  %1192 = vmatprep.subr.mxu0 0.0
  %1193 = vmatpush2.msra.mxu0 0.0
  %1194 = vmatprep.subr.mxu0 0.0
  %1195 = vmatpush2.msra.mxu0 0.0
  %1196 = vmatprep.subr.mxu0 0.0
  %1197 = vmatpush2.msra.mxu0 0.0
  %1198 = vmatprep.subr.mxu0 0.0
  %1199 = vmatpush2.msra.mxu0 0.0
  %1200 = vmatprep.subr.mxu0 0.0
  %1201 = vmatpush2.msra.mxu0 0.0
  %1202 = vmatprep.subr.mxu0 0.0
  %1203 = vmatpush2.msra.mxu0 0.0
  %1204 = vmatprep.subr.mxu0 0.0
  %1205 = vmatpush2.msra.mxu0 0.0
  %1206 = vmatprep.subr.mxu0 0.0
  %1207 = vmatpush2.msra.mxu0 0.0
  %1208 = vmatprep.mubr.f32.mxu0 0.0
  %1209 = vmatmul.mubr.f32.gmra.mxu0 %v906
  %v1210 = vpop.f32.mrf.mxu0
  %v1211 = vadd.f32 %v1126, %v1210
  %v1212 = vpop.f32.mrf.mxu0
  %1213 = vmatprep.mubr.f32.mxu0 0.0
  %1214 = vmatmul.mubr.f32.gmra.mxu0 %v911
  %v1215 = vpop.f32.mrf.mxu0
  %v1216 = vadd.f32 %v1131, %v1215
  %v1217 = vpop.f32.mrf.mxu0
  %1218 = vmatprep.mubr.f32.mxu0 0.0
  %1219 = vmatmul.mubr.f32.gmra.mxu0 %v916
  %v1220 = vpop.f32.mrf.mxu0
  %v1221 = vadd.f32 %v1136, %v1220
  %v1222 = vpop.f32.mrf.mxu0
  %1223 = vmatprep.mubr.f32.mxu0 0.0
  %1224 = vmatmul.mubr.f32.gmra.mxu0 %v921
  %v1225 = vpop.f32.mrf.mxu0
  %v1226 = vadd.f32 %v1141, %v1225
  %v1227 = vpop.f32.mrf.mxu0
  %1228 = vdwg.mxu0
  %s1229 = scalar_lea.vmem %s4, 64
  %v1230 = vld [vmem:[%s1229] sm:$0xff]
  %v1231 = vld [vmem:[%s1229 + $0x8] sm:$0xff]
  %v1232 = vld [vmem:[%s1229 + $0x10] sm:$0xff]
  %v1233 = vld [vmem:[%s1229 + $0x18] sm:$0xff]
  %v1235 = vsel %vm826, %v1230, 0
  %v1238 = vsel %vm826, %v1231, 0
  %v1241 = vsel %vm826, %v1232, 0
  %v1244 = vsel %vm826, %v1233, 0
  %1246 = vmatprep.subr.mxu0 0.0
  %1247 = vmatpush1.msra.mxu0 0.0
  %1248 = vmatprep.subr.mxu0 0.0
  %1249 = vmatpush1.msra.mxu0 0.0
  %1250 = vmatprep.subr.mxu0 0.0
  %1251 = vmatpush1.msra.mxu0 0.0
  %1252 = vmatprep.subr.mxu0 0.0
  %1253 = vmatpush1.msra.mxu0 0.0
  %1254 = vmatprep.subr.mxu0 0.0
  %1255 = vmatpush1.msra.mxu0 0.0
  %1256 = vmatprep.subr.mxu0 0.0
  %1257 = vmatpush1.msra.mxu0 0.0
  %1258 = vmatprep.subr.mxu0 0.0
  %1259 = vmatpush1.msra.mxu0 0.0
  %1260 = vmatprep.subr.mxu0 0.0
  %1261 = vmatpush1.msra.mxu0 0.0
  %1262 = vmatprep.subr.mxu0 0.0
  %1263 = vmatpush1.msra.mxu0 %v821
  %1264 = vmatprep.subr.mxu0 0.0
  %1265 = vmatpush1.msra.mxu0 %v820
  %1266 = vmatprep.subr.mxu0 0.0
  %1267 = vmatpush1.msra.mxu0 %v819
  %1268 = vmatprep.subr.mxu0 0.0
  %1269 = vmatpush1.msra.mxu0 %v818
  %1270 = vmatprep.subr.mxu0 0.0
  %1271 = vmatpush1.msra.mxu0 %v817
  %1272 = vmatprep.subr.mxu0 0.0
  %1273 = vmatpush1.msra.mxu0 %v816
  %1274 = vmatprep.subr.mxu0 0.0
  %1275 = vmatpush1.msra.mxu0 %v815
  %1276 = vmatprep.subr.mxu0 0.0
  %1277 = vmatpush1.msra.mxu0 %v814
  %1278 = vmatprep.subr.mxu0 0.0
  %1279 = vmatpush2.msra.mxu0 0.0
  %1280 = vmatprep.subr.mxu0 0.0
  %1281 = vmatpush2.msra.mxu0 0.0
  %1282 = vmatprep.subr.mxu0 0.0
  %1283 = vmatpush2.msra.mxu0 0.0
  %1284 = vmatprep.subr.mxu0 0.0
  %1285 = vmatpush2.msra.mxu0 0.0
  %1286 = vmatprep.subr.mxu0 0.0
  %1287 = vmatpush2.msra.mxu0 0.0
  %1288 = vmatprep.subr.mxu0 0.0
  %1289 = vmatpush2.msra.mxu0 0.0
  %1290 = vmatprep.subr.mxu0 0.0
  %1291 = vmatpush2.msra.mxu0 0.0
  %1292 = vmatprep.subr.mxu0 0.0
  %1293 = vmatpush2.msra.mxu0 0.0
  %1294 = vmatprep.subr.mxu0 0.0
  %1295 = vmatpush2.msra.mxu0 0.0
  %1296 = vmatprep.subr.mxu0 0.0
  %1297 = vmatpush2.msra.mxu0 0.0
  %1298 = vmatprep.subr.mxu0 0.0
  %1299 = vmatpush2.msra.mxu0 0.0
  %1300 = vmatprep.subr.mxu0 0.0
  %1301 = vmatpush2.msra.mxu0 0.0
  %1302 = vmatprep.subr.mxu0 0.0
  %1303 = vmatpush2.msra.mxu0 0.0
  %1304 = vmatprep.subr.mxu0 0.0
  %1305 = vmatpush2.msra.mxu0 0.0
  %1306 = vmatprep.subr.mxu0 0.0
  %1307 = vmatpush2.msra.mxu0 0.0
  %1308 = vmatprep.subr.mxu0 0.0
  %1309 = vmatpush2.msra.mxu0 0.0
  %1310 = vmatprep.mubr.f32.mxu0 0.0
  %1311 = vmatmul.mubr.f32.gmra.mxu0 %v1235
  %v1312 = vpop.f32.mrf.mxu0
  %v1313 = vadd.f32 0.0, %v1312
  %v1314 = vpop.f32.mrf.mxu0
  %1315 = vmatprep.mubr.f32.mxu0 0.0
  %1316 = vmatmul.mubr.f32.gmra.mxu0 %v1238
  %v1317 = vpop.f32.mrf.mxu0
  %v1318 = vadd.f32 0.0, %v1317
  %v1319 = vpop.f32.mrf.mxu0
  %1320 = vmatprep.mubr.f32.mxu0 0.0
  %1321 = vmatmul.mubr.f32.gmra.mxu0 %v1241
  %v1322 = vpop.f32.mrf.mxu0
  %v1323 = vadd.f32 0.0, %v1322
  %v1324 = vpop.f32.mrf.mxu0
  %1325 = vmatprep.mubr.f32.mxu0 0.0
  %1326 = vmatmul.mubr.f32.gmra.mxu0 %v1244
  %v1327 = vpop.f32.mrf.mxu0
  %v1328 = vadd.f32 0.0, %v1327
  %v1329 = vpop.f32.mrf.mxu0
  %1330 = vdwg.mxu0
  %s1331 = scalar_lea.vmem %s5, 256
  %v1332 = vld [vmem:[%s1331] sm:$0xff]
  %v1333 = vld [vmem:[%s1331 + $0x8] sm:$0xff]
  %v1334 = vld [vmem:[%s1331 + $0x10] sm:$0xff]
  %v1335 = vld [vmem:[%s1331 + $0x18] sm:$0xff]
  %v1336 = vld [vmem:[%s1331 + $0x20] sm:$0xff]
  %v1337 = vld [vmem:[%s1331 + $0x28] sm:$0xff]
  %v1338 = vld [vmem:[%s1331 + $0x30] sm:$0xff]
  %v1339 = vld [vmem:[%s1331 + $0x38] sm:$0xff]
  %v1340 = vld [vmem:[%s1331 + $0x40] sm:$0xff]
  %v1341 = vld [vmem:[%s1331 + $0x48] sm:$0xff]
  %v1342 = vld [vmem:[%s1331 + $0x50] sm:$0xff]
  %v1343 = vld [vmem:[%s1331 + $0x58] sm:$0xff]
  %v1344 = vld [vmem:[%s1331 + $0x60] sm:$0xff]
  %v1345 = vld [vmem:[%s1331 + $0x68] sm:$0xff]
  %v1346 = vld [vmem:[%s1331 + $0x70] sm:$0xff]
  %v1347 = vld [vmem:[%s1331 + $0x78] sm:$0xff]
  %1348 = vmatprep.subr.mxu0 0.0
  %1349 = vmatpush1.msra.mxu0 %v1347
  %1350 = vmatprep.subr.mxu0 0.0
  %1351 = vmatpush1.msra.mxu0 %v1346
  %1352 = vmatprep.subr.mxu0 0.0
  %1353 = vmatpush1.msra.mxu0 %v1345
  %1354 = vmatprep.subr.mxu0 0.0
  %1355 = vmatpush1.msra.mxu0 %v1344
  %1356 = vmatprep.subr.mxu0 0.0
  %1357 = vmatpush1.msra.mxu0 %v1343
  %1358 = vmatprep.subr.mxu0 0.0
  %1359 = vmatpush1.msra.mxu0 %v1342
  %1360 = vmatprep.subr.mxu0 0.0
  %1361 = vmatpush1.msra.mxu0 %v1341
  %1362 = vmatprep.subr.mxu0 0.0
  %1363 = vmatpush1.msra.mxu0 %v1340
  %1364 = vmatprep.subr.mxu0 0.0
  %1365 = vmatpush1.msra.mxu0 %v1339
  %1366 = vmatprep.subr.mxu0 0.0
  %1367 = vmatpush1.msra.mxu0 %v1338
  %1368 = vmatprep.subr.mxu0 0.0
  %1369 = vmatpush1.msra.mxu0 %v1337
  %1370 = vmatprep.subr.mxu0 0.0
  %1371 = vmatpush1.msra.mxu0 %v1336
  %1372 = vmatprep.subr.mxu0 0.0
  %1373 = vmatpush1.msra.mxu0 %v1335
  %1374 = vmatprep.subr.mxu0 0.0
  %1375 = vmatpush1.msra.mxu0 %v1334
  %1376 = vmatprep.subr.mxu0 0.0
  %1377 = vmatpush1.msra.mxu0 %v1333
  %1378 = vmatprep.subr.mxu0 0.0
  %1379 = vmatpush1.msra.mxu0 %v1332
  %1380 = vmatprep.subr.mxu0 0.0
  %1381 = vmatpush2.msra.mxu0 0.0
  %1382 = vmatprep.subr.mxu0 0.0
  %1383 = vmatpush2.msra.mxu0 0.0
  %1384 = vmatprep.subr.mxu0 0.0
  %1385 = vmatpush2.msra.mxu0 0.0
  %1386 = vmatprep.subr.mxu0 0.0
  %1387 = vmatpush2.msra.mxu0 0.0
  %1388 = vmatprep.subr.mxu0 0.0
  %1389 = vmatpush2.msra.mxu0 0.0
  %1390 = vmatprep.subr.mxu0 0.0
  %1391 = vmatpush2.msra.mxu0 0.0
  %1392 = vmatprep.subr.mxu0 0.0
  %1393 = vmatpush2.msra.mxu0 0.0
  %1394 = vmatprep.subr.mxu0 0.0
  %1395 = vmatpush2.msra.mxu0 0.0
  %1396 = vmatprep.subr.mxu0 0.0
  %1397 = vmatpush2.msra.mxu0 0.0
  %1398 = vmatprep.subr.mxu0 0.0
  %1399 = vmatpush2.msra.mxu0 0.0
  %1400 = vmatprep.subr.mxu0 0.0
  %1401 = vmatpush2.msra.mxu0 0.0
  %1402 = vmatprep.subr.mxu0 0.0
  %1403 = vmatpush2.msra.mxu0 0.0
  %1404 = vmatprep.subr.mxu0 0.0
  %1405 = vmatpush2.msra.mxu0 0.0
  %1406 = vmatprep.subr.mxu0 0.0
  %1407 = vmatpush2.msra.mxu0 0.0
  %1408 = vmatprep.subr.mxu0 0.0
  %1409 = vmatpush2.msra.mxu0 0.0
  %1410 = vmatprep.subr.mxu0 0.0
  %1411 = vmatpush2.msra.mxu0 0.0
  %1412 = vmatprep.mubr.f32.mxu0 0.0
  %1413 = vmatmul.mubr.f32.gmra.mxu0 %v1313
  %v1414 = vpop.f32.mrf.mxu0
  %v1415 = vadd.f32 0.0, %v1414
  %v1416 = vpop.f32.mrf.mxu0
  %1417 = vmatprep.mubr.f32.mxu0 0.0
  %1418 = vmatmul.mubr.f32.gmra.mxu0 %v1318
  %v1419 = vpop.f32.mrf.mxu0
  %v1420 = vadd.f32 0.0, %v1419
  %v1421 = vpop.f32.mrf.mxu0
  %1422 = vmatprep.mubr.f32.mxu0 0.0
  %1423 = vmatmul.mubr.f32.gmra.mxu0 %v1323
  %v1424 = vpop.f32.mrf.mxu0
  %v1425 = vadd.f32 0.0, %v1424
  %v1426 = vpop.f32.mrf.mxu0
  %1427 = vmatprep.mubr.f32.mxu0 0.0
  %1428 = vmatmul.mubr.f32.gmra.mxu0 %v1328
  %v1429 = vpop.f32.mrf.mxu0
  %v1430 = vadd.f32 0.0, %v1429
  %v1431 = vpop.f32.mrf.mxu0
  %1432 = vdwg.mxu0
  %v1433 = vadd.f32 %v1211, %v1415
  %v1434 = vadd.f32 %v1216, %v1420
  %v1435 = vadd.f32 %v1221, %v1425
  %v1436 = vadd.f32 %v1226, %v1430
  %v1437 = vld [vmem:[%s6] sm:$0x1]
  %v1439 = vlaneseq
  %v1440 = vshrl.u32 %v1439, 7
  %v1441 = vsub.s32 0, %v1440
  %v1442 = vrot.slane %v1437, %v1441
  %v1444 = vadd.f32 %v1433, %v1442
  %v1445 = vadd.f32 %v1434, %v1442
  %v1446 = vadd.f32 %v1435, %v1442
  %v1447 = vadd.f32 %v1436, %v1442
  %v1448 = vmax.f32 %v1444, 0.0
  %v1449 = vmax.f32 %v1445, 0.0
  %v1450 = vmax.f32 %v1446, 0.0
  %v1451 = vmax.f32 %v1447, 0.0
  %v1452 = vld [vmem:[%s7] sm:$0xff]
  %v1453 = vld [vmem:[%s7 + $0x8] sm:$0xff]
  %v1454 = vld [vmem:[%s7 + $0x10] sm:$0xff]
  %v1455 = vld [vmem:[%s7 + $0x18] sm:$0xff]
  %v1456 = vld [vmem:[%s7 + $0x20] sm:$0xff]
  %v1457 = vld [vmem:[%s7 + $0x28] sm:$0xff]
  %v1458 = vld [vmem:[%s7 + $0x30] sm:$0xff]
  %v1459 = vld [vmem:[%s7 + $0x38] sm:$0xff]
  %v1460 = vld [vmem:[%s8] sm:$0x1]
  %v1462 = vlaneseq
  %v1463 = vshrl.u32 %v1462, 7
  %v1464 = vsub.s32 0, %v1463
  %v1465 = vrot.slane %v1460, %v1464
  %v1468 = vsel %vm826, %v1448, 0
  %v1471 = vsel %vm826, %v1449, 0
  %v1474 = vsel %vm826, %v1450, 0
  %v1477 = vsel %vm826, %v1451, 0
  %1479 = vmatprep.subr.mxu0 0.0
  %1480 = vmatpush1.msra.mxu0 0.0
  %1481 = vmatprep.subr.mxu0 0.0
  %1482 = vmatpush1.msra.mxu0 0.0
  %1483 = vmatprep.subr.mxu0 0.0
  %1484 = vmatpush1.msra.mxu0 0.0
  %1485 = vmatprep.subr.mxu0 0.0
  %1486 = vmatpush1.msra.mxu0 0.0
  %1487 = vmatprep.subr.mxu0 0.0
  %1488 = vmatpush1.msra.mxu0 0.0
  %1489 = vmatprep.subr.mxu0 0.0
  %1490 = vmatpush1.msra.mxu0 0.0
  %1491 = vmatprep.subr.mxu0 0.0
  %1492 = vmatpush1.msra.mxu0 0.0
  %1493 = vmatprep.subr.mxu0 0.0
  %1494 = vmatpush1.msra.mxu0 0.0
  %1495 = vmatprep.subr.mxu0 0.0
  %1496 = vmatpush1.msra.mxu0 %v1459
  %1497 = vmatprep.subr.mxu0 0.0
  %1498 = vmatpush1.msra.mxu0 %v1458
  %1499 = vmatprep.subr.mxu0 0.0
  %1500 = vmatpush1.msra.mxu0 %v1457
  %1501 = vmatprep.subr.mxu0 0.0
  %1502 = vmatpush1.msra.mxu0 %v1456
  %1503 = vmatprep.subr.mxu0 0.0
  %1504 = vmatpush1.msra.mxu0 %v1455
  %1505 = vmatprep.subr.mxu0 0.0
  %1506 = vmatpush1.msra.mxu0 %v1454
  %1507 = vmatprep.subr.mxu0 0.0
  %1508 = vmatpush1.msra.mxu0 %v1453
  %1509 = vmatprep.subr.mxu0 0.0
  %1510 = vmatpush1.msra.mxu0 %v1452
  %1511 = vmatprep.subr.mxu0 0.0
  %1512 = vmatpush2.msra.mxu0 0.0
  %1513 = vmatprep.subr.mxu0 0.0
  %1514 = vmatpush2.msra.mxu0 0.0
  %1515 = vmatprep.subr.mxu0 0.0
  %1516 = vmatpush2.msra.mxu0 0.0
  %1517 = vmatprep.subr.mxu0 0.0
  %1518 = vmatpush2.msra.mxu0 0.0
  %1519 = vmatprep.subr.mxu0 0.0
  %1520 = vmatpush2.msra.mxu0 0.0
  %1521 = vmatprep.subr.mxu0 0.0
  %1522 = vmatpush2.msra.mxu0 0.0
  %1523 = vmatprep.subr.mxu0 0.0
  %1524 = vmatpush2.msra.mxu0 0.0
  %1525 = vmatprep.subr.mxu0 0.0
  %1526 = vmatpush2.msra.mxu0 0.0
  %1527 = vmatprep.subr.mxu0 0.0
  %1528 = vmatpush2.msra.mxu0 0.0
  %1529 = vmatprep.subr.mxu0 0.0
  %1530 = vmatpush2.msra.mxu0 0.0
  %1531 = vmatprep.subr.mxu0 0.0
  %1532 = vmatpush2.msra.mxu0 0.0
  %1533 = vmatprep.subr.mxu0 0.0
  %1534 = vmatpush2.msra.mxu0 0.0
  %1535 = vmatprep.subr.mxu0 0.0
  %1536 = vmatpush2.msra.mxu0 0.0
  %1537 = vmatprep.subr.mxu0 0.0
  %1538 = vmatpush2.msra.mxu0 0.0
  %1539 = vmatprep.subr.mxu0 0.0
  %1540 = vmatpush2.msra.mxu0 0.0
  %1541 = vmatprep.subr.mxu0 0.0
  %1542 = vmatpush2.msra.mxu0 0.0
  %1543 = vmatprep.mubr.f32.mxu0 0.0
  %1544 = vmatmul.mubr.f32.gmra.mxu0 %v1468
  %v1545 = vpop.f32.mrf.mxu0
  %v1546 = vadd.f32 %v1465, %v1545
  %v1547 = vpop.f32.mrf.mxu0
  %1548 = vmatprep.mubr.f32.mxu0 0.0
  %1549 = vmatmul.mubr.f32.gmra.mxu0 %v1471
  %v1550 = vpop.f32.mrf.mxu0
  %v1551 = vadd.f32 %v1465, %v1550
  %v1552 = vpop.f32.mrf.mxu0
  %1553 = vmatprep.mubr.f32.mxu0 0.0
  %1554 = vmatmul.mubr.f32.gmra.mxu0 %v1474
  %v1555 = vpop.f32.mrf.mxu0
  %v1556 = vadd.f32 %v1465, %v1555
  %v1557 = vpop.f32.mrf.mxu0
  %1558 = vmatprep.mubr.f32.mxu0 0.0
  %1559 = vmatmul.mubr.f32.gmra.mxu0 %v1477
  %v1560 = vpop.f32.mrf.mxu0
  %v1561 = vadd.f32 %v1465, %v1560
  %v1562 = vpop.f32.mrf.mxu0
  %1563 = vdwg.mxu0
  %v1564 = vxor.u32 %v1546, 2147483648
  %v1565 = vxor.u32 %v1551, 2147483648
  %v1566 = vxor.u32 %v1556, 2147483648
  %v1567 = vxor.u32 %v1561, 2147483648
  %v1568 = vmul.f32 %v1564, 1.442695
  %v1569 = vpow.pop %v1568
  %v1570 = vmul.f32 %v1565, 1.442695
  %v1571 = vpow.pop %v1570
  %v1572 = vmul.f32 %v1566, 1.442695
  %v1573 = vpow.pop %v1572
  %v1574 = vmul.f32 %v1567, 1.442695
  %v1575 = vpow.pop %v1574
  %v1576 = vadd.f32 %v1569, 1.0
  %v1577 = vadd.f32 %v1571, 1.0
  %v1578 = vadd.f32 %v1573, 1.0
  %v1579 = vadd.f32 %v1575, 1.0
  %v1580 = vrcp.pop %v1576
  %v1581 = vmul.f32 1.0, %v1580
  %v1582 = vrcp.pop %v1577
  %v1583 = vmul.f32 1.0, %v1582
  %v1584 = vrcp.pop %v1578
  %v1585 = vmul.f32 1.0, %v1584
  %v1586 = vrcp.pop %v1579
  %v1587 = vmul.f32 1.0, %v1586
  %vm1588 = vcmask 130048
  %1589 = vst.msk [vmem:[%s9] sm:$0xff] %vm1588, %v1581
  %1590 = vst.msk [vmem:[%s9 + $0x8] sm:$0xff] %vm1588, %v1583
  %1591 = vst.msk [vmem:[%s9 + $0x10] sm:$0xff] %vm1588, %v1585
  %1592 = vst.msk [vmem:[%s9 + $0x18] sm:$0xff] %vm1588, %v1587
  // Predicated region
  $region38: #{_lambda_.2} parent=0 // pred_check
    _
  $region39: #{_lambda_.2} parent=0 // pred_check_branch
    %1594 = sbr.rel (0) target = $region41
  $region40: #{_lambda_.2} parent=0 // pred_region
    _
  $region41: #{_lambda_.2} parent=0 // pred_fallthru
    _
  // Predicated region
  $region42: #{_lambda_.2} parent=0 // pred_check
    _
  $region43: #{_lambda_.2} parent=0 // pred_check_branch
    %1596 = sbr.rel (0) target = $region45
  $region44: #{_lambda_.2} parent=0 // pred_region
    _
  $region45: #{_lambda_.2} parent=0 // pred_fallthru
    _

// kernel: tile.48
$region0: #{tile.48}
  #allocation0 [shape = 's32[1]{0}', space=sflag, size = 0x4, scoped, tag = 'scoped memory for tile.48']
  %s0 = inlined_call_operand.vmem [shape: f32[16], index: 0, kind: input, shape index: {}]
  %s1 = inlined_call_operand.vmem [shape: f32[4,16], index: 1, kind: output, shape index: {}]
  // Predicated region
  $region2: #{tile.48} parent=0 // pred_check
    _
  $region3: #{tile.48} parent=0 // pred_check_branch
    %3 = sbr.rel (0) target = $region5
  $region4: #{tile.48} parent=0 // pred_region
    _
  $region5: #{tile.48} parent=0 // pred_fallthru
    _
  %v4 = vld [vmem:[%s0] ss:$0 sm:$0xff]
  %5 = vst [vmem:[%s1] sm:$0xf] %v4

// kernel: tile.49
$region0: #{tile.49}
  %s0 = inlined_call_operand.vmem [shape: f32[4,16], index: 0, kind: input, shape index: {}]
  %s1 = inlined_call_operand.vmem [shape: f32[1,64], index: 1, kind: output, shape index: {}]
  $region1: #{tile.49} parent=0
    #allocation0 [shape = 'u8[4096]{0}', space=vmem, size = 0x1000, scoped, tag = 'scoped mem for output reshape']
    #allocation1 [shape = 'u8[4096]{0}', space=vmem, size = 0x1000, scoped, tag = 'scoped mem for input reshape']
    %s3 = sshll.u32 1, 4
    %s4 = ssub.s32 %s3, 1
    %v5 = vld [vmem:[%s0] sm:%s4]
    %6 = vst [vmem:[#allocation1] sm:%s4] %v5
    %v7 = vld [vmem:[#allocation1] sm:$0x1]
    %vm8 = vcmask 130048
    %9 = vst.msk [vmem:[#allocation0] sm:$0x1] %vm8, %v7
    %s10 = scalar_lea.vmem [#allocation1], 3
    %v11 = vld [vmem:[%s10] sm:$0x1]
    %12 = vrot.lane.b32.xlu0 %v11, 48
    %v13 = vpop.permute.xlu0 %12
    %vm14 = vcmask 523648
    %15 = vst.msk [vmem:[#allocation0] sm:$0x1] %vm14, %v13
    %s16 = scalar_lea.vmem [#allocation1], 2
    %v17 = vld [vmem:[%s16] sm:$0x1]
    %18 = vrot.lane.b32.xlu0 %v17, 32
    %v19 = vpop.permute.xlu0 %18
    %vm20 = vcmask 392448
    %21 = vst.msk [vmem:[#allocation0] sm:$0x1] %vm20, %v19
    %s22 = scalar_lea.vmem [#allocation1], 1
    %v23 = vld [vmem:[%s22] sm:$0x1]
    %24 = vrot.lane.b32.xlu0 %v23, 16
    %v25 = vpop.permute.xlu0 %24
    %vm26 = vcmask 261248
    %27 = vst.msk [vmem:[#allocation0] sm:$0x1] %vm26, %v25
    %s29 = sshll.u32 1, 1
    %s30 = ssub.s32 %s29, 1
    %v32 = vld [vmem:[#allocation0] sm:%s30]
    %s33 = sshll.u32 1, 1
    %s34 = ssub.s32 %s33, 1
    %35 = vst [vmem:[%s1] sm:%s34] %v32

// kernel: _lambda_.3
$region0: #{_lambda_.3}
  #allocation0 [shape = 'u32[]', space=smem, size = 0x4, offset = 0x4, fixed_abs, tag = 'smem constant byte address 0x4 - core index']
  #allocation1 [shape = 'u32[144,128]{1,0:T(1,128)}', space=vmem, size = 0x12000, scoped, tag = 'internal scratch']
  %s0 = inlined_call_operand.vmem [shape: f32[32,16], index: 0, kind: input, shape index: {}]
  %s1 = inlined_call_operand.vmem [shape: f32[3,16,32], index: 1, kind: input, shape index: {}]
  %s2 = inlined_call_operand.vmem [shape: f32[3,16,64], index: 2, kind: input, shape index: {}]
  %s3 = inlined_call_operand.vmem [shape: f32[1,64], index: 3, kind: input, shape index: {}]
  %s4 = inlined_call_operand.vmem [shape: f32[3,8,16], index: 4, kind: input, shape index: {}]
  %s5 = inlined_call_operand.vmem [shape: f32[3,64,64], index: 5, kind: input, shape index: {}]
  %s6 = inlined_call_operand.vmem [shape: f32[1,64], index: 6, kind: input, shape index: {}]
  %s7 = inlined_call_operand.vmem [shape: f32[2,8], index: 7, kind: input, shape index: {}]
  %s8 = inlined_call_operand.vmem [shape: f32[64,16], index: 8, kind: input, shape index: {}]
  %s9 = inlined_call_operand.vmem [shape: f32[16,8], index: 9, kind: input, shape index: {}]
  %s10 = inlined_call_operand.vmem [shape: f32[16,8], index: 10, kind: input, shape index: {}]
  %s11 = inlined_call_operand.vmem [shape: f32[8,1], index: 11, kind: input, shape index: {}]
  %s12 = inlined_call_operand.vmem [shape: f32[16,2], index: 12, kind: input, shape index: {}]
  %s13 = inlined_call_operand.vmem [shape: f32[1,2], index: 13, kind: input, shape index: {}]
  %s14 = inlined_call_operand.vmem [shape: f32[1,2], index: 14, kind: output, shape index: {}]
  %s15 = sld [smem:[#allocation0]]
  $region66: #{_lambda_.3} parent=0
    _
  %s17 = ssub.s32 1, %s15
  %s18 = scalar_select 0, %s17, %s15
  // Predicated region
  $region2: #{_lambda_.3} parent=0 // pred_check
    _
  $region3: #{_lambda_.3} parent=0 // pred_check_branch
    %20 = sbr.rel (0) target = $region5
  $region4: #{_lambda_.3} parent=0 // pred_region
    _
  $region5: #{_lambda_.3} parent=0 // pred_fallthru
    _
  // Predicated region
  $region6: #{_lambda_.3} parent=0 // pred_check
    _
  $region7: #{_lambda_.3} parent=0 // pred_check_branch
    %22 = sbr.rel (0) target = $region9
  $region8: #{_lambda_.3} parent=0 // pred_region
    _
  $region9: #{_lambda_.3} parent=0 // pred_fallthru
    _
  // Predicated region
  $region10: #{_lambda_.3} parent=0 // pred_check
    _
  $region11: #{_lambda_.3} parent=0 // pred_check_branch
    %24 = sbr.rel (0) target = $region13
  $region12: #{_lambda_.3} parent=0 // pred_region
    _
  $region13: #{_lambda_.3} parent=0 // pred_fallthru
    _
  // Predicated region
  $region14: #{_lambda_.3} parent=0 // pred_check
    _
  $region15: #{_lambda_.3} parent=0 // pred_check_branch
    %26 = sbr.rel (0) target = $region17
  $region16: #{_lambda_.3} parent=0 // pred_region
    _
  $region17: #{_lambda_.3} parent=0 // pred_fallthru
    _
  // Predicated region
  $region18: #{_lambda_.3} parent=0 // pred_check
    _
  $region19: #{_lambda_.3} parent=0 // pred_check_branch
    %28 = sbr.rel (0) target = $region21
  $region20: #{_lambda_.3} parent=0 // pred_region
    _
  $region21: #{_lambda_.3} parent=0 // pred_fallthru
    _
  // Predicated region
  $region22: #{_lambda_.3} parent=0 // pred_check
    _
  $region23: #{_lambda_.3} parent=0 // pred_check_branch
    %30 = sbr.rel (0) target = $region25
  $region24: #{_lambda_.3} parent=0 // pred_region
    _
  $region25: #{_lambda_.3} parent=0 // pred_fallthru
    _
  // Predicated region
  $region26: #{_lambda_.3} parent=0 // pred_check
    _
  $region27: #{_lambda_.3} parent=0 // pred_check_branch
    %32 = sbr.rel (0) target = $region29
  $region28: #{_lambda_.3} parent=0 // pred_region
    _
  $region29: #{_lambda_.3} parent=0 // pred_fallthru
    _
  // Predicated region
  $region30: #{_lambda_.3} parent=0 // pred_check
    _
  $region31: #{_lambda_.3} parent=0 // pred_check_branch
    %34 = sbr.rel (0) target = $region33
  $region32: #{_lambda_.3} parent=0 // pred_region
    _
  $region33: #{_lambda_.3} parent=0 // pred_fallthru
    _
  // Predicated region
  $region34: #{_lambda_.3} parent=0 // pred_check
    _
  $region35: #{_lambda_.3} parent=0 // pred_check_branch
    %36 = sbr.rel (0) target = $region37
  $region36: #{_lambda_.3} parent=0 // pred_region
    _
  $region37: #{_lambda_.3} parent=0 // pred_fallthru
    _
  // Predicated region
  $region38: #{_lambda_.3} parent=0 // pred_check
    _
  $region39: #{_lambda_.3} parent=0 // pred_check_branch
    %38 = sbr.rel (0) target = $region41
  $region40: #{_lambda_.3} parent=0 // pred_region
    _
  $region41: #{_lambda_.3} parent=0 // pred_fallthru
    _
  // Predicated region
  $region42: #{_lambda_.3} parent=0 // pred_check
    _
  $region43: #{_lambda_.3} parent=0 // pred_check_branch
    %40 = sbr.rel (0) target = $region45
  $region44: #{_lambda_.3} parent=0 // pred_region
    _
  $region45: #{_lambda_.3} parent=0 // pred_fallthru
    _
  // Predicated region
  $region46: #{_lambda_.3} parent=0 // pred_check
    _
  $region47: #{_lambda_.3} parent=0 // pred_check_branch
    %42 = sbr.rel (0) target = $region49
  $region48: #{_lambda_.3} parent=0 // pred_region
    _
  $region49: #{_lambda_.3} parent=0 // pred_fallthru
    _
  // Predicated region
  $region50: #{_lambda_.3} parent=0 // pred_check
    _
  $region51: #{_lambda_.3} parent=0 // pred_check_branch
    %44 = sbr.rel (0) target = $region53
  $region52: #{_lambda_.3} parent=0 // pred_region
    _
  $region53: #{_lambda_.3} parent=0 // pred_fallthru
    _
  // Predicated region
  $region54: #{_lambda_.3} parent=0 // pred_check
    _
  $region55: #{_lambda_.3} parent=0 // pred_check_branch
    %46 = sbr.rel (0) target = $region57
  $region56: #{_lambda_.3} parent=0 // pred_region
    _
  $region57: #{_lambda_.3} parent=0 // pred_fallthru
    _
  %v47 = vld [vmem:[%s0] sm:$0xff]
  %v48 = vld [vmem:[%s0 + $0x8] sm:$0xff]
  %v49 = vld [vmem:[%s0 + $0x10] sm:$0xff]
  %v50 = vld [vmem:[%s0 + $0x18] sm:$0xff]
  %v51 = vld [vmem:[%s1] sm:$0xff]
  %v52 = vld [vmem:[%s1 + $0x8] sm:$0xff]
  %vm53 = vcmask 261120
  %v55 = vsel %vm53, %v51, 0
  %v58 = vsel %vm53, %v52, 0
  %60 = vmatprep.subr.mxu0 0.0
  %61 = vmatpush1.msra.mxu0 0.0
  %62 = vmatprep.subr.mxu0 0.0
  %63 = vmatpush1.msra.mxu0 0.0
  %64 = vmatprep.subr.mxu0 0.0
  %65 = vmatpush1.msra.mxu0 0.0
  %66 = vmatprep.subr.mxu0 0.0
  %67 = vmatpush1.msra.mxu0 0.0
  %68 = vmatprep.subr.mxu0 0.0
  %69 = vmatpush1.msra.mxu0 0.0
  %70 = vmatprep.subr.mxu0 0.0
  %71 = vmatpush1.msra.mxu0 0.0
  %72 = vmatprep.subr.mxu0 0.0
  %73 = vmatpush1.msra.mxu0 0.0
  %74 = vmatprep.subr.mxu0 0.0
  %75 = vmatpush1.msra.mxu0 0.0
  %76 = vmatprep.subr.mxu0 0.0
  %77 = vmatpush1.msra.mxu0 0.0
  %78 = vmatprep.subr.mxu0 0.0
  %79 = vmatpush1.msra.mxu0 0.0
  %80 = vmatprep.subr.mxu0 0.0
  %81 = vmatpush1.msra.mxu0 0.0
  %82 = vmatprep.subr.mxu0 0.0
  %83 = vmatpush1.msra.mxu0 0.0
  %84 = vmatprep.subr.mxu0 0.0
  %85 = vmatpush1.msra.mxu0 %v50
  %86 = vmatprep.subr.mxu0 0.0
  %87 = vmatpush1.msra.mxu0 %v49
  %88 = vmatprep.subr.mxu0 0.0
  %89 = vmatpush1.msra.mxu0 %v48
  %90 = vmatprep.subr.mxu0 0.0
  %91 = vmatpush1.msra.mxu0 %v47
  %92 = vmatprep.subr.mxu0 0.0
  %93 = vmatpush2.msra.mxu0 0.0
  %94 = vmatprep.subr.mxu0 0.0
  %95 = vmatpush2.msra.mxu0 0.0
  %96 = vmatprep.subr.mxu0 0.0
  %97 = vmatpush2.msra.mxu0 0.0
  %98 = vmatprep.subr.mxu0 0.0
  %99 = vmatpush2.msra.mxu0 0.0
  %100 = vmatprep.subr.mxu0 0.0
  %101 = vmatpush2.msra.mxu0 0.0
  %102 = vmatprep.subr.mxu0 0.0
  %103 = vmatpush2.msra.mxu0 0.0
  %104 = vmatprep.subr.mxu0 0.0
  %105 = vmatpush2.msra.mxu0 0.0
  %106 = vmatprep.subr.mxu0 0.0
  %107 = vmatpush2.msra.mxu0 0.0
  %108 = vmatprep.subr.mxu0 0.0
  %109 = vmatpush2.msra.mxu0 0.0
  %110 = vmatprep.subr.mxu0 0.0
  %111 = vmatpush2.msra.mxu0 0.0
  %112 = vmatprep.subr.mxu0 0.0
  %113 = vmatpush2.msra.mxu0 0.0
  %114 = vmatprep.subr.mxu0 0.0
  %115 = vmatpush2.msra.mxu0 0.0
  %116 = vmatprep.subr.mxu0 0.0
  %117 = vmatpush2.msra.mxu0 0.0
  %118 = vmatprep.subr.mxu0 0.0
  %119 = vmatpush2.msra.mxu0 0.0
  %120 = vmatprep.subr.mxu0 0.0
  %121 = vmatpush2.msra.mxu0 0.0
  %122 = vmatprep.subr.mxu0 0.0
  %123 = vmatpush2.msra.mxu0 0.0
  %124 = vmatprep.mubr.f32.mxu0 0.0
  %125 = vmatmul.mubr.f32.gmra.mxu0 %v55
  %v126 = vpop.f32.mrf.mxu0
  %v127 = vadd.f32 0.0, %v126
  %v128 = vpop.f32.mrf.mxu0
  %129 = vmatprep.mubr.f32.mxu0 0.0
  %130 = vmatmul.mubr.f32.gmra.mxu0 %v58
  %v131 = vpop.f32.mrf.mxu0
  %v132 = vadd.f32 0.0, %v131
  %v133 = vpop.f32.mrf.mxu0
  %134 = vdwg.mxu0
  %v135 = vld [vmem:[%s2] sm:$0xff]
  %v136 = vld [vmem:[%s2 + $0x8] sm:$0xff]
  %s137 = scalar_lea.vmem %s1, 16
  %v138 = vld [vmem:[%s137] sm:$0xff]
  %v139 = vld [vmem:[%s137 + $0x8] sm:$0xff]
  %v141 = vsel %vm53, %v138, 0
  %v144 = vsel %vm53, %v139, 0
  %146 = vmatprep.subr.mxu0 0.0
  %147 = vmatpush1.msra.mxu0 0.0
  %148 = vmatprep.subr.mxu0 0.0
  %149 = vmatpush1.msra.mxu0 0.0
  %150 = vmatprep.subr.mxu0 0.0
  %151 = vmatpush1.msra.mxu0 0.0
  %152 = vmatprep.subr.mxu0 0.0
  %153 = vmatpush1.msra.mxu0 0.0
  %154 = vmatprep.subr.mxu0 0.0
  %155 = vmatpush1.msra.mxu0 0.0
  %156 = vmatprep.subr.mxu0 0.0
  %157 = vmatpush1.msra.mxu0 0.0
  %158 = vmatprep.subr.mxu0 0.0
  %159 = vmatpush1.msra.mxu0 0.0
  %160 = vmatprep.subr.mxu0 0.0
  %161 = vmatpush1.msra.mxu0 0.0
  %162 = vmatprep.subr.mxu0 0.0
  %163 = vmatpush1.msra.mxu0 0.0
  %164 = vmatprep.subr.mxu0 0.0
  %165 = vmatpush1.msra.mxu0 0.0
  %166 = vmatprep.subr.mxu0 0.0
  %167 = vmatpush1.msra.mxu0 0.0
  %168 = vmatprep.subr.mxu0 0.0
  %169 = vmatpush1.msra.mxu0 0.0
  %170 = vmatprep.subr.mxu0 0.0
  %171 = vmatpush1.msra.mxu0 %v50
  %172 = vmatprep.subr.mxu0 0.0
  %173 = vmatpush1.msra.mxu0 %v49
  %174 = vmatprep.subr.mxu0 0.0
  %175 = vmatpush1.msra.mxu0 %v48
  %176 = vmatprep.subr.mxu0 0.0
  %177 = vmatpush1.msra.mxu0 %v47
  %178 = vmatprep.subr.mxu0 0.0
  %179 = vmatpush2.msra.mxu0 0.0
  %180 = vmatprep.subr.mxu0 0.0
  %181 = vmatpush2.msra.mxu0 0.0
  %182 = vmatprep.subr.mxu0 0.0
  %183 = vmatpush2.msra.mxu0 0.0
  %184 = vmatprep.subr.mxu0 0.0
  %185 = vmatpush2.msra.mxu0 0.0
  %186 = vmatprep.subr.mxu0 0.0
  %187 = vmatpush2.msra.mxu0 0.0
  %188 = vmatprep.subr.mxu0 0.0
  %189 = vmatpush2.msra.mxu0 0.0
  %190 = vmatprep.subr.mxu0 0.0
  %191 = vmatpush2.msra.mxu0 0.0
  %192 = vmatprep.subr.mxu0 0.0
  %193 = vmatpush2.msra.mxu0 0.0
  %194 = vmatprep.subr.mxu0 0.0
  %195 = vmatpush2.msra.mxu0 0.0
  %196 = vmatprep.subr.mxu0 0.0
  %197 = vmatpush2.msra.mxu0 0.0
  %198 = vmatprep.subr.mxu0 0.0
  %199 = vmatpush2.msra.mxu0 0.0
  %200 = vmatprep.subr.mxu0 0.0
  %201 = vmatpush2.msra.mxu0 0.0
  %202 = vmatprep.subr.mxu0 0.0
  %203 = vmatpush2.msra.mxu0 0.0
  %204 = vmatprep.subr.mxu0 0.0
  %205 = vmatpush2.msra.mxu0 0.0
  %206 = vmatprep.subr.mxu0 0.0
  %207 = vmatpush2.msra.mxu0 0.0
  %208 = vmatprep.subr.mxu0 0.0
  %209 = vmatpush2.msra.mxu0 0.0
  %210 = vmatprep.mubr.f32.mxu0 0.0
  %211 = vmatmul.mubr.f32.gmra.mxu0 %v141
  %v212 = vpop.f32.mrf.mxu0
  %v213 = vadd.f32 0.0, %v212
  %v214 = vpop.f32.mrf.mxu0
  %215 = vmatprep.mubr.f32.mxu0 0.0
  %216 = vmatmul.mubr.f32.gmra.mxu0 %v144
  %v217 = vpop.f32.mrf.mxu0
  %v218 = vadd.f32 0.0, %v217
  %v219 = vpop.f32.mrf.mxu0
  %220 = vdwg.mxu0
  %s221 = scalar_lea.vmem %s2, 16
  %v222 = vld [vmem:[%s221] sm:$0xff]
  %v223 = vld [vmem:[%s221 + $0x8] sm:$0xff]
  %vm224 = vcmask 130048
  %v226 = vsel %vm224, %v213, 0
  %v229 = vsel %vm224, %v218, 0
  %231 = vmatprep.subr.mxu0 0.0
  %232 = vmatpush1.msra.mxu0 0.0
  %233 = vmatprep.subr.mxu0 0.0
  %234 = vmatpush1.msra.mxu0 0.0
  %235 = vmatprep.subr.mxu0 0.0
  %236 = vmatpush1.msra.mxu0 0.0
  %237 = vmatprep.subr.mxu0 0.0
  %238 = vmatpush1.msra.mxu0 0.0
  %239 = vmatprep.subr.mxu0 0.0
  %240 = vmatpush1.msra.mxu0 0.0
  %241 = vmatprep.subr.mxu0 0.0
  %242 = vmatpush1.msra.mxu0 0.0
  %243 = vmatprep.subr.mxu0 0.0
  %244 = vmatpush1.msra.mxu0 0.0
  %245 = vmatprep.subr.mxu0 0.0
  %246 = vmatpush1.msra.mxu0 0.0
  %247 = vmatprep.subr.mxu0 0.0
  %248 = vmatpush1.msra.mxu0 0.0
  %249 = vmatprep.subr.mxu0 0.0
  %250 = vmatpush1.msra.mxu0 0.0
  %251 = vmatprep.subr.mxu0 0.0
  %252 = vmatpush1.msra.mxu0 0.0
  %253 = vmatprep.subr.mxu0 0.0
  %254 = vmatpush1.msra.mxu0 0.0
  %255 = vmatprep.subr.mxu0 0.0
  %256 = vmatpush1.msra.mxu0 0.0
  %257 = vmatprep.subr.mxu0 0.0
  %258 = vmatpush1.msra.mxu0 0.0
  %259 = vmatprep.subr.mxu0 0.0
  %260 = vmatpush1.msra.mxu0 %v223
  %261 = vmatprep.subr.mxu0 0.0
  %262 = vmatpush1.msra.mxu0 %v222
  %263 = vmatprep.subr.mxu0 0.0
  %264 = vmatpush2.msra.mxu0 0.0
  %265 = vmatprep.subr.mxu0 0.0
  %266 = vmatpush2.msra.mxu0 0.0
  %267 = vmatprep.subr.mxu0 0.0
  %268 = vmatpush2.msra.mxu0 0.0
  %269 = vmatprep.subr.mxu0 0.0
  %270 = vmatpush2.msra.mxu0 0.0
  %271 = vmatprep.subr.mxu0 0.0
  %272 = vmatpush2.msra.mxu0 0.0
  %273 = vmatprep.subr.mxu0 0.0
  %274 = vmatpush2.msra.mxu0 0.0
  %275 = vmatprep.subr.mxu0 0.0
  %276 = vmatpush2.msra.mxu0 0.0
  %277 = vmatprep.subr.mxu0 0.0
  %278 = vmatpush2.msra.mxu0 0.0
  %279 = vmatprep.subr.mxu0 0.0
  %280 = vmatpush2.msra.mxu0 0.0
  %281 = vmatprep.subr.mxu0 0.0
  %282 = vmatpush2.msra.mxu0 0.0
  %283 = vmatprep.subr.mxu0 0.0
  %284 = vmatpush2.msra.mxu0 0.0
  %285 = vmatprep.subr.mxu0 0.0
  %286 = vmatpush2.msra.mxu0 0.0
  %287 = vmatprep.subr.mxu0 0.0
  %288 = vmatpush2.msra.mxu0 0.0
  %289 = vmatprep.subr.mxu0 0.0
  %290 = vmatpush2.msra.mxu0 0.0
  %291 = vmatprep.subr.mxu0 0.0
  %292 = vmatpush2.msra.mxu0 0.0
  %293 = vmatprep.subr.mxu0 0.0
  %294 = vmatpush2.msra.mxu0 0.0
  %295 = vmatprep.mubr.f32.mxu0 0.0
  %296 = vmatmul.mubr.f32.gmra.mxu0 %v226
  %v297 = vpop.f32.mrf.mxu0
  %v298 = vadd.f32 0.0, %v297
  %v299 = vpop.f32.mrf.mxu0
  %300 = vmatprep.mubr.f32.mxu0 0.0
  %301 = vmatmul.mubr.f32.gmra.mxu0 %v229
  %v302 = vpop.f32.mrf.mxu0
  %v303 = vadd.f32 0.0, %v302
  %v304 = vpop.f32.mrf.mxu0
  %305 = vdwg.mxu0
  %v307 = vsel %vm224, %v127, 0
  %v310 = vsel %vm224, %v132, 0
  %312 = vmatprep.subr.mxu0 0.0
  %313 = vmatpush1.msra.mxu0 0.0
  %314 = vmatprep.subr.mxu0 0.0
  %315 = vmatpush1.msra.mxu0 0.0
  %316 = vmatprep.subr.mxu0 0.0
  %317 = vmatpush1.msra.mxu0 0.0
  %318 = vmatprep.subr.mxu0 0.0
  %319 = vmatpush1.msra.mxu0 0.0
  %320 = vmatprep.subr.mxu0 0.0
  %321 = vmatpush1.msra.mxu0 0.0
  %322 = vmatprep.subr.mxu0 0.0
  %323 = vmatpush1.msra.mxu0 0.0
  %324 = vmatprep.subr.mxu0 0.0
  %325 = vmatpush1.msra.mxu0 0.0
  %326 = vmatprep.subr.mxu0 0.0
  %327 = vmatpush1.msra.mxu0 0.0
  %328 = vmatprep.subr.mxu0 0.0
  %329 = vmatpush1.msra.mxu0 0.0
  %330 = vmatprep.subr.mxu0 0.0
  %331 = vmatpush1.msra.mxu0 0.0
  %332 = vmatprep.subr.mxu0 0.0
  %333 = vmatpush1.msra.mxu0 0.0
  %334 = vmatprep.subr.mxu0 0.0
  %335 = vmatpush1.msra.mxu0 0.0
  %336 = vmatprep.subr.mxu0 0.0
  %337 = vmatpush1.msra.mxu0 0.0
  %338 = vmatprep.subr.mxu0 0.0
  %339 = vmatpush1.msra.mxu0 0.0
  %340 = vmatprep.subr.mxu0 0.0
  %341 = vmatpush1.msra.mxu0 %v136
  %342 = vmatprep.subr.mxu0 0.0
  %343 = vmatpush1.msra.mxu0 %v135
  %344 = vmatprep.subr.mxu0 0.0
  %345 = vmatpush2.msra.mxu0 0.0
  %346 = vmatprep.subr.mxu0 0.0
  %347 = vmatpush2.msra.mxu0 0.0
  %348 = vmatprep.subr.mxu0 0.0
  %349 = vmatpush2.msra.mxu0 0.0
  %350 = vmatprep.subr.mxu0 0.0
  %351 = vmatpush2.msra.mxu0 0.0
  %352 = vmatprep.subr.mxu0 0.0
  %353 = vmatpush2.msra.mxu0 0.0
  %354 = vmatprep.subr.mxu0 0.0
  %355 = vmatpush2.msra.mxu0 0.0
  %356 = vmatprep.subr.mxu0 0.0
  %357 = vmatpush2.msra.mxu0 0.0
  %358 = vmatprep.subr.mxu0 0.0
  %359 = vmatpush2.msra.mxu0 0.0
  %360 = vmatprep.subr.mxu0 0.0
  %361 = vmatpush2.msra.mxu0 0.0
  %362 = vmatprep.subr.mxu0 0.0
  %363 = vmatpush2.msra.mxu0 0.0
  %364 = vmatprep.subr.mxu0 0.0
  %365 = vmatpush2.msra.mxu0 0.0
  %366 = vmatprep.subr.mxu0 0.0
  %367 = vmatpush2.msra.mxu0 0.0
  %368 = vmatprep.subr.mxu0 0.0
  %369 = vmatpush2.msra.mxu0 0.0
  %370 = vmatprep.subr.mxu0 0.0
  %371 = vmatpush2.msra.mxu0 0.0
  %372 = vmatprep.subr.mxu0 0.0
  %373 = vmatpush2.msra.mxu0 0.0
  %374 = vmatprep.subr.mxu0 0.0
  %375 = vmatpush2.msra.mxu0 0.0
  %376 = vmatprep.mubr.f32.mxu0 0.0
  %377 = vmatmul.mubr.f32.gmra.mxu0 %v307
  %v378 = vpop.f32.mrf.mxu0
  %v379 = vadd.f32 %v298, %v378
  %v380 = vpop.f32.mrf.mxu0
  %381 = vmatprep.mubr.f32.mxu0 0.0
  %382 = vmatmul.mubr.f32.gmra.mxu0 %v310
  %v383 = vpop.f32.mrf.mxu0
  %v384 = vadd.f32 %v303, %v383
  %v385 = vpop.f32.mrf.mxu0
  %386 = vdwg.mxu0
  %s387 = scalar_lea.vmem %s1, 32
  %v388 = vld [vmem:[%s387] sm:$0xff]
  %v389 = vld [vmem:[%s387 + $0x8] sm:$0xff]
  %v391 = vsel %vm53, %v388, 0
  %v394 = vsel %vm53, %v389, 0
  %396 = vmatprep.subr.mxu0 0.0
  %397 = vmatpush1.msra.mxu0 0.0
  %398 = vmatprep.subr.mxu0 0.0
  %399 = vmatpush1.msra.mxu0 0.0
  %400 = vmatprep.subr.mxu0 0.0
  %401 = vmatpush1.msra.mxu0 0.0
  %402 = vmatprep.subr.mxu0 0.0
  %403 = vmatpush1.msra.mxu0 0.0
  %404 = vmatprep.subr.mxu0 0.0
  %405 = vmatpush1.msra.mxu0 0.0
  %406 = vmatprep.subr.mxu0 0.0
  %407 = vmatpush1.msra.mxu0 0.0
  %408 = vmatprep.subr.mxu0 0.0
  %409 = vmatpush1.msra.mxu0 0.0
  %410 = vmatprep.subr.mxu0 0.0
  %411 = vmatpush1.msra.mxu0 0.0
  %412 = vmatprep.subr.mxu0 0.0
  %413 = vmatpush1.msra.mxu0 0.0
  %414 = vmatprep.subr.mxu0 0.0
  %415 = vmatpush1.msra.mxu0 0.0
  %416 = vmatprep.subr.mxu0 0.0
  %417 = vmatpush1.msra.mxu0 0.0
  %418 = vmatprep.subr.mxu0 0.0
  %419 = vmatpush1.msra.mxu0 0.0
  %420 = vmatprep.subr.mxu0 0.0
  %421 = vmatpush1.msra.mxu0 %v50
  %422 = vmatprep.subr.mxu0 0.0
  %423 = vmatpush1.msra.mxu0 %v49
  %424 = vmatprep.subr.mxu0 0.0
  %425 = vmatpush1.msra.mxu0 %v48
  %426 = vmatprep.subr.mxu0 0.0
  %427 = vmatpush1.msra.mxu0 %v47
  %428 = vmatprep.subr.mxu0 0.0
  %429 = vmatpush2.msra.mxu0 0.0
  %430 = vmatprep.subr.mxu0 0.0
  %431 = vmatpush2.msra.mxu0 0.0
  %432 = vmatprep.subr.mxu0 0.0
  %433 = vmatpush2.msra.mxu0 0.0
  %434 = vmatprep.subr.mxu0 0.0
  %435 = vmatpush2.msra.mxu0 0.0
  %436 = vmatprep.subr.mxu0 0.0
  %437 = vmatpush2.msra.mxu0 0.0
  %438 = vmatprep.subr.mxu0 0.0
  %439 = vmatpush2.msra.mxu0 0.0
  %440 = vmatprep.subr.mxu0 0.0
  %441 = vmatpush2.msra.mxu0 0.0
  %442 = vmatprep.subr.mxu0 0.0
  %443 = vmatpush2.msra.mxu0 0.0
  %444 = vmatprep.subr.mxu0 0.0
  %445 = vmatpush2.msra.mxu0 0.0
  %446 = vmatprep.subr.mxu0 0.0
  %447 = vmatpush2.msra.mxu0 0.0
  %448 = vmatprep.subr.mxu0 0.0
  %449 = vmatpush2.msra.mxu0 0.0
  %450 = vmatprep.subr.mxu0 0.0
  %451 = vmatpush2.msra.mxu0 0.0
  %452 = vmatprep.subr.mxu0 0.0
  %453 = vmatpush2.msra.mxu0 0.0
  %454 = vmatprep.subr.mxu0 0.0
  %455 = vmatpush2.msra.mxu0 0.0
  %456 = vmatprep.subr.mxu0 0.0
  %457 = vmatpush2.msra.mxu0 0.0
  %458 = vmatprep.subr.mxu0 0.0
  %459 = vmatpush2.msra.mxu0 0.0
  %460 = vmatprep.mubr.f32.mxu0 0.0
  %461 = vmatmul.mubr.f32.gmra.mxu0 %v391
  %v462 = vpop.f32.mrf.mxu0
  %v463 = vadd.f32 0.0, %v462
  %v464 = vpop.f32.mrf.mxu0
  %465 = vmatprep.mubr.f32.mxu0 0.0
  %466 = vmatmul.mubr.f32.gmra.mxu0 %v394
  %v467 = vpop.f32.mrf.mxu0
  %v468 = vadd.f32 0.0, %v467
  %v469 = vpop.f32.mrf.mxu0
  %470 = vdwg.mxu0
  %s471 = scalar_lea.vmem %s2, 32
  %v472 = vld [vmem:[%s471] sm:$0xff]
  %v473 = vld [vmem:[%s471 + $0x8] sm:$0xff]
  %v475 = vsel %vm224, %v463, 0
  %v478 = vsel %vm224, %v468, 0
  %480 = vmatprep.subr.mxu0 0.0
  %481 = vmatpush1.msra.mxu0 0.0
  %482 = vmatprep.subr.mxu0 0.0
  %483 = vmatpush1.msra.mxu0 0.0
  %484 = vmatprep.subr.mxu0 0.0
  %485 = vmatpush1.msra.mxu0 0.0
  %486 = vmatprep.subr.mxu0 0.0
  %487 = vmatpush1.msra.mxu0 0.0
  %488 = vmatprep.subr.mxu0 0.0
  %489 = vmatpush1.msra.mxu0 0.0
  %490 = vmatprep.subr.mxu0 0.0
  %491 = vmatpush1.msra.mxu0 0.0
  %492 = vmatprep.subr.mxu0 0.0
  %493 = vmatpush1.msra.mxu0 0.0
  %494 = vmatprep.subr.mxu0 0.0
  %495 = vmatpush1.msra.mxu0 0.0
  %496 = vmatprep.subr.mxu0 0.0
  %497 = vmatpush1.msra.mxu0 0.0
  %498 = vmatprep.subr.mxu0 0.0
  %499 = vmatpush1.msra.mxu0 0.0
  %500 = vmatprep.subr.mxu0 0.0
  %501 = vmatpush1.msra.mxu0 0.0
  %502 = vmatprep.subr.mxu0 0.0
  %503 = vmatpush1.msra.mxu0 0.0
  %504 = vmatprep.subr.mxu0 0.0
  %505 = vmatpush1.msra.mxu0 0.0
  %506 = vmatprep.subr.mxu0 0.0
  %507 = vmatpush1.msra.mxu0 0.0
  %508 = vmatprep.subr.mxu0 0.0
  %509 = vmatpush1.msra.mxu0 %v473
  %510 = vmatprep.subr.mxu0 0.0
  %511 = vmatpush1.msra.mxu0 %v472
  %512 = vmatprep.subr.mxu0 0.0
  %513 = vmatpush2.msra.mxu0 0.0
  %514 = vmatprep.subr.mxu0 0.0
  %515 = vmatpush2.msra.mxu0 0.0
  %516 = vmatprep.subr.mxu0 0.0
  %517 = vmatpush2.msra.mxu0 0.0
  %518 = vmatprep.subr.mxu0 0.0
  %519 = vmatpush2.msra.mxu0 0.0
  %520 = vmatprep.subr.mxu0 0.0
  %521 = vmatpush2.msra.mxu0 0.0
  %522 = vmatprep.subr.mxu0 0.0
  %523 = vmatpush2.msra.mxu0 0.0
  %524 = vmatprep.subr.mxu0 0.0
  %525 = vmatpush2.msra.mxu0 0.0
  %526 = vmatprep.subr.mxu0 0.0
  %527 = vmatpush2.msra.mxu0 0.0
  %528 = vmatprep.subr.mxu0 0.0
  %529 = vmatpush2.msra.mxu0 0.0
  %530 = vmatprep.subr.mxu0 0.0
  %531 = vmatpush2.msra.mxu0 0.0
  %532 = vmatprep.subr.mxu0 0.0
  %533 = vmatpush2.msra.mxu0 0.0
  %534 = vmatprep.subr.mxu0 0.0
  %535 = vmatpush2.msra.mxu0 0.0
  %536 = vmatprep.subr.mxu0 0.0
  %537 = vmatpush2.msra.mxu0 0.0
  %538 = vmatprep.subr.mxu0 0.0
  %539 = vmatpush2.msra.mxu0 0.0
  %540 = vmatprep.subr.mxu0 0.0
  %541 = vmatpush2.msra.mxu0 0.0
  %542 = vmatprep.subr.mxu0 0.0
  %543 = vmatpush2.msra.mxu0 0.0
  %544 = vmatprep.mubr.f32.mxu0 0.0
  %545 = vmatmul.mubr.f32.gmra.mxu0 %v475
  %v546 = vpop.f32.mrf.mxu0
  %v547 = vadd.f32 0.0, %v546
  %v548 = vpop.f32.mrf.mxu0
  %549 = vmatprep.mubr.f32.mxu0 0.0
  %550 = vmatmul.mubr.f32.gmra.mxu0 %v478
  %v551 = vpop.f32.mrf.mxu0
  %v552 = vadd.f32 0.0, %v551
  %v553 = vpop.f32.mrf.mxu0
  %554 = vdwg.mxu0
  %v555 = vadd.f32 %v379, %v547
  %v556 = vadd.f32 %v384, %v552
  %v557 = vld [vmem:[%s3] sm:$0x1]
  %v559 = vlaneseq
  %v560 = vshrl.u32 %v559, 7
  %v561 = vsub.s32 0, %v560
  %v562 = vrot.slane %v557, %v561
  %v564 = vadd.f32 %v555, %v562
  %v565 = vadd.f32 %v556, %v562
  %v566 = vmax.f32 %v564, 0.0
  %v567 = vmax.f32 %v565, 0.0
  %v568 = vld [vmem:[%s4] sm:$0xff]
  %v570 = vsel %vm224, %v568, 0
  %572 = vmatprep.subr.mxu0 0.0
  %573 = vmatpush1.msra.mxu0 0.0
  %574 = vmatprep.subr.mxu0 0.0
  %575 = vmatpush1.msra.mxu0 0.0
  %576 = vmatprep.subr.mxu0 0.0
  %577 = vmatpush1.msra.mxu0 0.0
  %578 = vmatprep.subr.mxu0 0.0
  %579 = vmatpush1.msra.mxu0 0.0
  %580 = vmatprep.subr.mxu0 0.0
  %581 = vmatpush1.msra.mxu0 0.0
  %582 = vmatprep.subr.mxu0 0.0
  %583 = vmatpush1.msra.mxu0 0.0
  %584 = vmatprep.subr.mxu0 0.0
  %585 = vmatpush1.msra.mxu0 0.0
  %586 = vmatprep.subr.mxu0 0.0
  %587 = vmatpush1.msra.mxu0 0.0
  %588 = vmatprep.subr.mxu0 0.0
  %589 = vmatpush1.msra.mxu0 0.0
  %590 = vmatprep.subr.mxu0 0.0
  %591 = vmatpush1.msra.mxu0 0.0
  %592 = vmatprep.subr.mxu0 0.0
  %593 = vmatpush1.msra.mxu0 0.0
  %594 = vmatprep.subr.mxu0 0.0
  %595 = vmatpush1.msra.mxu0 0.0
  %596 = vmatprep.subr.mxu0 0.0
  %597 = vmatpush1.msra.mxu0 0.0
  %598 = vmatprep.subr.mxu0 0.0
  %599 = vmatpush1.msra.mxu0 0.0
  %600 = vmatprep.subr.mxu0 0.0
  %601 = vmatpush1.msra.mxu0 %v567
  %602 = vmatprep.subr.mxu0 0.0
  %603 = vmatpush1.msra.mxu0 %v566
  %604 = vmatprep.subr.mxu0 0.0
  %605 = vmatpush2.msra.mxu0 0.0
  %606 = vmatprep.subr.mxu0 0.0
  %607 = vmatpush2.msra.mxu0 0.0
  %608 = vmatprep.subr.mxu0 0.0
  %609 = vmatpush2.msra.mxu0 0.0
  %610 = vmatprep.subr.mxu0 0.0
  %611 = vmatpush2.msra.mxu0 0.0
  %612 = vmatprep.subr.mxu0 0.0
  %613 = vmatpush2.msra.mxu0 0.0
  %614 = vmatprep.subr.mxu0 0.0
  %615 = vmatpush2.msra.mxu0 0.0
  %616 = vmatprep.subr.mxu0 0.0
  %617 = vmatpush2.msra.mxu0 0.0
  %618 = vmatprep.subr.mxu0 0.0
  %619 = vmatpush2.msra.mxu0 0.0
  %620 = vmatprep.subr.mxu0 0.0
  %621 = vmatpush2.msra.mxu0 0.0
  %622 = vmatprep.subr.mxu0 0.0
  %623 = vmatpush2.msra.mxu0 0.0
  %624 = vmatprep.subr.mxu0 0.0
  %625 = vmatpush2.msra.mxu0 0.0
  %626 = vmatprep.subr.mxu0 0.0
  %627 = vmatpush2.msra.mxu0 0.0
  %628 = vmatprep.subr.mxu0 0.0
  %629 = vmatpush2.msra.mxu0 0.0
  %630 = vmatprep.subr.mxu0 0.0
  %631 = vmatpush2.msra.mxu0 0.0
  %632 = vmatprep.subr.mxu0 0.0
  %633 = vmatpush2.msra.mxu0 0.0
  %634 = vmatprep.subr.mxu0 0.0
  %635 = vmatpush2.msra.mxu0 0.0
  %636 = vmatprep.mubr.f32.mxu0 0.0
  %637 = vmatmul.mubr.f32.gmra.mxu0 %v570
  %v638 = vpop.f32.mrf.mxu0
  %v639 = vadd.f32 0.0, %v638
  %v640 = vpop.f32.mrf.mxu0
  %641 = vdwg.mxu0
  %v642 = vld [vmem:[%s5] sm:$0xff]
  %v643 = vld [vmem:[%s5 + $0x8] sm:$0xff]
  %v644 = vld [vmem:[%s5 + $0x10] sm:$0xff]
  %v645 = vld [vmem:[%s5 + $0x18] sm:$0xff]
  %v646 = vld [vmem:[%s5 + $0x20] sm:$0xff]
  %v647 = vld [vmem:[%s5 + $0x28] sm:$0xff]
  %v648 = vld [vmem:[%s5 + $0x30] sm:$0xff]
  %v649 = vld [vmem:[%s5 + $0x38] sm:$0xff]
  %s650 = scalar_lea.vmem %s4, 8
  %v651 = vld [vmem:[%s650] sm:$0xff]
  %v653 = vsel %vm224, %v651, 0
  %655 = vmatprep.subr.mxu0 0.0
  %656 = vmatpush1.msra.mxu0 0.0
  %657 = vmatprep.subr.mxu0 0.0
  %658 = vmatpush1.msra.mxu0 0.0
  %659 = vmatprep.subr.mxu0 0.0
  %660 = vmatpush1.msra.mxu0 0.0
  %661 = vmatprep.subr.mxu0 0.0
  %662 = vmatpush1.msra.mxu0 0.0
  %663 = vmatprep.subr.mxu0 0.0
  %664 = vmatpush1.msra.mxu0 0.0
  %665 = vmatprep.subr.mxu0 0.0
  %666 = vmatpush1.msra.mxu0 0.0
  %667 = vmatprep.subr.mxu0 0.0
  %668 = vmatpush1.msra.mxu0 0.0
  %669 = vmatprep.subr.mxu0 0.0
  %670 = vmatpush1.msra.mxu0 0.0
  %671 = vmatprep.subr.mxu0 0.0
  %672 = vmatpush1.msra.mxu0 0.0
  %673 = vmatprep.subr.mxu0 0.0
  %674 = vmatpush1.msra.mxu0 0.0
  %675 = vmatprep.subr.mxu0 0.0
  %676 = vmatpush1.msra.mxu0 0.0
  %677 = vmatprep.subr.mxu0 0.0
  %678 = vmatpush1.msra.mxu0 0.0
  %679 = vmatprep.subr.mxu0 0.0
  %680 = vmatpush1.msra.mxu0 0.0
  %681 = vmatprep.subr.mxu0 0.0
  %682 = vmatpush1.msra.mxu0 0.0
  %683 = vmatprep.subr.mxu0 0.0
  %684 = vmatpush1.msra.mxu0 %v567
  %685 = vmatprep.subr.mxu0 0.0
  %686 = vmatpush1.msra.mxu0 %v566
  %687 = vmatprep.subr.mxu0 0.0
  %688 = vmatpush2.msra.mxu0 0.0
  %689 = vmatprep.subr.mxu0 0.0
  %690 = vmatpush2.msra.mxu0 0.0
  %691 = vmatprep.subr.mxu0 0.0
  %692 = vmatpush2.msra.mxu0 0.0
  %693 = vmatprep.subr.mxu0 0.0
  %694 = vmatpush2.msra.mxu0 0.0
  %695 = vmatprep.subr.mxu0 0.0
  %696 = vmatpush2.msra.mxu0 0.0
  %697 = vmatprep.subr.mxu0 0.0
  %698 = vmatpush2.msra.mxu0 0.0
  %699 = vmatprep.subr.mxu0 0.0
  %700 = vmatpush2.msra.mxu0 0.0
  %701 = vmatprep.subr.mxu0 0.0
  %702 = vmatpush2.msra.mxu0 0.0
  %703 = vmatprep.subr.mxu0 0.0
  %704 = vmatpush2.msra.mxu0 0.0
  %705 = vmatprep.subr.mxu0 0.0
  %706 = vmatpush2.msra.mxu0 0.0
  %707 = vmatprep.subr.mxu0 0.0
  %708 = vmatpush2.msra.mxu0 0.0
  %709 = vmatprep.subr.mxu0 0.0
  %710 = vmatpush2.msra.mxu0 0.0
  %711 = vmatprep.subr.mxu0 0.0
  %712 = vmatpush2.msra.mxu0 0.0
  %713 = vmatprep.subr.mxu0 0.0
  %714 = vmatpush2.msra.mxu0 0.0
  %715 = vmatprep.subr.mxu0 0.0
  %716 = vmatpush2.msra.mxu0 0.0
  %717 = vmatprep.subr.mxu0 0.0
  %718 = vmatpush2.msra.mxu0 0.0
  %719 = vmatprep.mubr.f32.mxu0 0.0
  %720 = vmatmul.mubr.f32.gmra.mxu0 %v653
  %v721 = vpop.f32.mrf.mxu0
  %v722 = vadd.f32 0.0, %v721
  %v723 = vpop.f32.mrf.mxu0
  %724 = vdwg.mxu0
  %s725 = scalar_lea.vmem %s5, 64
  %v726 = vld [vmem:[%s725] sm:$0xff]
  %v727 = vld [vmem:[%s725 + $0x8] sm:$0xff]
  %v728 = vld [vmem:[%s725 + $0x10] sm:$0xff]
  %v729 = vld [vmem:[%s725 + $0x18] sm:$0xff]
  %v730 = vld [vmem:[%s725 + $0x20] sm:$0xff]
  %v731 = vld [vmem:[%s725 + $0x28] sm:$0xff]
  %v732 = vld [vmem:[%s725 + $0x30] sm:$0xff]
  %v733 = vld [vmem:[%s725 + $0x38] sm:$0xff]
  %vm734 = vcmask 523264
  %v736 = vsel %vm734, %v722, 0
  %738 = vmatprep.subr.mxu0 0.0
  %739 = vmatpush1.msra.mxu0 0.0
  %740 = vmatprep.subr.mxu0 0.0
  %741 = vmatpush1.msra.mxu0 0.0
  %742 = vmatprep.subr.mxu0 0.0
  %743 = vmatpush1.msra.mxu0 0.0
  %744 = vmatprep.subr.mxu0 0.0
  %745 = vmatpush1.msra.mxu0 0.0
  %746 = vmatprep.subr.mxu0 0.0
  %747 = vmatpush1.msra.mxu0 0.0
  %748 = vmatprep.subr.mxu0 0.0
  %749 = vmatpush1.msra.mxu0 0.0
  %750 = vmatprep.subr.mxu0 0.0
  %751 = vmatpush1.msra.mxu0 0.0
  %752 = vmatprep.subr.mxu0 0.0
  %753 = vmatpush1.msra.mxu0 0.0
  %754 = vmatprep.subr.mxu0 0.0
  %755 = vmatpush1.msra.mxu0 %v733
  %756 = vmatprep.subr.mxu0 0.0
  %757 = vmatpush1.msra.mxu0 %v732
  %758 = vmatprep.subr.mxu0 0.0
  %759 = vmatpush1.msra.mxu0 %v731
  %760 = vmatprep.subr.mxu0 0.0
  %761 = vmatpush1.msra.mxu0 %v730
  %762 = vmatprep.subr.mxu0 0.0
  %763 = vmatpush1.msra.mxu0 %v729
  %764 = vmatprep.subr.mxu0 0.0
  %765 = vmatpush1.msra.mxu0 %v728
  %766 = vmatprep.subr.mxu0 0.0
  %767 = vmatpush1.msra.mxu0 %v727
  %768 = vmatprep.subr.mxu0 0.0
  %769 = vmatpush1.msra.mxu0 %v726
  %770 = vmatprep.subr.mxu0 0.0
  %771 = vmatpush2.msra.mxu0 0.0
  %772 = vmatprep.subr.mxu0 0.0
  %773 = vmatpush2.msra.mxu0 0.0
  %774 = vmatprep.subr.mxu0 0.0
  %775 = vmatpush2.msra.mxu0 0.0
  %776 = vmatprep.subr.mxu0 0.0
  %777 = vmatpush2.msra.mxu0 0.0
  %778 = vmatprep.subr.mxu0 0.0
  %779 = vmatpush2.msra.mxu0 0.0
  %780 = vmatprep.subr.mxu0 0.0
  %781 = vmatpush2.msra.mxu0 0.0
  %782 = vmatprep.subr.mxu0 0.0
  %783 = vmatpush2.msra.mxu0 0.0
  %784 = vmatprep.subr.mxu0 0.0
  %785 = vmatpush2.msra.mxu0 0.0
  %786 = vmatprep.subr.mxu0 0.0
  %787 = vmatpush2.msra.mxu0 0.0
  %788 = vmatprep.subr.mxu0 0.0
  %789 = vmatpush2.msra.mxu0 0.0
  %790 = vmatprep.subr.mxu0 0.0
  %791 = vmatpush2.msra.mxu0 0.0
  %792 = vmatprep.subr.mxu0 0.0
  %793 = vmatpush2.msra.mxu0 0.0
  %794 = vmatprep.subr.mxu0 0.0
  %795 = vmatpush2.msra.mxu0 0.0
  %796 = vmatprep.subr.mxu0 0.0
  %797 = vmatpush2.msra.mxu0 0.0
  %798 = vmatprep.subr.mxu0 0.0
  %799 = vmatpush2.msra.mxu0 0.0
  %800 = vmatprep.subr.mxu0 0.0
  %801 = vmatpush2.msra.mxu0 0.0
  %802 = vmatprep.mubr.f32.mxu0 0.0
  %803 = vmatmul.mubr.f32.gmra.mxu0 %v736
  %v804 = vpop.f32.mrf.mxu0
  %v805 = vadd.f32 0.0, %v804
  %v806 = vpop.f32.mrf.mxu0
  %807 = vdwg.mxu0
  %v809 = vsel %vm734, %v639, 0
  %811 = vmatprep.subr.mxu0 0.0
  %812 = vmatpush1.msra.mxu0 0.0
  %813 = vmatprep.subr.mxu0 0.0
  %814 = vmatpush1.msra.mxu0 0.0
  %815 = vmatprep.subr.mxu0 0.0
  %816 = vmatpush1.msra.mxu0 0.0
  %817 = vmatprep.subr.mxu0 0.0
  %818 = vmatpush1.msra.mxu0 0.0
  %819 = vmatprep.subr.mxu0 0.0
  %820 = vmatpush1.msra.mxu0 0.0
  %821 = vmatprep.subr.mxu0 0.0
  %822 = vmatpush1.msra.mxu0 0.0
  %823 = vmatprep.subr.mxu0 0.0
  %824 = vmatpush1.msra.mxu0 0.0
  %825 = vmatprep.subr.mxu0 0.0
  %826 = vmatpush1.msra.mxu0 0.0
  %827 = vmatprep.subr.mxu0 0.0
  %828 = vmatpush1.msra.mxu0 %v649
  %829 = vmatprep.subr.mxu0 0.0
  %830 = vmatpush1.msra.mxu0 %v648
  %831 = vmatprep.subr.mxu0 0.0
  %832 = vmatpush1.msra.mxu0 %v647
  %833 = vmatprep.subr.mxu0 0.0
  %834 = vmatpush1.msra.mxu0 %v646
  %835 = vmatprep.subr.mxu0 0.0
  %836 = vmatpush1.msra.mxu0 %v645
  %837 = vmatprep.subr.mxu0 0.0
  %838 = vmatpush1.msra.mxu0 %v644
  %839 = vmatprep.subr.mxu0 0.0
  %840 = vmatpush1.msra.mxu0 %v643
  %841 = vmatprep.subr.mxu0 0.0
  %842 = vmatpush1.msra.mxu0 %v642
  %843 = vmatprep.subr.mxu0 0.0
  %844 = vmatpush2.msra.mxu0 0.0
  %845 = vmatprep.subr.mxu0 0.0
  %846 = vmatpush2.msra.mxu0 0.0
  %847 = vmatprep.subr.mxu0 0.0
  %848 = vmatpush2.msra.mxu0 0.0
  %849 = vmatprep.subr.mxu0 0.0
  %850 = vmatpush2.msra.mxu0 0.0
  %851 = vmatprep.subr.mxu0 0.0
  %852 = vmatpush2.msra.mxu0 0.0
  %853 = vmatprep.subr.mxu0 0.0
  %854 = vmatpush2.msra.mxu0 0.0
  %855 = vmatprep.subr.mxu0 0.0
  %856 = vmatpush2.msra.mxu0 0.0
  %857 = vmatprep.subr.mxu0 0.0
  %858 = vmatpush2.msra.mxu0 0.0
  %859 = vmatprep.subr.mxu0 0.0
  %860 = vmatpush2.msra.mxu0 0.0
  %861 = vmatprep.subr.mxu0 0.0
  %862 = vmatpush2.msra.mxu0 0.0
  %863 = vmatprep.subr.mxu0 0.0
  %864 = vmatpush2.msra.mxu0 0.0
  %865 = vmatprep.subr.mxu0 0.0
  %866 = vmatpush2.msra.mxu0 0.0
  %867 = vmatprep.subr.mxu0 0.0
  %868 = vmatpush2.msra.mxu0 0.0
  %869 = vmatprep.subr.mxu0 0.0
  %870 = vmatpush2.msra.mxu0 0.0
  %871 = vmatprep.subr.mxu0 0.0
  %872 = vmatpush2.msra.mxu0 0.0
  %873 = vmatprep.subr.mxu0 0.0
  %874 = vmatpush2.msra.mxu0 0.0
  %875 = vmatprep.mubr.f32.mxu0 0.0
  %876 = vmatmul.mubr.f32.gmra.mxu0 %v809
  %v877 = vpop.f32.mrf.mxu0
  %v878 = vadd.f32 %v805, %v877
  %v879 = vpop.f32.mrf.mxu0
  %880 = vdwg.mxu0
  %s881 = scalar_lea.vmem %s4, 16
  %v882 = vld [vmem:[%s881] sm:$0xff]
  %v884 = vsel %vm224, %v882, 0
  %886 = vmatprep.subr.mxu0 0.0
  %887 = vmatpush1.msra.mxu0 0.0
  %888 = vmatprep.subr.mxu0 0.0
  %889 = vmatpush1.msra.mxu0 0.0
  %890 = vmatprep.subr.mxu0 0.0
  %891 = vmatpush1.msra.mxu0 0.0
  %892 = vmatprep.subr.mxu0 0.0
  %893 = vmatpush1.msra.mxu0 0.0
  %894 = vmatprep.subr.mxu0 0.0
  %895 = vmatpush1.msra.mxu0 0.0
  %896 = vmatprep.subr.mxu0 0.0
  %897 = vmatpush1.msra.mxu0 0.0
  %898 = vmatprep.subr.mxu0 0.0
  %899 = vmatpush1.msra.mxu0 0.0
  %900 = vmatprep.subr.mxu0 0.0
  %901 = vmatpush1.msra.mxu0 0.0
  %902 = vmatprep.subr.mxu0 0.0
  %903 = vmatpush1.msra.mxu0 0.0
  %904 = vmatprep.subr.mxu0 0.0
  %905 = vmatpush1.msra.mxu0 0.0
  %906 = vmatprep.subr.mxu0 0.0
  %907 = vmatpush1.msra.mxu0 0.0
  %908 = vmatprep.subr.mxu0 0.0
  %909 = vmatpush1.msra.mxu0 0.0
  %910 = vmatprep.subr.mxu0 0.0
  %911 = vmatpush1.msra.mxu0 0.0
  %912 = vmatprep.subr.mxu0 0.0
  %913 = vmatpush1.msra.mxu0 0.0
  %914 = vmatprep.subr.mxu0 0.0
  %915 = vmatpush1.msra.mxu0 %v567
  %916 = vmatprep.subr.mxu0 0.0
  %917 = vmatpush1.msra.mxu0 %v566
  %918 = vmatprep.subr.mxu0 0.0
  %919 = vmatpush2.msra.mxu0 0.0
  %920 = vmatprep.subr.mxu0 0.0
  %921 = vmatpush2.msra.mxu0 0.0
  %922 = vmatprep.subr.mxu0 0.0
  %923 = vmatpush2.msra.mxu0 0.0
  %924 = vmatprep.subr.mxu0 0.0
  %925 = vmatpush2.msra.mxu0 0.0
  %926 = vmatprep.subr.mxu0 0.0
  %927 = vmatpush2.msra.mxu0 0.0
  %928 = vmatprep.subr.mxu0 0.0
  %929 = vmatpush2.msra.mxu0 0.0
  %930 = vmatprep.subr.mxu0 0.0
  %931 = vmatpush2.msra.mxu0 0.0
  %932 = vmatprep.subr.mxu0 0.0
  %933 = vmatpush2.msra.mxu0 0.0
  %934 = vmatprep.subr.mxu0 0.0
  %935 = vmatpush2.msra.mxu0 0.0
  %936 = vmatprep.subr.mxu0 0.0
  %937 = vmatpush2.msra.mxu0 0.0
  %938 = vmatprep.subr.mxu0 0.0
  %939 = vmatpush2.msra.mxu0 0.0
  %940 = vmatprep.subr.mxu0 0.0
  %941 = vmatpush2.msra.mxu0 0.0
  %942 = vmatprep.subr.mxu0 0.0
  %943 = vmatpush2.msra.mxu0 0.0
  %944 = vmatprep.subr.mxu0 0.0
  %945 = vmatpush2.msra.mxu0 0.0
  %946 = vmatprep.subr.mxu0 0.0
  %947 = vmatpush2.msra.mxu0 0.0
  %948 = vmatprep.subr.mxu0 0.0
  %949 = vmatpush2.msra.mxu0 0.0
  %950 = vmatprep.mubr.f32.mxu0 0.0
  %951 = vmatmul.mubr.f32.gmra.mxu0 %v884
  %v952 = vpop.f32.mrf.mxu0
  %v953 = vadd.f32 0.0, %v952
  %v954 = vpop.f32.mrf.mxu0
  %955 = vdwg.mxu0
  %s956 = scalar_lea.vmem %s5, 128
  %v957 = vld [vmem:[%s956] sm:$0xff]
  %v958 = vld [vmem:[%s956 + $0x8] sm:$0xff]
  %v959 = vld [vmem:[%s956 + $0x10] sm:$0xff]
  %v960 = vld [vmem:[%s956 + $0x18] sm:$0xff]
  %v961 = vld [vmem:[%s956 + $0x20] sm:$0xff]
  %v962 = vld [vmem:[%s956 + $0x28] sm:$0xff]
  %v963 = vld [vmem:[%s956 + $0x30] sm:$0xff]
  %v964 = vld [vmem:[%s956 + $0x38] sm:$0xff]
  %v966 = vsel %vm734, %v953, 0
  %968 = vmatprep.subr.mxu0 0.0
  %969 = vmatpush1.msra.mxu0 0.0
  %970 = vmatprep.subr.mxu0 0.0
  %971 = vmatpush1.msra.mxu0 0.0
  %972 = vmatprep.subr.mxu0 0.0
  %973 = vmatpush1.msra.mxu0 0.0
  %974 = vmatprep.subr.mxu0 0.0
  %975 = vmatpush1.msra.mxu0 0.0
  %976 = vmatprep.subr.mxu0 0.0
  %977 = vmatpush1.msra.mxu0 0.0
  %978 = vmatprep.subr.mxu0 0.0
  %979 = vmatpush1.msra.mxu0 0.0
  %980 = vmatprep.subr.mxu0 0.0
  %981 = vmatpush1.msra.mxu0 0.0
  %982 = vmatprep.subr.mxu0 0.0
  %983 = vmatpush1.msra.mxu0 0.0
  %984 = vmatprep.subr.mxu0 0.0
  %985 = vmatpush1.msra.mxu0 %v964
  %986 = vmatprep.subr.mxu0 0.0
  %987 = vmatpush1.msra.mxu0 %v963
  %988 = vmatprep.subr.mxu0 0.0
  %989 = vmatpush1.msra.mxu0 %v962
  %990 = vmatprep.subr.mxu0 0.0
  %991 = vmatpush1.msra.mxu0 %v961
  %992 = vmatprep.subr.mxu0 0.0
  %993 = vmatpush1.msra.mxu0 %v960
  %994 = vmatprep.subr.mxu0 0.0
  %995 = vmatpush1.msra.mxu0 %v959
  %996 = vmatprep.subr.mxu0 0.0
  %997 = vmatpush1.msra.mxu0 %v958
  %998 = vmatprep.subr.mxu0 0.0
  %999 = vmatpush1.msra.mxu0 %v957
  %1000 = vmatprep.subr.mxu0 0.0
  %1001 = vmatpush2.msra.mxu0 0.0
  %1002 = vmatprep.subr.mxu0 0.0
  %1003 = vmatpush2.msra.mxu0 0.0
  %1004 = vmatprep.subr.mxu0 0.0
  %1005 = vmatpush2.msra.mxu0 0.0
  %1006 = vmatprep.subr.mxu0 0.0
  %1007 = vmatpush2.msra.mxu0 0.0
  %1008 = vmatprep.subr.mxu0 0.0
  %1009 = vmatpush2.msra.mxu0 0.0
  %1010 = vmatprep.subr.mxu0 0.0
  %1011 = vmatpush2.msra.mxu0 0.0
  %1012 = vmatprep.subr.mxu0 0.0
  %1013 = vmatpush2.msra.mxu0 0.0
  %1014 = vmatprep.subr.mxu0 0.0
  %1015 = vmatpush2.msra.mxu0 0.0
  %1016 = vmatprep.subr.mxu0 0.0
  %1017 = vmatpush2.msra.mxu0 0.0
  %1018 = vmatprep.subr.mxu0 0.0
  %1019 = vmatpush2.msra.mxu0 0.0
  %1020 = vmatprep.subr.mxu0 0.0
  %1021 = vmatpush2.msra.mxu0 0.0
  %1022 = vmatprep.subr.mxu0 0.0
  %1023 = vmatpush2.msra.mxu0 0.0
  %1024 = vmatprep.subr.mxu0 0.0
  %1025 = vmatpush2.msra.mxu0 0.0
  %1026 = vmatprep.subr.mxu0 0.0
  %1027 = vmatpush2.msra.mxu0 0.0
  %1028 = vmatprep.subr.mxu0 0.0
  %1029 = vmatpush2.msra.mxu0 0.0
  %1030 = vmatprep.subr.mxu0 0.0
  %1031 = vmatpush2.msra.mxu0 0.0
  %1032 = vmatprep.mubr.f32.mxu0 0.0
  %1033 = vmatmul.mubr.f32.gmra.mxu0 %v966
  %v1034 = vpop.f32.mrf.mxu0
  %v1035 = vadd.f32 0.0, %v1034
  %v1036 = vpop.f32.mrf.mxu0
  %1037 = vdwg.mxu0
  %v1038 = vadd.f32 %v878, %v1035
  %v1039 = vld [vmem:[%s6] sm:$0x1]
  %v1041 = vlaneseq
  %v1042 = vshrl.u32 %v1041, 7
  %v1043 = vsub.s32 0, %v1042
  %v1044 = vrot.slane %v1039, %v1043
  %v1046 = vadd.f32 %v1038, %v1044
  %v1047 = vmax.f32 %v1046, 0.0
  %v1048 = vld [vmem:[%s7] sm:$0x3]
  %vm1049 = vcmask 64512
  %v1051 = vsel %vm1049, %v1048, 0
  %1053 = vmatprep.subr.mxu0 0.0
  %1054 = vmatpush1.msra.mxu0 0.0
  %1055 = vmatprep.subr.mxu0 0.0
  %1056 = vmatpush1.msra.mxu0 0.0
  %1057 = vmatprep.subr.mxu0 0.0
  %1058 = vmatpush1.msra.mxu0 0.0
  %1059 = vmatprep.subr.mxu0 0.0
  %1060 = vmatpush1.msra.mxu0 0.0
  %1061 = vmatprep.subr.mxu0 0.0
  %1062 = vmatpush1.msra.mxu0 0.0
  %1063 = vmatprep.subr.mxu0 0.0
  %1064 = vmatpush1.msra.mxu0 0.0
  %1065 = vmatprep.subr.mxu0 0.0
  %1066 = vmatpush1.msra.mxu0 0.0
  %1067 = vmatprep.subr.mxu0 0.0
  %1068 = vmatpush1.msra.mxu0 0.0
  %1069 = vmatprep.subr.mxu0 0.0
  %1070 = vmatpush1.msra.mxu0 0.0
  %1071 = vmatprep.subr.mxu0 0.0
  %1072 = vmatpush1.msra.mxu0 0.0
  %1073 = vmatprep.subr.mxu0 0.0
  %1074 = vmatpush1.msra.mxu0 0.0
  %1075 = vmatprep.subr.mxu0 0.0
  %1076 = vmatpush1.msra.mxu0 0.0
  %1077 = vmatprep.subr.mxu0 0.0
  %1078 = vmatpush1.msra.mxu0 0.0
  %1079 = vmatprep.subr.mxu0 0.0
  %1080 = vmatpush1.msra.mxu0 0.0
  %1081 = vmatprep.subr.mxu0 0.0
  %1082 = vmatpush1.msra.mxu0 0.0
  %1083 = vmatprep.subr.mxu0 0.0
  %1084 = vmatpush1.msra.mxu0 %v1047
  %1085 = vmatprep.subr.mxu0 0.0
  %1086 = vmatpush2.msra.mxu0 0.0
  %1087 = vmatprep.subr.mxu0 0.0
  %1088 = vmatpush2.msra.mxu0 0.0
  %1089 = vmatprep.subr.mxu0 0.0
  %1090 = vmatpush2.msra.mxu0 0.0
  %1091 = vmatprep.subr.mxu0 0.0
  %1092 = vmatpush2.msra.mxu0 0.0
  %1093 = vmatprep.subr.mxu0 0.0
  %1094 = vmatpush2.msra.mxu0 0.0
  %1095 = vmatprep.subr.mxu0 0.0
  %1096 = vmatpush2.msra.mxu0 0.0
  %1097 = vmatprep.subr.mxu0 0.0
  %1098 = vmatpush2.msra.mxu0 0.0
  %1099 = vmatprep.subr.mxu0 0.0
  %1100 = vmatpush2.msra.mxu0 0.0
  %1101 = vmatprep.subr.mxu0 0.0
  %1102 = vmatpush2.msra.mxu0 0.0
  %1103 = vmatprep.subr.mxu0 0.0
  %1104 = vmatpush2.msra.mxu0 0.0
  %1105 = vmatprep.subr.mxu0 0.0
  %1106 = vmatpush2.msra.mxu0 0.0
  %1107 = vmatprep.subr.mxu0 0.0
  %1108 = vmatpush2.msra.mxu0 0.0
  %1109 = vmatprep.subr.mxu0 0.0
  %1110 = vmatpush2.msra.mxu0 0.0
  %1111 = vmatprep.subr.mxu0 0.0
  %1112 = vmatpush2.msra.mxu0 0.0
  %1113 = vmatprep.subr.mxu0 0.0
  %1114 = vmatpush2.msra.mxu0 0.0
  %1115 = vmatprep.subr.mxu0 0.0
  %1116 = vmatpush2.msra.mxu0 0.0
  %1117 = vmatprep.mubr.f32.mxu0 0.0
  %1118 = vmatmul.mubr.f32.gmra.mxu0 %v1051
  %v1119 = vpop.f32.mrf.mxu0
  %v1120 = vadd.f32 0.0, %v1119
  %v1121 = vpop.f32.mrf.mxu0
  %1122 = vdwg.mxu0
  %v1123 = vld [vmem:[%s8] sm:$0xff]
  %v1124 = vld [vmem:[%s8 + $0x8] sm:$0xff]
  %v1125 = vld [vmem:[%s8 + $0x10] sm:$0xff]
  %v1126 = vld [vmem:[%s8 + $0x18] sm:$0xff]
  %v1127 = vld [vmem:[%s8 + $0x20] sm:$0xff]
  %v1128 = vld [vmem:[%s8 + $0x28] sm:$0xff]
  %v1129 = vld [vmem:[%s8 + $0x30] sm:$0xff]
  %v1130 = vld [vmem:[%s8 + $0x38] sm:$0xff]
  %v1132 = vsel %vm734, %v1120, 0
  %1134 = vmatprep.subr.mxu0 0.0
  %1135 = vmatpush1.msra.mxu0 0.0
  %1136 = vmatprep.subr.mxu0 0.0
  %1137 = vmatpush1.msra.mxu0 0.0
  %1138 = vmatprep.subr.mxu0 0.0
  %1139 = vmatpush1.msra.mxu0 0.0
  %1140 = vmatprep.subr.mxu0 0.0
  %1141 = vmatpush1.msra.mxu0 0.0
  %1142 = vmatprep.subr.mxu0 0.0
  %1143 = vmatpush1.msra.mxu0 0.0
  %1144 = vmatprep.subr.mxu0 0.0
  %1145 = vmatpush1.msra.mxu0 0.0
  %1146 = vmatprep.subr.mxu0 0.0
  %1147 = vmatpush1.msra.mxu0 0.0
  %1148 = vmatprep.subr.mxu0 0.0
  %1149 = vmatpush1.msra.mxu0 0.0
  %1150 = vmatprep.subr.mxu0 0.0
  %1151 = vmatpush1.msra.mxu0 %v1130
  %1152 = vmatprep.subr.mxu0 0.0
  %1153 = vmatpush1.msra.mxu0 %v1129
  %1154 = vmatprep.subr.mxu0 0.0
  %1155 = vmatpush1.msra.mxu0 %v1128
  %1156 = vmatprep.subr.mxu0 0.0
  %1157 = vmatpush1.msra.mxu0 %v1127
  %1158 = vmatprep.subr.mxu0 0.0
  %1159 = vmatpush1.msra.mxu0 %v1126
  %1160 = vmatprep.subr.mxu0 0.0
  %1161 = vmatpush1.msra.mxu0 %v1125
  %1162 = vmatprep.subr.mxu0 0.0
  %1163 = vmatpush1.msra.mxu0 %v1124
  %1164 = vmatprep.subr.mxu0 0.0
  %1165 = vmatpush1.msra.mxu0 %v1123
  %1166 = vmatprep.subr.mxu0 0.0
  %1167 = vmatpush2.msra.mxu0 0.0
  %1168 = vmatprep.subr.mxu0 0.0
  %1169 = vmatpush2.msra.mxu0 0.0
  %1170 = vmatprep.subr.mxu0 0.0
  %1171 = vmatpush2.msra.mxu0 0.0
  %1172 = vmatprep.subr.mxu0 0.0
  %1173 = vmatpush2.msra.mxu0 0.0
  %1174 = vmatprep.subr.mxu0 0.0
  %1175 = vmatpush2.msra.mxu0 0.0
  %1176 = vmatprep.subr.mxu0 0.0
  %1177 = vmatpush2.msra.mxu0 0.0
  %1178 = vmatprep.subr.mxu0 0.0
  %1179 = vmatpush2.msra.mxu0 0.0
  %1180 = vmatprep.subr.mxu0 0.0
  %1181 = vmatpush2.msra.mxu0 0.0
  %1182 = vmatprep.subr.mxu0 0.0
  %1183 = vmatpush2.msra.mxu0 0.0
  %1184 = vmatprep.subr.mxu0 0.0
  %1185 = vmatpush2.msra.mxu0 0.0
  %1186 = vmatprep.subr.mxu0 0.0
  %1187 = vmatpush2.msra.mxu0 0.0
  %1188 = vmatprep.subr.mxu0 0.0
  %1189 = vmatpush2.msra.mxu0 0.0
  %1190 = vmatprep.subr.mxu0 0.0
  %1191 = vmatpush2.msra.mxu0 0.0
  %1192 = vmatprep.subr.mxu0 0.0
  %1193 = vmatpush2.msra.mxu0 0.0
  %1194 = vmatprep.subr.mxu0 0.0
  %1195 = vmatpush2.msra.mxu0 0.0
  %1196 = vmatprep.subr.mxu0 0.0
  %1197 = vmatpush2.msra.mxu0 0.0
  %1198 = vmatprep.mubr.f32.mxu0 0.0
  %1199 = vmatmul.mubr.f32.gmra.mxu0 %v1132
  %v1200 = vpop.f32.mrf.mxu0
  %v1201 = vadd.f32 0.0, %v1200
  %v1202 = vpop.f32.mrf.mxu0
  %1203 = vdwg.mxu0
  %v1204 = vld [vmem:[%s9] sm:$0xff]
  %v1205 = vld [vmem:[%s9 + $0x8] sm:$0xff]
  %v1207 = vsel %vm224, %v1201, 0
  %1209 = vmatprep.subr.mxu0 0.0
  %1210 = vmatpush1.msra.mxu0 0.0
  %1211 = vmatprep.subr.mxu0 0.0
  %1212 = vmatpush1.msra.mxu0 0.0
  %1213 = vmatprep.subr.mxu0 0.0
  %1214 = vmatpush1.msra.mxu0 0.0
  %1215 = vmatprep.subr.mxu0 0.0
  %1216 = vmatpush1.msra.mxu0 0.0
  %1217 = vmatprep.subr.mxu0 0.0
  %1218 = vmatpush1.msra.mxu0 0.0
  %1219 = vmatprep.subr.mxu0 0.0
  %1220 = vmatpush1.msra.mxu0 0.0
  %1221 = vmatprep.subr.mxu0 0.0
  %1222 = vmatpush1.msra.mxu0 0.0
  %1223 = vmatprep.subr.mxu0 0.0
  %1224 = vmatpush1.msra.mxu0 0.0
  %1225 = vmatprep.subr.mxu0 0.0
  %1226 = vmatpush1.msra.mxu0 0.0
  %1227 = vmatprep.subr.mxu0 0.0
  %1228 = vmatpush1.msra.mxu0 0.0
  %1229 = vmatprep.subr.mxu0 0.0
  %1230 = vmatpush1.msra.mxu0 0.0
  %1231 = vmatprep.subr.mxu0 0.0
  %1232 = vmatpush1.msra.mxu0 0.0
  %1233 = vmatprep.subr.mxu0 0.0
  %1234 = vmatpush1.msra.mxu0 0.0
  %1235 = vmatprep.subr.mxu0 0.0
  %1236 = vmatpush1.msra.mxu0 0.0
  %1237 = vmatprep.subr.mxu0 0.0
  %1238 = vmatpush1.msra.mxu0 %v1205
  %1239 = vmatprep.subr.mxu0 0.0
  %1240 = vmatpush1.msra.mxu0 %v1204
  %1241 = vmatprep.subr.mxu0 0.0
  %1242 = vmatpush2.msra.mxu0 0.0
  %1243 = vmatprep.subr.mxu0 0.0
  %1244 = vmatpush2.msra.mxu0 0.0
  %1245 = vmatprep.subr.mxu0 0.0
  %1246 = vmatpush2.msra.mxu0 0.0
  %1247 = vmatprep.subr.mxu0 0.0
  %1248 = vmatpush2.msra.mxu0 0.0
  %1249 = vmatprep.subr.mxu0 0.0
  %1250 = vmatpush2.msra.mxu0 0.0
  %1251 = vmatprep.subr.mxu0 0.0
  %1252 = vmatpush2.msra.mxu0 0.0
  %1253 = vmatprep.subr.mxu0 0.0
  %1254 = vmatpush2.msra.mxu0 0.0
  %1255 = vmatprep.subr.mxu0 0.0
  %1256 = vmatpush2.msra.mxu0 0.0
  %1257 = vmatprep.subr.mxu0 0.0
  %1258 = vmatpush2.msra.mxu0 0.0
  %1259 = vmatprep.subr.mxu0 0.0
  %1260 = vmatpush2.msra.mxu0 0.0
  %1261 = vmatprep.subr.mxu0 0.0
  %1262 = vmatpush2.msra.mxu0 0.0
  %1263 = vmatprep.subr.mxu0 0.0
  %1264 = vmatpush2.msra.mxu0 0.0
  %1265 = vmatprep.subr.mxu0 0.0
  %1266 = vmatpush2.msra.mxu0 0.0
  %1267 = vmatprep.subr.mxu0 0.0
  %1268 = vmatpush2.msra.mxu0 0.0
  %1269 = vmatprep.subr.mxu0 0.0
  %1270 = vmatpush2.msra.mxu0 0.0
  %1271 = vmatprep.subr.mxu0 0.0
  %1272 = vmatpush2.msra.mxu0 0.0
  %1273 = vmatprep.mubr.f32.mxu0 0.0
  %1274 = vmatmul.mubr.f32.gmra.mxu0 %v1207
  %v1275 = vpop.f32.mrf.mxu0
  %v1276 = vadd.f32 0.0, %v1275
  %v1277 = vpop.f32.mrf.mxu0
  %1278 = vdwg.mxu0
  %v1279 = vtanh.pop %v1276
  %v1280 = vld [vmem:[%s10] sm:$0xff]
  %v1281 = vld [vmem:[%s10 + $0x8] sm:$0xff]
  %1282 = vmatprep.subr.mxu0 0.0
  %1283 = vmatpush1.msra.mxu0 0.0
  %1284 = vmatprep.subr.mxu0 0.0
  %1285 = vmatpush1.msra.mxu0 0.0
  %1286 = vmatprep.subr.mxu0 0.0
  %1287 = vmatpush1.msra.mxu0 0.0
  %1288 = vmatprep.subr.mxu0 0.0
  %1289 = vmatpush1.msra.mxu0 0.0
  %1290 = vmatprep.subr.mxu0 0.0
  %1291 = vmatpush1.msra.mxu0 0.0
  %1292 = vmatprep.subr.mxu0 0.0
  %1293 = vmatpush1.msra.mxu0 0.0
  %1294 = vmatprep.subr.mxu0 0.0
  %1295 = vmatpush1.msra.mxu0 0.0
  %1296 = vmatprep.subr.mxu0 0.0
  %1297 = vmatpush1.msra.mxu0 0.0
  %1298 = vmatprep.subr.mxu0 0.0
  %1299 = vmatpush1.msra.mxu0 0.0
  %1300 = vmatprep.subr.mxu0 0.0
  %1301 = vmatpush1.msra.mxu0 0.0
  %1302 = vmatprep.subr.mxu0 0.0
  %1303 = vmatpush1.msra.mxu0 0.0
  %1304 = vmatprep.subr.mxu0 0.0
  %1305 = vmatpush1.msra.mxu0 0.0
  %1306 = vmatprep.subr.mxu0 0.0
  %1307 = vmatpush1.msra.mxu0 0.0
  %1308 = vmatprep.subr.mxu0 0.0
  %1309 = vmatpush1.msra.mxu0 0.0
  %1310 = vmatprep.subr.mxu0 0.0
  %1311 = vmatpush1.msra.mxu0 %v1281
  %1312 = vmatprep.subr.mxu0 0.0
  %1313 = vmatpush1.msra.mxu0 %v1280
  %1314 = vmatprep.subr.mxu0 0.0
  %1315 = vmatpush2.msra.mxu0 0.0
  %1316 = vmatprep.subr.mxu0 0.0
  %1317 = vmatpush2.msra.mxu0 0.0
  %1318 = vmatprep.subr.mxu0 0.0
  %1319 = vmatpush2.msra.mxu0 0.0
  %1320 = vmatprep.subr.mxu0 0.0
  %1321 = vmatpush2.msra.mxu0 0.0
  %1322 = vmatprep.subr.mxu0 0.0
  %1323 = vmatpush2.msra.mxu0 0.0
  %1324 = vmatprep.subr.mxu0 0.0
  %1325 = vmatpush2.msra.mxu0 0.0
  %1326 = vmatprep.subr.mxu0 0.0
  %1327 = vmatpush2.msra.mxu0 0.0
  %1328 = vmatprep.subr.mxu0 0.0
  %1329 = vmatpush2.msra.mxu0 0.0
  %1330 = vmatprep.subr.mxu0 0.0
  %1331 = vmatpush2.msra.mxu0 0.0
  %1332 = vmatprep.subr.mxu0 0.0
  %1333 = vmatpush2.msra.mxu0 0.0
  %1334 = vmatprep.subr.mxu0 0.0
  %1335 = vmatpush2.msra.mxu0 0.0
  %1336 = vmatprep.subr.mxu0 0.0
  %1337 = vmatpush2.msra.mxu0 0.0
  %1338 = vmatprep.subr.mxu0 0.0
  %1339 = vmatpush2.msra.mxu0 0.0
  %1340 = vmatprep.subr.mxu0 0.0
  %1341 = vmatpush2.msra.mxu0 0.0
  %1342 = vmatprep.subr.mxu0 0.0
  %1343 = vmatpush2.msra.mxu0 0.0
  %1344 = vmatprep.subr.mxu0 0.0
  %1345 = vmatpush2.msra.mxu0 0.0
  %1346 = vmatprep.mubr.f32.mxu0 0.0
  %1347 = vmatmul.mubr.f32.gmra.mxu0 %v1207
  %v1348 = vpop.f32.mrf.mxu0
  %v1349 = vadd.f32 0.0, %v1348
  %v1350 = vpop.f32.mrf.mxu0
  %1351 = vdwg.mxu0
  %v1352 = vxor.u32 %v1349, 2147483648
  %v1353 = vmul.f32 %v1352, 1.442695
  %v1354 = vpow.pop %v1353
  %v1355 = vadd.f32 %v1354, 1.0
  %v1356 = vrcp.pop %v1355
  %v1357 = vmul.f32 1.0, %v1356
  %v1358 = vmul.f32 %v1279, %v1357
  %v1359 = vld [vmem:[%s11] sm:$0xff]
  %v1361 = vsel %vm1049, %v1358, 0
  %1363 = vmatprep.subr.mxu0 0.0
  %1364 = vmatpush1.msra.mxu0 0.0
  %1365 = vmatprep.subr.mxu0 0.0
  %1366 = vmatpush1.msra.mxu0 0.0
  %1367 = vmatprep.subr.mxu0 0.0
  %1368 = vmatpush1.msra.mxu0 0.0
  %1369 = vmatprep.subr.mxu0 0.0
  %1370 = vmatpush1.msra.mxu0 0.0
  %1371 = vmatprep.subr.mxu0 0.0
  %1372 = vmatpush1.msra.mxu0 0.0
  %1373 = vmatprep.subr.mxu0 0.0
  %1374 = vmatpush1.msra.mxu0 0.0
  %1375 = vmatprep.subr.mxu0 0.0
  %1376 = vmatpush1.msra.mxu0 0.0
  %1377 = vmatprep.subr.mxu0 0.0
  %1378 = vmatpush1.msra.mxu0 0.0
  %1379 = vmatprep.subr.mxu0 0.0
  %1380 = vmatpush1.msra.mxu0 0.0
  %1381 = vmatprep.subr.mxu0 0.0
  %1382 = vmatpush1.msra.mxu0 0.0
  %1383 = vmatprep.subr.mxu0 0.0
  %1384 = vmatpush1.msra.mxu0 0.0
  %1385 = vmatprep.subr.mxu0 0.0
  %1386 = vmatpush1.msra.mxu0 0.0
  %1387 = vmatprep.subr.mxu0 0.0
  %1388 = vmatpush1.msra.mxu0 0.0
  %1389 = vmatprep.subr.mxu0 0.0
  %1390 = vmatpush1.msra.mxu0 0.0
  %1391 = vmatprep.subr.mxu0 0.0
  %1392 = vmatpush1.msra.mxu0 0.0
  %1393 = vmatprep.subr.mxu0 0.0
  %1394 = vmatpush1.msra.mxu0 %v1359
  %1395 = vmatprep.subr.mxu0 0.0
  %1396 = vmatpush2.msra.mxu0 0.0
  %1397 = vmatprep.subr.mxu0 0.0
  %1398 = vmatpush2.msra.mxu0 0.0
  %1399 = vmatprep.subr.mxu0 0.0
  %1400 = vmatpush2.msra.mxu0 0.0
  %1401 = vmatprep.subr.mxu0 0.0
  %1402 = vmatpush2.msra.mxu0 0.0
  %1403 = vmatprep.subr.mxu0 0.0
  %1404 = vmatpush2.msra.mxu0 0.0
  %1405 = vmatprep.subr.mxu0 0.0
  %1406 = vmatpush2.msra.mxu0 0.0
  %1407 = vmatprep.subr.mxu0 0.0
  %1408 = vmatpush2.msra.mxu0 0.0
  %1409 = vmatprep.subr.mxu0 0.0
  %1410 = vmatpush2.msra.mxu0 0.0
  %1411 = vmatprep.subr.mxu0 0.0
  %1412 = vmatpush2.msra.mxu0 0.0
  %1413 = vmatprep.subr.mxu0 0.0
  %1414 = vmatpush2.msra.mxu0 0.0
  %1415 = vmatprep.subr.mxu0 0.0
  %1416 = vmatpush2.msra.mxu0 0.0
  %1417 = vmatprep.subr.mxu0 0.0
  %1418 = vmatpush2.msra.mxu0 0.0
  %1419 = vmatprep.subr.mxu0 0.0
  %1420 = vmatpush2.msra.mxu0 0.0
  %1421 = vmatprep.subr.mxu0 0.0
  %1422 = vmatpush2.msra.mxu0 0.0
  %1423 = vmatprep.subr.mxu0 0.0
  %1424 = vmatpush2.msra.mxu0 0.0
  %1425 = vmatprep.subr.mxu0 0.0
  %1426 = vmatpush2.msra.mxu0 0.0
  %1427 = vmatprep.mubr.f32.mxu0 0.0
  %1428 = vmatmul.mubr.f32.gmra.mxu0 %v1361
  %v1429 = vpop.f32.mrf.mxu0
  %v1430 = vadd.f32 0.0, %v1429
  %v1431 = vpop.f32.mrf.mxu0
  %1432 = vdwg.mxu0
  %vm1433 = vcmask 1024
  %v1434 = vsel %vm1433, %v1430, -inf
  %v1435 = vrot.slane %v1434, 4
  %v1436 = vmax.f32 %v1434, %v1435
  %v1437 = vrot.slane %v1436, 2
  %v1438 = vmax.f32 %v1436, %v1437
  %v1439 = vrot.slane %v1438, 1
  %v1440 = vmax.f32 %v1438, %v1439
  %v1441 = vsub.f32 %v1430, %v1440
  %v1442 = vmul.f32 %v1441, 1.442695
  %v1443 = vpow.pop %v1442
  %v1444 = vsel %vm1433, %v1443, 0.0
  %v1445 = vrot.slane %v1444, 4
  %v1446 = vadd.f32 %v1444, %v1445
  %v1447 = vrot.slane %v1446, 2
  %v1448 = vadd.f32 %v1446, %v1447
  %v1449 = vrot.slane %v1448, 1
  %v1450 = vadd.f32 %v1448, %v1449
  %v1451 = vrcp.pop %v1450
  %v1452 = vmul.f32 %v1443, %v1451
  %1454 = vset.pattern.permute.xlu0 0
  %1455 = vperm.xlu0 %1454, %v1452
  %v1456 = vpop.permute.xlu0 %1455
  %v1458 = vmul.f32 %v1456, %v1201
  %vm1459 = vcmask 123904
  %v1460 = vsel %vm1459, %v1458, 0.0
  %v1461 = vrot.slane %v1460, 4
  %v1462 = vadd.f32 %v1460, %v1461
  %v1463 = vrot.slane %v1462, 2
  %v1464 = vadd.f32 %v1462, %v1463
  %v1465 = vrot.slane %v1464, 1
  %v1466 = vadd.f32 %v1464, %v1465
  %v1467 = vld [vmem:[%s12] sm:$0xff]
  %v1468 = vld [vmem:[%s12 + $0x8] sm:$0xff]
  %v1469 = vld [vmem:[%s13] sm:$0x1]
  %v1471 = vsel %vm224, %v1466, 0
  %1473 = vmatprep.subr.mxu0 0.0
  %1474 = vmatpush1.msra.mxu0 0.0
  %1475 = vmatprep.subr.mxu0 0.0
  %1476 = vmatpush1.msra.mxu0 0.0
  %1477 = vmatprep.subr.mxu0 0.0
  %1478 = vmatpush1.msra.mxu0 0.0
  %1479 = vmatprep.subr.mxu0 0.0
  %1480 = vmatpush1.msra.mxu0 0.0
  %1481 = vmatprep.subr.mxu0 0.0
  %1482 = vmatpush1.msra.mxu0 0.0
  %1483 = vmatprep.subr.mxu0 0.0
  %1484 = vmatpush1.msra.mxu0 0.0
  %1485 = vmatprep.subr.mxu0 0.0
  %1486 = vmatpush1.msra.mxu0 0.0
  %1487 = vmatprep.subr.mxu0 0.0
  %1488 = vmatpush1.msra.mxu0 0.0
  %1489 = vmatprep.subr.mxu0 0.0
  %1490 = vmatpush1.msra.mxu0 0.0
  %1491 = vmatprep.subr.mxu0 0.0
  %1492 = vmatpush1.msra.mxu0 0.0
  %1493 = vmatprep.subr.mxu0 0.0
  %1494 = vmatpush1.msra.mxu0 0.0
  %1495 = vmatprep.subr.mxu0 0.0
  %1496 = vmatpush1.msra.mxu0 0.0
  %1497 = vmatprep.subr.mxu0 0.0
  %1498 = vmatpush1.msra.mxu0 0.0
  %1499 = vmatprep.subr.mxu0 0.0
  %1500 = vmatpush1.msra.mxu0 0.0
  %1501 = vmatprep.subr.mxu0 0.0
  %1502 = vmatpush1.msra.mxu0 %v1468
  %1503 = vmatprep.subr.mxu0 0.0
  %1504 = vmatpush1.msra.mxu0 %v1467
  %1505 = vmatprep.subr.mxu0 0.0
  %1506 = vmatpush2.msra.mxu0 0.0
  %1507 = vmatprep.subr.mxu0 0.0
  %1508 = vmatpush2.msra.mxu0 0.0
  %1509 = vmatprep.subr.mxu0 0.0
  %1510 = vmatpush2.msra.mxu0 0.0
  %1511 = vmatprep.subr.mxu0 0.0
  %1512 = vmatpush2.msra.mxu0 0.0
  %1513 = vmatprep.subr.mxu0 0.0
  %1514 = vmatpush2.msra.mxu0 0.0
  %1515 = vmatprep.subr.mxu0 0.0
  %1516 = vmatpush2.msra.mxu0 0.0
  %1517 = vmatprep.subr.mxu0 0.0
  %1518 = vmatpush2.msra.mxu0 0.0
  %1519 = vmatprep.subr.mxu0 0.0
  %1520 = vmatpush2.msra.mxu0 0.0
  %1521 = vmatprep.subr.mxu0 0.0
  %1522 = vmatpush2.msra.mxu0 0.0
  %1523 = vmatprep.subr.mxu0 0.0
  %1524 = vmatpush2.msra.mxu0 0.0
  %1525 = vmatprep.subr.mxu0 0.0
  %1526 = vmatpush2.msra.mxu0 0.0
  %1527 = vmatprep.subr.mxu0 0.0
  %1528 = vmatpush2.msra.mxu0 0.0
  %1529 = vmatprep.subr.mxu0 0.0
  %1530 = vmatpush2.msra.mxu0 0.0
  %1531 = vmatprep.subr.mxu0 0.0
  %1532 = vmatpush2.msra.mxu0 0.0
  %1533 = vmatprep.subr.mxu0 0.0
  %1534 = vmatpush2.msra.mxu0 0.0
  %1535 = vmatprep.subr.mxu0 0.0
  %1536 = vmatpush2.msra.mxu0 0.0
  %1537 = vmatprep.mubr.f32.mxu0 0.0
  %1538 = vmatmul.mubr.f32.gmra.mxu0 %v1471
  %v1539 = vpop.f32.mrf.mxu0
  %v1540 = vadd.f32 %v1469, %v1539
  %v1541 = vpop.f32.mrf.mxu0
  %1542 = vdwg.mxu0
  %v1543 = vxor.u32 %v1540, 2147483648
  %v1544 = vmul.f32 %v1543, 1.442695
  %v1545 = vpow.pop %v1544
  %v1546 = vadd.f32 %v1545, 1.0
  %v1547 = vrcp.pop %v1546
  %v1548 = vmul.f32 1.0, %v1547
  %vm1549 = vcmask 8192
  %1550 = vst.msk [vmem:[%s14] sm:$0x1] %vm1549, %v1548
  // Predicated region
  $region58: #{_lambda_.3} parent=0 // pred_check
    _
  $region59: #{_lambda_.3} parent=0 // pred_check_branch
    %1552 = sbr.rel (0) target = $region61
  $region60: #{_lambda_.3} parent=0 // pred_region
    _
  $region61: #{_lambda_.3} parent=0 // pred_fallthru
    _
  // Predicated region
  $region62: #{_lambda_.3} parent=0 // pred_check
    _
  $region63: #{_lambda_.3} parent=0 // pred_check_branch
    %1554 = sbr.rel (0) target = $region65
  $region64: #{_lambda_.3} parent=0 // pred_region
    _
  $region65: #{_lambda_.3} parent=0 // pred_fallthru
    _

</llo_original>
